<compile_context>
chip_gen: v7x
topology: tpu7x:2x2x1
jax: 0.10.0
libtpu: 0.0.40
codegen_flags: <defaults>
</compile_context>

<pallas_src>
import functools

import numpy as np
import jax
import jax.numpy as jnp
from jax import lax
from jax.experimental import pallas as pl
from jax.experimental.pallas import tpu as pltpu

EPS = 1e-8

PARAM_ORDER = [
    "g",                                  # (5, D)  RMSNorm gains (all ones)
    "gw", "gb",                           # GLU gated conv (fused out|gate)
    "lw1", "lb1", "lw2", "lb2",           # left_net (pointwise MLP)
    "rw1", "rb1", "rw2", "rb2",           # right_net (k=3 conv + pointwise)
    "spw", "spb", "sdw", "sdb", "sow", "sob",   # SeparableConv1D
    "wq", "wk", "wv", "bq", "bk", "bv", "wo", "bo",  # MultiheadAttention
    "fw1", "fb1", "fw2", "fb2",           # feed_forward (pointwise MLP)
]


def _et_kernel(S, D, H,
               x_ref, ctx_ref, val_ref,
               g_ref,
               gw_ref, gb_ref,
               lw1_ref, lb1_ref, lw2_ref, lb2_ref,
               rw1_ref, rb1_ref, rw2_ref, rb2_ref,
               spw_ref, spb_ref, sdw_ref, sdb_ref, sow_ref, sob_ref,
               wq_ref, wk_ref, wv_ref, bq_ref, bk_ref, bv_ref, wo_ref, bo_ref,
               fw1_ref, fb1_ref, fw2_ref, fb2_ref,
               o_ref):
    f32 = jnp.float32
    bf16 = jnp.bfloat16
    hd = D // H
    inv_scale = float(D) ** 0.5                  # 1 / rms_scale
    eps_ss = (EPS * inv_scale) ** 2              # clamp folded into squared sum

    row_idx = lax.broadcasted_iota(jnp.int32, (S, 1), 0)

    def shift_rows(v, shift):
        """v shifted along the sequence axis by `shift` rows with zero fill.
        XLU roll + VPU select instead of padded concat + misaligned slices."""
        if shift == 0:
            return v
        amt = shift % S
        rolled = v if amt == 0 else pltpu.roll(v, amt, axis=0)
        if shift > 0:
            keep = row_idx >= shift
        else:
            keep = row_idx < (S + shift)
        return jnp.where(keep, rolled, 0.0)

    def rms(v, g_row):
        ss = jnp.sum(v * v, axis=-1, keepdims=True)
        return v * (lax.rsqrt(jnp.maximum(ss, eps_ss)) * inv_scale) * g_row

    def mm(a, w_ref, b_ref):
        # bf16 MXU inputs, f32 accumulation, f32 bias add.
        return jnp.dot(a.astype(bf16), w_ref[...],
                       preferred_element_type=f32) + b_ref[...]

    x = x_ref[...]        # (S, D) f32
    ctx = ctx_ref[...]    # (S, D) bf16
    val = val_ref[...]    # (S, D) bf16

    # ---- GLU: single GatedConvolution, k=3 conv with 2 zeros of left padding ----
    # out/gate weights fused along output columns; tap k <-> sequence shift 2-k.
    xn = rms(x, g_ref[0:1, :])
    xnb = xn.astype(bf16)
    z = jnp.dot(shift_rows(xn, 2).astype(bf16), gw_ref[0], preferred_element_type=f32)
    z = z + jnp.dot(shift_rows(xn, 1).astype(bf16), gw_ref[1], preferred_element_type=f32)
    z = z + jnp.dot(xnb, gw_ref[2], preferred_element_type=f32)
    z = z + gb_ref[...]
    glued = z[:, :D] * jax.nn.sigmoid(z[:, D:]) + x                      # (S, D) f32

    # ---- left / right branches on RMSNorm(glued) ----
    gn = rms(glued, g_ref[1:2, :])
    gnb = gn.astype(bf16)

    left = jnp.maximum(mm(gnb, lw1_ref, lb1_ref), 0.0)
    left = mm(left, lw2_ref, lb2_ref)

    # right_net k=3 conv, symmetric padding 1: tap k <-> shift 1-k.
    r = jnp.dot(shift_rows(gn, 1).astype(bf16), rw1_ref[0], preferred_element_type=f32)
    r = r + jnp.dot(gnb, rw1_ref[1], preferred_element_type=f32)
    r = r + jnp.dot(shift_rows(gn, -1).astype(bf16), rw1_ref[2], preferred_element_type=f32)
    r = jnp.maximum(r + rb1_ref[...], 0.0)
    right = mm(r, rw2_ref, rb2_ref)

    # ---- SeparableConv1D over RMSNorm(left + right) ----
    midn = rms(left + right, g_ref[2:3, :])
    h = mm(midn, spw_ref, spb_ref)                                       # (S, Dhp) f32
    # depthwise k=9, left padding 8: tap k <-> shift 8-k.
    dacc = shift_rows(h, 8) * sdw_ref[0:1, :]
    for k in range(1, 9):
        dacc = dacc + shift_rows(h, 8 - k) * sdw_ref[k:k + 1, :]
    dacc = dacc + sdb_ref[...]
    mid = mm(dacc, sow_ref, sob_ref) + glued

    # ---- multi-head attention (query=normed, key=context, value=src_mask) ----
    # Per-head static column slices; out-projection fused into the head loop so
    # each head issues a full-width (S,hd)x(hd,D) matmul and no concatenate.
    nrm = rms(mid, g_ref[3:4, :])
    q = mm(nrm, wq_ref, bq_ref).astype(bf16)      # hd**-0.5 folded into wq/bq
    kk = mm(ctx, wk_ref, bk_ref).astype(bf16)
    vv = mm(val, wv_ref, bv_ref).astype(bf16)
    attended = bo_ref[...] + mid                  # out-proj bias + residual
    for hh in range(H):
        lo = hh * hd
        s = lax.dot_general(q[:, lo:lo + hd], kk[:, lo:lo + hd],
                            (((1,), (1,)), ((), ())),
                            preferred_element_type=f32)                  # (S, S)
        s = s - jnp.max(s, axis=-1, keepdims=True)
        p = jnp.exp(s)
        p = p * pl.reciprocal(jnp.sum(p, axis=-1, keepdims=True), approx=True)
        head = jnp.dot(p.astype(bf16), vv[:, lo:lo + hd],
                       preferred_element_type=f32)                       # (S, hd)
        attended = attended + jnp.dot(head.astype(bf16), wo_ref[lo:lo + hd, :],
                                      preferred_element_type=f32)

    # ---- feed-forward (pointwise conv MLP) ----
    n4 = rms(attended, g_ref[4:5, :])
    f = jnp.maximum(mm(n4, fw1_ref, fb1_ref), 0.0)
    f = mm(f, fw2_ref, fb2_ref)
    o_ref[...] = (f + attended).astype(o_ref.dtype)                      # single dense store


def et_encoder_block(x, context, value, params, num_heads=8):
    B, S, D = x.shape
    kernel = functools.partial(_et_kernel, S, D, num_heads)

    # context / value are only consumed through bf16 matmuls -> ship them as bf16
    # (bit-identical math, half the HBM->VMEM DMA).
    ctx = context.astype(jnp.bfloat16)
    val = value.astype(jnp.bfloat16)

    seq_spec = pl.BlockSpec((None, S, D), lambda b: (b, 0, 0))

    def weight_spec(a):
        nd = a.ndim
        # Constant index_map -> fetched once; single-buffered to halve weight VMEM.
        return pl.BlockSpec(a.shape, lambda b, _nd=nd: (0,) * _nd,
                            pipeline_mode=pl.Buffered(buffer_count=1))

    weights = [params[k] for k in PARAM_ORDER]
    in_specs = [seq_spec, seq_spec, seq_spec] + [weight_spec(w) for w in weights]

    # Generation-aware scoped VMEM budget derived from actual buffer sizes.
    try:
        vmem_cap = pltpu.get_tpu_info().vmem_capacity_bytes
    except Exception:
        vmem_cap = 128 * 1024 * 1024
    weight_bytes = sum(int(np.prod(w.shape)) * w.dtype.itemsize for w in weights)
    dff = params["lw1"].shape[1]          # D * ff_hidden
    dhp = params["spw"].shape[1]          # lane-padded D // 2
    io_bytes = 2 * S * (D * 4 + D * 2 + D * 2 + D * 4)    # double-buffered slabs
    act_bytes = 4 * S * (2 * D + dff + dhp + 12 * D) + 4 * S * S
    need = weight_bytes + io_bytes + act_bytes
    vmem_limit = int(min(vmem_cap - (4 << 20), max(32 << 20, need + need // 4)))

    return pl.pallas_call(
        kernel,
        out_shape=jax.ShapeDtypeStruct((B, S, D), jnp.float32),
        grid_spec=pltpu.PrefetchScalarGridSpec(
            num_scalar_prefetch=0,
            grid=(B,),
            in_specs=in_specs,
            out_specs=seq_spec,
        ),
        compiler_params=pltpu.CompilerParams(
            dimension_semantics=("parallel",),   # shard batch across TCs on v7x
            vmem_limit_bytes=vmem_limit,
        ),
    )(x, ctx, val, *weights)


# ------------------------- parameters (deterministic) -------------------------

def init_raw_params(key, D, ffh):
    ks = iter(jax.random.split(key, 32))
    Dh = D // 2

    def u(shape, fan_in):
        bound = 1.0 / np.sqrt(fan_in)
        return jax.random.uniform(next(ks), shape, jnp.float32, -bound, bound)

    raw = {}
    raw["g"] = jnp.ones((5, D), jnp.float32)                 # RMSNorm gains
    raw["glu_w"] = u((2 * D, D, 3), D * 3)
    raw["glu_b"] = u((2 * D,), D * 3)
    raw["left_w1"] = u((D * ffh, D, 1), D)
    raw["left_b1"] = u((D * ffh,), D)
    raw["left_w2"] = u((D, D * ffh, 1), D * ffh)
    raw["left_b2"] = u((D,), D * ffh)
    raw["right_w1"] = u((Dh, D, 3), D * 3)
    raw["right_b1"] = u((Dh,), D * 3)
    raw["right_w2"] = u((D, Dh, 1), Dh)
    raw["right_b2"] = u((D,), Dh)
    raw["sep_pre_w"] = u((Dh, D, 1), D)
    raw["sep_pre_b"] = u((Dh,), D)
    raw["sep_dw_w"] = u((Dh, 1, 9), 9)
    raw["sep_dw_b"] = u((Dh,), 9)
    raw["sep_post_w"] = u((D, Dh, 1), Dh)
    raw["sep_post_b"] = u((D,), Dh)
    raw["attn_in_w"] = u((3 * D, D), D)
    raw["attn_in_b"] = jnp.zeros((3 * D,), jnp.float32)
    raw["attn_out_w"] = u((D, D), D)
    raw["attn_out_b"] = jnp.zeros((D,), jnp.float32)
    raw["ff_w1"] = u((D * ffh, D, 1), D)
    raw["ff_b1"] = u((D * ffh,), D)
    raw["ff_w2"] = u((D, D * ffh, 1), D * ffh)
    raw["ff_b2"] = u((D,), D * ffh)
    return raw


def to_kernel_params(raw, D, num_heads=8):
    """Kernel layout: matmul weights in bf16, biases/gains in f32.
    Dh = D // 2 intermediates zero-padded to a multiple of 128 lanes (exact).
    The attention scale hd**-0.5 is folded into wq/bq before the bf16 cast."""
    bf16 = jnp.bfloat16
    Dh = D // 2
    Dhp = ((Dh + 127) // 128) * 128
    attn_scale = float(D // num_heads) ** -0.5

    def padax(a, axis, n):
        pads = [(0, 0)] * a.ndim
        pads[axis] = (0, n - a.shape[axis])
        return jnp.pad(a, pads)

    P = {}
    P["g"] = raw["g"]
    P["gw"] = jnp.transpose(raw["glu_w"], (2, 1, 0)).astype(bf16)     # (3, D, 2D)
    P["gb"] = raw["glu_b"][None, :]                                   # (1, 2D)
    P["lw1"], P["lb1"] = raw["left_w1"][:, :, 0].T.astype(bf16), raw["left_b1"][None, :]
    P["lw2"], P["lb2"] = raw["left_w2"][:, :, 0].T.astype(bf16), raw["left_b2"][None, :]
    P["rw1"] = padax(jnp.transpose(raw["right_w1"], (2, 1, 0)), 2, Dhp).astype(bf16)  # (3, D, Dhp)
    P["rb1"] = padax(raw["right_b1"][None, :], 1, Dhp)
    P["rw2"] = padax(raw["right_w2"][:, :, 0].T, 0, Dhp).astype(bf16)                 # (Dhp, D)
    P["rb2"] = raw["right_b2"][None, :]
    P["spw"] = padax(raw["sep_pre_w"][:, :, 0].T, 1, Dhp).astype(bf16)                # (D, Dhp)
    P["spb"] = padax(raw["sep_pre_b"][None, :], 1, Dhp)
    P["sdw"] = padax(raw["sep_dw_w"][:, 0, :].T, 1, Dhp)                              # (9, Dhp) f32
    P["sdb"] = padax(raw["sep_dw_b"][None, :], 1, Dhp)
    P["sow"] = padax(raw["sep_post_w"][:, :, 0].T, 0, Dhp).astype(bf16)               # (Dhp, D)
    P["sob"] = raw["sep_post_b"][None, :]
    P["wq"] = (raw["attn_in_w"][:D].T * attn_scale).astype(bf16)
    P["wk"] = raw["attn_in_w"][D:2 * D].T.astype(bf16)
    P["wv"] = raw["attn_in_w"][2 * D:].T.astype(bf16)
    P["bq"] = raw["attn_in_b"][None, :D] * attn_scale
    P["bk"] = raw["attn_in_b"][None, D:2 * D]
    P["bv"] = raw["attn_in_b"][None, 2 * D:]
    P["wo"], P["bo"] = raw["attn_out_w"].T.astype(bf16), raw["attn_out_b"][None, :]
    P["fw1"], P["fb1"] = raw["ff_w1"][:, :, 0].T.astype(bf16), raw["ff_b1"][None, :]
    P["fw2"], P["fb2"] = raw["ff_w2"][:, :, 0].T.astype(bf16), raw["ff_b2"][None, :]
    return P


# ------------------------- pure-JAX reference (for checking) -------------------------
# Uses the same (bf16-rounded, zero-padded, pre-scaled) weights as the kernel, in f32 math.

def reference(x, ctx, val, P, D, H):
    hd = D // H
    rms_scale = D ** -0.5
    B, S, _ = x.shape
    f32 = jnp.float32

    def w(name):
        return P[name].astype(f32)

    def rms(v, g):
        n = jnp.sqrt(jnp.sum(v * v, axis=-1, keepdims=True)) * rms_scale
        return v / jnp.maximum(n, EPS) * g

    def conv_seq(v, wt, pad_l, pad_r):
        vp = jnp.pad(v, ((0, 0), (pad_l, pad_r), (0, 0)))
        return sum(jnp.einsum("bsd,de->bse", vp[:, k:k + S], wt[k].astype(f32))
                   for k in range(wt.shape[0]))

    xn = rms(x, P["g"][0:1])
    z = conv_seq(xn, P["gw"], 2, 0) + P["gb"]
    glued = z[..., :D] * jax.nn.sigmoid(z[..., D:]) + x
    gn = rms(glued, P["g"][1:2])
    left = jnp.maximum(gn @ w("lw1") + P["lb1"], 0.0) @ w("lw2") + P["lb2"]
    right = (jnp.maximum(conv_seq(gn, P["rw1"], 1, 1) + P["rb1"], 0.0)
             @ w("rw2") + P["rb2"])
    mid = rms(left + right, P["g"][2:3])
    h = mid @ w("spw") + P["spb"]
    hp = jnp.pad(h, ((0, 0), (8, 0), (0, 0)))
    d = sum(hp[:, k:k + S, :] * P["sdw"][k] for k in range(9)) + P["sdb"]
    mid = d @ w("sow") + P["sob"] + glued
    nrm = rms(mid, P["g"][3:4])
    q = nrm @ w("wq") + P["bq"]          # scale already folded into wq/bq
    k_ = ctx @ w("wk") + P["bk"]
    v_ = val @ w("wv") + P["bv"]
    qh = q.reshape(B, S, H, hd).transpose(0, 2, 1, 3)
    kh = k_.reshape(B, S, H, hd).transpose(0, 2, 1, 3)
    vh = v_.reshape(B, S, H, hd).transpose(0, 2, 1, 3)
    s = jnp.einsum("bhqd,bhkd->bhqk", qh, kh)
    p = jax.nn.softmax(s, axis=-1)
    ao = jnp.einsum("bhqk,bhkd->bhqd", p, vh).transpose(0, 2, 1, 3).reshape(B, S, D)
    attended = ao @ w("wo") + P["bo"] + mid
    n4 = rms(attended, P["g"][4:5])
    f = jnp.maximum(n4 @ w("fw1") + P["fb1"], 0.0) @ w("fw2") + P["fb2"]
    return f + attended


if __name__ == "__main__":
    B, S, D, H, FFH = 2, 8, 32, 8, 4
    key = jax.random.PRNGKey(0)
    kx, kc, kv, kp = jax.random.split(key, 4)
    x = jax.random.normal(kx, (B, S, D), jnp.float32)
    context = jax.random.normal(kc, (B, S, D), jnp.float32)   # MHA key
    src_mask = jax.random.normal(kv, (B, S, D), jnp.float32)  # passed as MHA value (as in the module)

    raw = init_raw_params(kp, D, FFH)
    P = to_kernel_params(raw, D, num_heads=H)

    out = et_encoder_block(x, context, src_mask, P, num_heads=H)
    out = jax.block_until_ready(out)

    assert out.shape == (B, S, D)
    assert bool(jnp.all(jnp.isfinite(out)))

    ref = reference(x, context, src_mask, P, D, H)
    np.testing.assert_allclose(np.asarray(out), np.asarray(ref), rtol=2e-2, atol=2e-2)

    print("KERNEL_OK")
</pallas_src>

<mosaic_0001>
module attributes {stable_mosaic.version = 11 : i64} {
  func.func @_et_kernel(%arg0: i32, %arg1: memref<1x8x32xf32, #tpu.memory_space<vmem>>, %arg2: memref<1x8x32xbf16, #tpu.memory_space<vmem>>, %arg3: memref<1x8x32xbf16, #tpu.memory_space<vmem>>, %arg4: memref<5x32xf32, #tpu.memory_space<vmem>>, %arg5: memref<3x32x64xbf16, #tpu.memory_space<vmem>>, %arg6: memref<1x64xf32, #tpu.memory_space<vmem>>, %arg7: memref<32x128xbf16, #tpu.memory_space<vmem>>, %arg8: memref<1x128xf32, #tpu.memory_space<vmem>>, %arg9: memref<128x32xbf16, #tpu.memory_space<vmem>>, %arg10: memref<1x32xf32, #tpu.memory_space<vmem>>, %arg11: memref<3x32x128xbf16, #tpu.memory_space<vmem>>, %arg12: memref<1x128xf32, #tpu.memory_space<vmem>>, %arg13: memref<128x32xbf16, #tpu.memory_space<vmem>>, %arg14: memref<1x32xf32, #tpu.memory_space<vmem>>, %arg15: memref<32x128xbf16, #tpu.memory_space<vmem>>, %arg16: memref<1x128xf32, #tpu.memory_space<vmem>>, %arg17: memref<9x128xf32, #tpu.memory_space<vmem>>, %arg18: memref<1x128xf32, #tpu.memory_space<vmem>>, %arg19: memref<128x32xbf16, #tpu.memory_space<vmem>>, %arg20: memref<1x32xf32, #tpu.memory_space<vmem>>, %arg21: memref<32x32xbf16, #tpu.memory_space<vmem>>, %arg22: memref<32x32xbf16, #tpu.memory_space<vmem>>, %arg23: memref<32x32xbf16, #tpu.memory_space<vmem>>, %arg24: memref<1x32xf32, #tpu.memory_space<vmem>>, %arg25: memref<1x32xf32, #tpu.memory_space<vmem>>, %arg26: memref<1x32xf32, #tpu.memory_space<vmem>>, %arg27: memref<32x32xbf16, #tpu.memory_space<vmem>>, %arg28: memref<1x32xf32, #tpu.memory_space<vmem>>, %arg29: memref<32x128xbf16, #tpu.memory_space<vmem>>, %arg30: memref<1x128xf32, #tpu.memory_space<vmem>>, %arg31: memref<128x32xbf16, #tpu.memory_space<vmem>>, %arg32: memref<1x32xf32, #tpu.memory_space<vmem>>, %arg33: memref<1x8x32xf32, #tpu.memory_space<vmem>>) attributes {dimension_semantics = [#tpu.dimension_semantics<parallel>], iteration_bounds = array<i64: 2>, scalar_prefetch = 0 : i64, scratch_operands = 0 : i64, tpu.core_type = #tpu.core_type<tc>, window_params = [{transform_indices = @transform_0, window_bounds = array<i64: 1, 8, 32>}, {transform_indices = @transform_1, window_bounds = array<i64: 1, 8, 32>}, {transform_indices = @transform_2, window_bounds = array<i64: 1, 8, 32>}, {pipeline_mode = #tpu.pipeline_mode<synchronous>, transform_indices = @transform_3, window_bounds = array<i64: 5, 32>}, {pipeline_mode = #tpu.pipeline_mode<synchronous>, transform_indices = @transform_4, window_bounds = array<i64: 3, 32, 64>}, {pipeline_mode = #tpu.pipeline_mode<synchronous>, transform_indices = @transform_5, window_bounds = array<i64: 1, 64>}, {pipeline_mode = #tpu.pipeline_mode<synchronous>, transform_indices = @transform_6, window_bounds = array<i64: 32, 128>}, {pipeline_mode = #tpu.pipeline_mode<synchronous>, transform_indices = @transform_7, window_bounds = array<i64: 1, 128>}, {pipeline_mode = #tpu.pipeline_mode<synchronous>, transform_indices = @transform_8, window_bounds = array<i64: 128, 32>}, {pipeline_mode = #tpu.pipeline_mode<synchronous>, transform_indices = @transform_9, window_bounds = array<i64: 1, 32>}, {pipeline_mode = #tpu.pipeline_mode<synchronous>, transform_indices = @transform_10, window_bounds = array<i64: 3, 32, 128>}, {pipeline_mode = #tpu.pipeline_mode<synchronous>, transform_indices = @transform_11, window_bounds = array<i64: 1, 128>}, {pipeline_mode = #tpu.pipeline_mode<synchronous>, transform_indices = @transform_12, window_bounds = array<i64: 128, 32>}, {pipeline_mode = #tpu.pipeline_mode<synchronous>, transform_indices = @transform_13, window_bounds = array<i64: 1, 32>}, {pipeline_mode = #tpu.pipeline_mode<synchronous>, transform_indices = @transform_14, window_bounds = array<i64: 32, 128>}, {pipeline_mode = #tpu.pipeline_mode<synchronous>, transform_indices = @transform_15, window_bounds = array<i64: 1, 128>}, {pipeline_mode = #tpu.pipeline_mode<synchronous>, transform_indices = @transform_16, window_bounds = array<i64: 9, 128>}, {pipeline_mode = #tpu.pipeline_mode<synchronous>, transform_indices = @transform_17, window_bounds = array<i64: 1, 128>}, {pipeline_mode = #tpu.pipeline_mode<synchronous>, transform_indices = @transform_18, window_bounds = array<i64: 128, 32>}, {pipeline_mode = #tpu.pipeline_mode<synchronous>, transform_indices = @transform_19, window_bounds = array<i64: 1, 32>}, {pipeline_mode = #tpu.pipeline_mode<synchronous>, transform_indices = @transform_20, window_bounds = array<i64: 32, 32>}, {pipeline_mode = #tpu.pipeline_mode<synchronous>, transform_indices = @transform_21, window_bounds = array<i64: 32, 32>}, {pipeline_mode = #tpu.pipeline_mode<synchronous>, transform_indices = @transform_22, window_bounds = array<i64: 32, 32>}, {pipeline_mode = #tpu.pipeline_mode<synchronous>, transform_indices = @transform_23, window_bounds = array<i64: 1, 32>}, {pipeline_mode = #tpu.pipeline_mode<synchronous>, transform_indices = @transform_24, window_bounds = array<i64: 1, 32>}, {pipeline_mode = #tpu.pipeline_mode<synchronous>, transform_indices = @transform_25, window_bounds = array<i64: 1, 32>}, {pipeline_mode = #tpu.pipeline_mode<synchronous>, transform_indices = @transform_26, window_bounds = array<i64: 32, 32>}, {pipeline_mode = #tpu.pipeline_mode<synchronous>, transform_indices = @transform_27, window_bounds = array<i64: 1, 32>}, {pipeline_mode = #tpu.pipeline_mode<synchronous>, transform_indices = @transform_28, window_bounds = array<i64: 32, 128>}, {pipeline_mode = #tpu.pipeline_mode<synchronous>, transform_indices = @transform_29, window_bounds = array<i64: 1, 128>}, {pipeline_mode = #tpu.pipeline_mode<synchronous>, transform_indices = @transform_30, window_bounds = array<i64: 128, 32>}, {pipeline_mode = #tpu.pipeline_mode<synchronous>, transform_indices = @transform_31, window_bounds = array<i64: 1, 32>}, {transform_indices = @transform_32, window_bounds = array<i64: 1, 8, 32>}]} {
    %0 = tpu.iota {dimensions = array<i32: 0>} : vector<8x1xi32>
    %c0 = arith.constant 0 : index
    %c0_0 = arith.constant 0 : index
    %c0_1 = arith.constant 0 : index
    %1 = vector.load %arg1[%c0, %c0_0, %c0_1] : memref<1x8x32xf32, #tpu.memory_space<vmem>>, vector<1x8x32xf32>
    %2 = vector.shape_cast %1 : vector<1x8x32xf32> to vector<8x32xf32>
    %c0_2 = arith.constant 0 : index
    %c0_3 = arith.constant 0 : index
    %c0_4 = arith.constant 0 : index
    %3 = vector.load %arg2[%c0_2, %c0_3, %c0_4] : memref<1x8x32xbf16, #tpu.memory_space<vmem>>, vector<1x8x32xbf16>
    %4 = vector.shape_cast %3 : vector<1x8x32xbf16> to vector<8x32xbf16>
    %c0_5 = arith.constant 0 : index
    %c0_6 = arith.constant 0 : index
    %c0_7 = arith.constant 0 : index
    %5 = vector.load %arg3[%c0_5, %c0_6, %c0_7] : memref<1x8x32xbf16, #tpu.memory_space<vmem>>, vector<1x8x32xbf16>
    %6 = vector.shape_cast %5 : vector<1x8x32xbf16> to vector<8x32xbf16>
    %c0_8 = arith.constant 0 : index
    %c0_9 = arith.constant 0 : index
    %7 = vector.load %arg4[%c0_8, %c0_9] : memref<5x32xf32, #tpu.memory_space<vmem>>, vector<1x32xf32>
    %8 = arith.mulf %2, %2 : vector<8x32xf32>
    %cst = arith.constant dense<0.000000e+00> : vector<8xf32>
    %9 = vector.multi_reduction <add>, %8, %cst [1] : vector<8x32xf32> to vector<8xf32>
    %10 = vector.shape_cast %9 : vector<8xf32> to vector<8x1xf32>
    %cst_10 = arith.constant 3.200000e-15 : f32
    %11 = vector.broadcast %cst_10 : f32 to vector<8x1xf32>
    %12 = arith.maximumf %10, %11 : vector<8x1xf32>
    %13 = math.rsqrt %12 : vector<8x1xf32>
    %cst_11 = arith.constant 5.65685415 : f32
    %14 = vector.broadcast %cst_11 : f32 to vector<8x1xf32>
    %15 = arith.mulf %13, %14 : vector<8x1xf32>
    %16 = vector.broadcast %15 : vector<8x1xf32> to vector<8x32xf32>
    %17 = arith.mulf %2, %16 : vector<8x32xf32>
    %18 = vector.broadcast %7 : vector<1x32xf32> to vector<8x32xf32>
    %19 = arith.mulf %17, %18 : vector<8x32xf32>
    %20 = arith.truncf %19 : vector<8x32xf32> to vector<8x32xbf16>
    %c2_i32 = arith.constant 2 : i32
    %21 = tpu.dynamic_rotate %19 by %c2_i32 dim 0 : vector<8x32xf32>, i32 -> vector<8x32xf32>
    %c2_i32_12 = arith.constant 2 : i32
    %22 = vector.broadcast %c2_i32_12 : i32 to vector<8x1xi32>
    %23 = arith.cmpi sge, %0, %22 : vector<8x1xi32>
    %cst_13 = arith.constant 0.000000e+00 : f32
    %24 = vector.shape_cast %23 : vector<8x1xi1> to vector<8x1xi1>
    %25 = vector.broadcast %24 : vector<8x1xi1> to vector<8x32xi1>
    %26 = vector.broadcast %cst_13 : f32 to vector<8x32xf32>
    %27 = arith.select %25, %21, %26 : vector<8x32xi1>, vector<8x32xf32>
    %28 = arith.truncf %27 : vector<8x32xf32> to vector<8x32xbf16>
    %c0_14 = arith.constant 0 : index
    %c0_15 = arith.constant 0 : index
    %c0_16 = arith.constant 0 : index
    %29 = vector.load %arg5[%c0_14, %c0_15, %c0_16] : memref<3x32x64xbf16, #tpu.memory_space<vmem>>, vector<1x32x64xbf16>
    %30 = vector.shape_cast %29 : vector<1x32x64xbf16> to vector<32x64xbf16>
    %cst_17 = arith.constant dense<0.000000e+00> : vector<8x64xf32>
    %31 = tpu.matmul %28, %30, %cst_17 {dimension_numbers = #tpu.dot_dimension_numbers<[1], [0], [0], [1], [0, 0, 1, 1], [], []>} : vector<8x32xbf16>, vector<32x64xbf16>, vector<8x64xf32> -> vector<8x64xf32>
    %c1_i32 = arith.constant 1 : i32
    %32 = tpu.dynamic_rotate %19 by %c1_i32 dim 0 : vector<8x32xf32>, i32 -> vector<8x32xf32>
    %c1_i32_18 = arith.constant 1 : i32
    %33 = vector.broadcast %c1_i32_18 : i32 to vector<8x1xi32>
    %34 = arith.cmpi sge, %0, %33 : vector<8x1xi32>
    %cst_19 = arith.constant 0.000000e+00 : f32
    %35 = vector.shape_cast %34 : vector<8x1xi1> to vector<8x1xi1>
    %36 = vector.broadcast %35 : vector<8x1xi1> to vector<8x32xi1>
    %37 = vector.broadcast %cst_19 : f32 to vector<8x32xf32>
    %38 = arith.select %36, %32, %37 : vector<8x32xi1>, vector<8x32xf32>
    %39 = arith.truncf %38 : vector<8x32xf32> to vector<8x32xbf16>
    %c1 = arith.constant 1 : index
    %c0_20 = arith.constant 0 : index
    %c0_21 = arith.constant 0 : index
    %40 = vector.load %arg5[%c1, %c0_20, %c0_21] : memref<3x32x64xbf16, #tpu.memory_space<vmem>>, vector<1x32x64xbf16>
    %41 = vector.shape_cast %40 : vector<1x32x64xbf16> to vector<32x64xbf16>
    %cst_22 = arith.constant dense<0.000000e+00> : vector<8x64xf32>
    %42 = tpu.matmul %39, %41, %cst_22 {dimension_numbers = #tpu.dot_dimension_numbers<[1], [0], [0], [1], [0, 0, 1, 1], [], []>} : vector<8x32xbf16>, vector<32x64xbf16>, vector<8x64xf32> -> vector<8x64xf32>
    %43 = arith.addf %31, %42 : vector<8x64xf32>
    %c2 = arith.constant 2 : index
    %c0_23 = arith.constant 0 : index
    %c0_24 = arith.constant 0 : index
    %44 = vector.load %arg5[%c2, %c0_23, %c0_24] : memref<3x32x64xbf16, #tpu.memory_space<vmem>>, vector<1x32x64xbf16>
    %45 = vector.shape_cast %44 : vector<1x32x64xbf16> to vector<32x64xbf16>
    %cst_25 = arith.constant dense<0.000000e+00> : vector<8x64xf32>
    %46 = tpu.matmul %20, %45, %cst_25 {dimension_numbers = #tpu.dot_dimension_numbers<[1], [0], [0], [1], [0, 0, 1, 1], [], []>} : vector<8x32xbf16>, vector<32x64xbf16>, vector<8x64xf32> -> vector<8x64xf32>
    %47 = arith.addf %43, %46 : vector<8x64xf32>
    %c0_26 = arith.constant 0 : index
    %c0_27 = arith.constant 0 : index
    %48 = vector.load %arg6[%c0_26, %c0_27] : memref<1x64xf32, #tpu.memory_space<vmem>>, vector<1x64xf32>
    %49 = vector.broadcast %48 : vector<1x64xf32> to vector<8x64xf32>
    %50 = arith.addf %47, %49 : vector<8x64xf32>
    %51 = vector.extract_strided_slice %50 {offsets = [0, 0], sizes = [8, 32], strides = [1, 1]} : vector<8x64xf32> to vector<8x32xf32>
    %52 = vector.extract_strided_slice %50 {offsets = [0, 32], sizes = [8, 32], strides = [1, 1]} : vector<8x64xf32> to vector<8x32xf32>
    %53 = arith.negf %52 : vector<8x32xf32>
    %54 = math.exp %53 : vector<8x32xf32>
    %cst_28 = arith.constant 1.000000e+00 : f32
    %55 = vector.broadcast %cst_28 : f32 to vector<8x32xf32>
    %56 = arith.addf %55, %54 : vector<8x32xf32>
    %57 = arith.divf %55, %56 : vector<8x32xf32>
    %58 = arith.mulf %51, %57 : vector<8x32xf32>
    %59 = arith.addf %58, %2 : vector<8x32xf32>
    %c1_29 = arith.constant 1 : index
    %c0_30 = arith.constant 0 : index
    %60 = vector.load %arg4[%c1_29, %c0_30] : memref<5x32xf32, #tpu.memory_space<vmem>>, vector<1x32xf32>
    %61 = arith.mulf %59, %59 : vector<8x32xf32>
    %cst_31 = arith.constant dense<0.000000e+00> : vector<8xf32>
    %62 = vector.multi_reduction <add>, %61, %cst_31 [1] : vector<8x32xf32> to vector<8xf32>
    %63 = vector.shape_cast %62 : vector<8xf32> to vector<8x1xf32>
    %cst_32 = arith.constant 3.200000e-15 : f32
    %64 = vector.broadcast %cst_32 : f32 to vector<8x1xf32>
    %65 = arith.maximumf %63, %64 : vector<8x1xf32>
    %66 = math.rsqrt %65 : vector<8x1xf32>
    %cst_33 = arith.constant 5.65685415 : f32
    %67 = vector.broadcast %cst_33 : f32 to vector<8x1xf32>
    %68 = arith.mulf %66, %67 : vector<8x1xf32>
    %69 = vector.broadcast %68 : vector<8x1xf32> to vector<8x32xf32>
    %70 = arith.mulf %59, %69 : vector<8x32xf32>
    %71 = vector.broadcast %60 : vector<1x32xf32> to vector<8x32xf32>
    %72 = arith.mulf %70, %71 : vector<8x32xf32>
    %73 = arith.truncf %72 : vector<8x32xf32> to vector<8x32xbf16>
    %c0_34 = arith.constant 0 : index
    %c0_35 = arith.constant 0 : index
    %74 = vector.load %arg7[%c0_34, %c0_35] : memref<32x128xbf16, #tpu.memory_space<vmem>>, vector<32x128xbf16>
    %cst_36 = arith.constant dense<0.000000e+00> : vector<8x128xf32>
    %75 = tpu.matmul %73, %74, %cst_36 {dimension_numbers = #tpu.dot_dimension_numbers<[1], [0], [0], [1], [0, 0, 1, 1], [], []>} : vector<8x32xbf16>, vector<32x128xbf16>, vector<8x128xf32> -> vector<8x128xf32>
    %c0_37 = arith.constant 0 : index
    %c0_38 = arith.constant 0 : index
    %76 = vector.load %arg8[%c0_37, %c0_38] : memref<1x128xf32, #tpu.memory_space<vmem>>, vector<1x128xf32>
    %77 = vector.broadcast %76 : vector<1x128xf32> to vector<8x128xf32>
    %78 = arith.addf %75, %77 : vector<8x128xf32>
    %cst_39 = arith.constant 0.000000e+00 : f32
    %79 = vector.broadcast %cst_39 : f32 to vector<8x128xf32>
    %80 = arith.maximumf %78, %79 : vector<8x128xf32>
    %81 = arith.truncf %80 : vector<8x128xf32> to vector<8x128xbf16>
    %c0_40 = arith.constant 0 : index
    %c0_41 = arith.constant 0 : index
    %82 = vector.load %arg9[%c0_40, %c0_41] : memref<128x32xbf16, #tpu.memory_space<vmem>>, vector<128x32xbf16>
    %cst_42 = arith.constant dense<0.000000e+00> : vector<8x32xf32>
    %83 = tpu.matmul %81, %82, %cst_42 {dimension_numbers = #tpu.dot_dimension_numbers<[1], [0], [0], [1], [0, 0, 1, 1], [], []>} : vector<8x128xbf16>, vector<128x32xbf16>, vector<8x32xf32> -> vector<8x32xf32>
    %c0_43 = arith.constant 0 : index
    %c0_44 = arith.constant 0 : index
    %84 = vector.load %arg10[%c0_43, %c0_44] : memref<1x32xf32, #tpu.memory_space<vmem>>, vector<1x32xf32>
    %85 = vector.broadcast %84 : vector<1x32xf32> to vector<8x32xf32>
    %86 = arith.addf %83, %85 : vector<8x32xf32>
    %c1_i32_45 = arith.constant 1 : i32
    %87 = tpu.dynamic_rotate %72 by %c1_i32_45 dim 0 : vector<8x32xf32>, i32 -> vector<8x32xf32>
    %c1_i32_46 = arith.constant 1 : i32
    %88 = vector.broadcast %c1_i32_46 : i32 to vector<8x1xi32>
    %89 = arith.cmpi sge, %0, %88 : vector<8x1xi32>
    %cst_47 = arith.constant 0.000000e+00 : f32
    %90 = vector.shape_cast %89 : vector<8x1xi1> to vector<8x1xi1>
    %91 = vector.broadcast %90 : vector<8x1xi1> to vector<8x32xi1>
    %92 = vector.broadcast %cst_47 : f32 to vector<8x32xf32>
    %93 = arith.select %91, %87, %92 : vector<8x32xi1>, vector<8x32xf32>
    %94 = arith.truncf %93 : vector<8x32xf32> to vector<8x32xbf16>
    %c0_48 = arith.constant 0 : index
    %c0_49 = arith.constant 0 : index
    %c0_50 = arith.constant 0 : index
    %95 = vector.load %arg11[%c0_48, %c0_49, %c0_50] : memref<3x32x128xbf16, #tpu.memory_space<vmem>>, vector<1x32x128xbf16>
    %96 = vector.shape_cast %95 : vector<1x32x128xbf16> to vector<32x128xbf16>
    %cst_51 = arith.constant dense<0.000000e+00> : vector<8x128xf32>
    %97 = tpu.matmul %94, %96, %cst_51 {dimension_numbers = #tpu.dot_dimension_numbers<[1], [0], [0], [1], [0, 0, 1, 1], [], []>} : vector<8x32xbf16>, vector<32x128xbf16>, vector<8x128xf32> -> vector<8x128xf32>
    %c1_52 = arith.constant 1 : index
    %c0_53 = arith.constant 0 : index
    %c0_54 = arith.constant 0 : index
    %98 = vector.load %arg11[%c1_52, %c0_53, %c0_54] : memref<3x32x128xbf16, #tpu.memory_space<vmem>>, vector<1x32x128xbf16>
    %99 = vector.shape_cast %98 : vector<1x32x128xbf16> to vector<32x128xbf16>
    %cst_55 = arith.constant dense<0.000000e+00> : vector<8x128xf32>
    %100 = tpu.matmul %73, %99, %cst_55 {dimension_numbers = #tpu.dot_dimension_numbers<[1], [0], [0], [1], [0, 0, 1, 1], [], []>} : vector<8x32xbf16>, vector<32x128xbf16>, vector<8x128xf32> -> vector<8x128xf32>
    %101 = arith.addf %97, %100 : vector<8x128xf32>
    %c7_i32 = arith.constant 7 : i32
    %102 = tpu.dynamic_rotate %72 by %c7_i32 dim 0 : vector<8x32xf32>, i32 -> vector<8x32xf32>
    %c7_i32_56 = arith.constant 7 : i32
    %103 = vector.broadcast %c7_i32_56 : i32 to vector<8x1xi32>
    %104 = arith.cmpi slt, %0, %103 : vector<8x1xi32>
    %cst_57 = arith.constant 0.000000e+00 : f32
    %105 = vector.shape_cast %104 : vector<8x1xi1> to vector<8x1xi1>
    %106 = vector.broadcast %105 : vector<8x1xi1> to vector<8x32xi1>
    %107 = vector.broadcast %cst_57 : f32 to vector<8x32xf32>
    %108 = arith.select %106, %102, %107 : vector<8x32xi1>, vector<8x32xf32>
    %109 = arith.truncf %108 : vector<8x32xf32> to vector<8x32xbf16>
    %c2_58 = arith.constant 2 : index
    %c0_59 = arith.constant 0 : index
    %c0_60 = arith.constant 0 : index
    %110 = vector.load %arg11[%c2_58, %c0_59, %c0_60] : memref<3x32x128xbf16, #tpu.memory_space<vmem>>, vector<1x32x128xbf16>
    %111 = vector.shape_cast %110 : vector<1x32x128xbf16> to vector<32x128xbf16>
    %cst_61 = arith.constant dense<0.000000e+00> : vector<8x128xf32>
    %112 = tpu.matmul %109, %111, %cst_61 {dimension_numbers = #tpu.dot_dimension_numbers<[1], [0], [0], [1], [0, 0, 1, 1], [], []>} : vector<8x32xbf16>, vector<32x128xbf16>, vector<8x128xf32> -> vector<8x128xf32>
    %113 = arith.addf %101, %112 : vector<8x128xf32>
    %c0_62 = arith.constant 0 : index
    %c0_63 = arith.constant 0 : index
    %114 = vector.load %arg12[%c0_62, %c0_63] : memref<1x128xf32, #tpu.memory_space<vmem>>, vector<1x128xf32>
    %115 = vector.broadcast %114 : vector<1x128xf32> to vector<8x128xf32>
    %116 = arith.addf %113, %115 : vector<8x128xf32>
    %cst_64 = arith.constant 0.000000e+00 : f32
    %117 = vector.broadcast %cst_64 : f32 to vector<8x128xf32>
    %118 = arith.maximumf %116, %117 : vector<8x128xf32>
    %119 = arith.truncf %118 : vector<8x128xf32> to vector<8x128xbf16>
    %c0_65 = arith.constant 0 : index
    %c0_66 = arith.constant 0 : index
    %120 = vector.load %arg13[%c0_65, %c0_66] : memref<128x32xbf16, #tpu.memory_space<vmem>>, vector<128x32xbf16>
    %cst_67 = arith.constant dense<0.000000e+00> : vector<8x32xf32>
    %121 = tpu.matmul %119, %120, %cst_67 {dimension_numbers = #tpu.dot_dimension_numbers<[1], [0], [0], [1], [0, 0, 1, 1], [], []>} : vector<8x128xbf16>, vector<128x32xbf16>, vector<8x32xf32> -> vector<8x32xf32>
    %c0_68 = arith.constant 0 : index
    %c0_69 = arith.constant 0 : index
    %122 = vector.load %arg14[%c0_68, %c0_69] : memref<1x32xf32, #tpu.memory_space<vmem>>, vector<1x32xf32>
    %123 = vector.broadcast %122 : vector<1x32xf32> to vector<8x32xf32>
    %124 = arith.addf %121, %123 : vector<8x32xf32>
    %125 = arith.addf %86, %124 : vector<8x32xf32>
    %c2_70 = arith.constant 2 : index
    %c0_71 = arith.constant 0 : index
    %126 = vector.load %arg4[%c2_70, %c0_71] : memref<5x32xf32, #tpu.memory_space<vmem>>, vector<1x32xf32>
    %127 = arith.mulf %125, %125 : vector<8x32xf32>
    %cst_72 = arith.constant dense<0.000000e+00> : vector<8xf32>
    %128 = vector.multi_reduction <add>, %127, %cst_72 [1] : vector<8x32xf32> to vector<8xf32>
    %129 = vector.shape_cast %128 : vector<8xf32> to vector<8x1xf32>
    %cst_73 = arith.constant 3.200000e-15 : f32
    %130 = vector.broadcast %cst_73 : f32 to vector<8x1xf32>
    %131 = arith.maximumf %129, %130 : vector<8x1xf32>
    %132 = math.rsqrt %131 : vector<8x1xf32>
    %cst_74 = arith.constant 5.65685415 : f32
    %133 = vector.broadcast %cst_74 : f32 to vector<8x1xf32>
    %134 = arith.mulf %132, %133 : vector<8x1xf32>
    %135 = vector.broadcast %134 : vector<8x1xf32> to vector<8x32xf32>
    %136 = arith.mulf %125, %135 : vector<8x32xf32>
    %137 = vector.broadcast %126 : vector<1x32xf32> to vector<8x32xf32>
    %138 = arith.mulf %136, %137 : vector<8x32xf32>
    %139 = arith.truncf %138 : vector<8x32xf32> to vector<8x32xbf16>
    %c0_75 = arith.constant 0 : index
    %c0_76 = arith.constant 0 : index
    %140 = vector.load %arg15[%c0_75, %c0_76] : memref<32x128xbf16, #tpu.memory_space<vmem>>, vector<32x128xbf16>
    %cst_77 = arith.constant dense<0.000000e+00> : vector<8x128xf32>
    %141 = tpu.matmul %139, %140, %cst_77 {dimension_numbers = #tpu.dot_dimension_numbers<[1], [0], [0], [1], [0, 0, 1, 1], [], []>} : vector<8x32xbf16>, vector<32x128xbf16>, vector<8x128xf32> -> vector<8x128xf32>
    %c0_78 = arith.constant 0 : index
    %c0_79 = arith.constant 0 : index
    %142 = vector.load %arg16[%c0_78, %c0_79] : memref<1x128xf32, #tpu.memory_space<vmem>>, vector<1x128xf32>
    %143 = vector.broadcast %142 : vector<1x128xf32> to vector<8x128xf32>
    %144 = arith.addf %141, %143 : vector<8x128xf32>
    %c8_i32 = arith.constant 8 : i32
    %145 = vector.broadcast %c8_i32 : i32 to vector<8x1xi32>
    %146 = arith.cmpi sge, %0, %145 : vector<8x1xi32>
    %cst_80 = arith.constant 0.000000e+00 : f32
    %147 = vector.shape_cast %146 : vector<8x1xi1> to vector<8x1xi1>
    %148 = vector.broadcast %147 : vector<8x1xi1> to vector<8x128xi1>
    %149 = vector.broadcast %cst_80 : f32 to vector<8x128xf32>
    %150 = arith.select %148, %144, %149 : vector<8x128xi1>, vector<8x128xf32>
    %c0_81 = arith.constant 0 : index
    %c0_82 = arith.constant 0 : index
    %151 = vector.load %arg17[%c0_81, %c0_82] : memref<9x128xf32, #tpu.memory_space<vmem>>, vector<1x128xf32>
    %152 = vector.broadcast %151 : vector<1x128xf32> to vector<8x128xf32>
    %153 = arith.mulf %150, %152 : vector<8x128xf32>
    %c7_i32_83 = arith.constant 7 : i32
    %154 = tpu.dynamic_rotate %144 by %c7_i32_83 dim 0 : vector<8x128xf32>, i32 -> vector<8x128xf32>
    %c7_i32_84 = arith.constant 7 : i32
    %155 = vector.broadcast %c7_i32_84 : i32 to vector<8x1xi32>
    %156 = arith.cmpi sge, %0, %155 : vector<8x1xi32>
    %cst_85 = arith.constant 0.000000e+00 : f32
    %157 = vector.shape_cast %156 : vector<8x1xi1> to vector<8x1xi1>
    %158 = vector.broadcast %157 : vector<8x1xi1> to vector<8x128xi1>
    %159 = vector.broadcast %cst_85 : f32 to vector<8x128xf32>
    %160 = arith.select %158, %154, %159 : vector<8x128xi1>, vector<8x128xf32>
    %c1_86 = arith.constant 1 : index
    %c0_87 = arith.constant 0 : index
    %161 = vector.load %arg17[%c1_86, %c0_87] : memref<9x128xf32, #tpu.memory_space<vmem>>, vector<1x128xf32>
    %162 = vector.broadcast %161 : vector<1x128xf32> to vector<8x128xf32>
    %163 = arith.mulf %160, %162 : vector<8x128xf32>
    %164 = arith.addf %153, %163 : vector<8x128xf32>
    %c6_i32 = arith.constant 6 : i32
    %165 = tpu.dynamic_rotate %144 by %c6_i32 dim 0 : vector<8x128xf32>, i32 -> vector<8x128xf32>
    %c6_i32_88 = arith.constant 6 : i32
    %166 = vector.broadcast %c6_i32_88 : i32 to vector<8x1xi32>
    %167 = arith.cmpi sge, %0, %166 : vector<8x1xi32>
    %cst_89 = arith.constant 0.000000e+00 : f32
    %168 = vector.shape_cast %167 : vector<8x1xi1> to vector<8x1xi1>
    %169 = vector.broadcast %168 : vector<8x1xi1> to vector<8x128xi1>
    %170 = vector.broadcast %cst_89 : f32 to vector<8x128xf32>
    %171 = arith.select %169, %165, %170 : vector<8x128xi1>, vector<8x128xf32>
    %c2_90 = arith.constant 2 : index
    %c0_91 = arith.constant 0 : index
    %172 = vector.load %arg17[%c2_90, %c0_91] : memref<9x128xf32, #tpu.memory_space<vmem>>, vector<1x128xf32>
    %173 = vector.broadcast %172 : vector<1x128xf32> to vector<8x128xf32>
    %174 = arith.mulf %171, %173 : vector<8x128xf32>
    %175 = arith.addf %164, %174 : vector<8x128xf32>
    %c5_i32 = arith.constant 5 : i32
    %176 = tpu.dynamic_rotate %144 by %c5_i32 dim 0 : vector<8x128xf32>, i32 -> vector<8x128xf32>
    %c5_i32_92 = arith.constant 5 : i32
    %177 = vector.broadcast %c5_i32_92 : i32 to vector<8x1xi32>
    %178 = arith.cmpi sge, %0, %177 : vector<8x1xi32>
    %cst_93 = arith.constant 0.000000e+00 : f32
    %179 = vector.shape_cast %178 : vector<8x1xi1> to vector<8x1xi1>
    %180 = vector.broadcast %179 : vector<8x1xi1> to vector<8x128xi1>
    %181 = vector.broadcast %cst_93 : f32 to vector<8x128xf32>
    %182 = arith.select %180, %176, %181 : vector<8x128xi1>, vector<8x128xf32>
    %c3 = arith.constant 3 : index
    %c0_94 = arith.constant 0 : index
    %183 = vector.load %arg17[%c3, %c0_94] : memref<9x128xf32, #tpu.memory_space<vmem>>, vector<1x128xf32>
    %184 = vector.broadcast %183 : vector<1x128xf32> to vector<8x128xf32>
    %185 = arith.mulf %182, %184 : vector<8x128xf32>
    %186 = arith.addf %175, %185 : vector<8x128xf32>
    %c4_i32 = arith.constant 4 : i32
    %187 = tpu.dynamic_rotate %144 by %c4_i32 dim 0 : vector<8x128xf32>, i32 -> vector<8x128xf32>
    %c4_i32_95 = arith.constant 4 : i32
    %188 = vector.broadcast %c4_i32_95 : i32 to vector<8x1xi32>
    %189 = arith.cmpi sge, %0, %188 : vector<8x1xi32>
    %cst_96 = arith.constant 0.000000e+00 : f32
    %190 = vector.shape_cast %189 : vector<8x1xi1> to vector<8x1xi1>
    %191 = vector.broadcast %190 : vector<8x1xi1> to vector<8x128xi1>
    %192 = vector.broadcast %cst_96 : f32 to vector<8x128xf32>
    %193 = arith.select %191, %187, %192 : vector<8x128xi1>, vector<8x128xf32>
    %c4 = arith.constant 4 : index
    %c0_97 = arith.constant 0 : index
    %194 = vector.load %arg17[%c4, %c0_97] : memref<9x128xf32, #tpu.memory_space<vmem>>, vector<1x128xf32>
    %195 = vector.broadcast %194 : vector<1x128xf32> to vector<8x128xf32>
    %196 = arith.mulf %193, %195 : vector<8x128xf32>
    %197 = arith.addf %186, %196 : vector<8x128xf32>
    %c3_i32 = arith.constant 3 : i32
    %198 = tpu.dynamic_rotate %144 by %c3_i32 dim 0 : vector<8x128xf32>, i32 -> vector<8x128xf32>
    %c3_i32_98 = arith.constant 3 : i32
    %199 = vector.broadcast %c3_i32_98 : i32 to vector<8x1xi32>
    %200 = arith.cmpi sge, %0, %199 : vector<8x1xi32>
    %cst_99 = arith.constant 0.000000e+00 : f32
    %201 = vector.shape_cast %200 : vector<8x1xi1> to vector<8x1xi1>
    %202 = vector.broadcast %201 : vector<8x1xi1> to vector<8x128xi1>
    %203 = vector.broadcast %cst_99 : f32 to vector<8x128xf32>
    %204 = arith.select %202, %198, %203 : vector<8x128xi1>, vector<8x128xf32>
    %c5 = arith.constant 5 : index
    %c0_100 = arith.constant 0 : index
    %205 = vector.load %arg17[%c5, %c0_100] : memref<9x128xf32, #tpu.memory_space<vmem>>, vector<1x128xf32>
    %206 = vector.broadcast %205 : vector<1x128xf32> to vector<8x128xf32>
    %207 = arith.mulf %204, %206 : vector<8x128xf32>
    %208 = arith.addf %197, %207 : vector<8x128xf32>
    %c2_i32_101 = arith.constant 2 : i32
    %209 = tpu.dynamic_rotate %144 by %c2_i32_101 dim 0 : vector<8x128xf32>, i32 -> vector<8x128xf32>
    %c2_i32_102 = arith.constant 2 : i32
    %210 = vector.broadcast %c2_i32_102 : i32 to vector<8x1xi32>
    %211 = arith.cmpi sge, %0, %210 : vector<8x1xi32>
    %cst_103 = arith.constant 0.000000e+00 : f32
    %212 = vector.shape_cast %211 : vector<8x1xi1> to vector<8x1xi1>
    %213 = vector.broadcast %212 : vector<8x1xi1> to vector<8x128xi1>
    %214 = vector.broadcast %cst_103 : f32 to vector<8x128xf32>
    %215 = arith.select %213, %209, %214 : vector<8x128xi1>, vector<8x128xf32>
    %c6 = arith.constant 6 : index
    %c0_104 = arith.constant 0 : index
    %216 = vector.load %arg17[%c6, %c0_104] : memref<9x128xf32, #tpu.memory_space<vmem>>, vector<1x128xf32>
    %217 = vector.broadcast %216 : vector<1x128xf32> to vector<8x128xf32>
    %218 = arith.mulf %215, %217 : vector<8x128xf32>
    %219 = arith.addf %208, %218 : vector<8x128xf32>
    %c1_i32_105 = arith.constant 1 : i32
    %220 = tpu.dynamic_rotate %144 by %c1_i32_105 dim 0 : vector<8x128xf32>, i32 -> vector<8x128xf32>
    %c1_i32_106 = arith.constant 1 : i32
    %221 = vector.broadcast %c1_i32_106 : i32 to vector<8x1xi32>
    %222 = arith.cmpi sge, %0, %221 : vector<8x1xi32>
    %cst_107 = arith.constant 0.000000e+00 : f32
    %223 = vector.shape_cast %222 : vector<8x1xi1> to vector<8x1xi1>
    %224 = vector.broadcast %223 : vector<8x1xi1> to vector<8x128xi1>
    %225 = vector.broadcast %cst_107 : f32 to vector<8x128xf32>
    %226 = arith.select %224, %220, %225 : vector<8x128xi1>, vector<8x128xf32>
    %c7 = arith.constant 7 : index
    %c0_108 = arith.constant 0 : index
    %227 = vector.load %arg17[%c7, %c0_108] : memref<9x128xf32, #tpu.memory_space<vmem>>, vector<1x128xf32>
    %228 = vector.broadcast %227 : vector<1x128xf32> to vector<8x128xf32>
    %229 = arith.mulf %226, %228 : vector<8x128xf32>
    %230 = arith.addf %219, %229 : vector<8x128xf32>
    %c8 = arith.constant 8 : index
    %c0_109 = arith.constant 0 : index
    %231 = vector.load %arg17[%c8, %c0_109] : memref<9x128xf32, #tpu.memory_space<vmem>>, vector<1x128xf32>
    %232 = vector.broadcast %231 : vector<1x128xf32> to vector<8x128xf32>
    %233 = arith.mulf %144, %232 : vector<8x128xf32>
    %234 = arith.addf %230, %233 : vector<8x128xf32>
    %c0_110 = arith.constant 0 : index
    %c0_111 = arith.constant 0 : index
    %235 = vector.load %arg18[%c0_110, %c0_111] : memref<1x128xf32, #tpu.memory_space<vmem>>, vector<1x128xf32>
    %236 = vector.broadcast %235 : vector<1x128xf32> to vector<8x128xf32>
    %237 = arith.addf %234, %236 : vector<8x128xf32>
    %238 = arith.truncf %237 : vector<8x128xf32> to vector<8x128xbf16>
    %c0_112 = arith.constant 0 : index
    %c0_113 = arith.constant 0 : index
    %239 = vector.load %arg19[%c0_112, %c0_113] : memref<128x32xbf16, #tpu.memory_space<vmem>>, vector<128x32xbf16>
    %cst_114 = arith.constant dense<0.000000e+00> : vector<8x32xf32>
    %240 = tpu.matmul %238, %239, %cst_114 {dimension_numbers = #tpu.dot_dimension_numbers<[1], [0], [0], [1], [0, 0, 1, 1], [], []>} : vector<8x128xbf16>, vector<128x32xbf16>, vector<8x32xf32> -> vector<8x32xf32>
    %c0_115 = arith.constant 0 : index
    %c0_116 = arith.constant 0 : index
    %241 = vector.load %arg20[%c0_115, %c0_116] : memref<1x32xf32, #tpu.memory_space<vmem>>, vector<1x32xf32>
    %242 = vector.broadcast %241 : vector<1x32xf32> to vector<8x32xf32>
    %243 = arith.addf %240, %242 : vector<8x32xf32>
    %244 = arith.addf %243, %59 : vector<8x32xf32>
    %c3_117 = arith.constant 3 : index
    %c0_118 = arith.constant 0 : index
    %245 = vector.load %arg4[%c3_117, %c0_118] : memref<5x32xf32, #tpu.memory_space<vmem>>, vector<1x32xf32>
    %246 = arith.mulf %244, %244 : vector<8x32xf32>
    %cst_119 = arith.constant dense<0.000000e+00> : vector<8xf32>
    %247 = vector.multi_reduction <add>, %246, %cst_119 [1] : vector<8x32xf32> to vector<8xf32>
    %248 = vector.shape_cast %247 : vector<8xf32> to vector<8x1xf32>
    %cst_120 = arith.constant 3.200000e-15 : f32
    %249 = vector.broadcast %cst_120 : f32 to vector<8x1xf32>
    %250 = arith.maximumf %248, %249 : vector<8x1xf32>
    %251 = math.rsqrt %250 : vector<8x1xf32>
    %cst_121 = arith.constant 5.65685415 : f32
    %252 = vector.broadcast %cst_121 : f32 to vector<8x1xf32>
    %253 = arith.mulf %251, %252 : vector<8x1xf32>
    %254 = vector.broadcast %253 : vector<8x1xf32> to vector<8x32xf32>
    %255 = arith.mulf %244, %254 : vector<8x32xf32>
    %256 = vector.broadcast %245 : vector<1x32xf32> to vector<8x32xf32>
    %257 = arith.mulf %255, %256 : vector<8x32xf32>
    %258 = arith.truncf %257 : vector<8x32xf32> to vector<8x32xbf16>
    %c0_122 = arith.constant 0 : index
    %c0_123 = arith.constant 0 : index
    %259 = vector.load %arg21[%c0_122, %c0_123] : memref<32x32xbf16, #tpu.memory_space<vmem>>, vector<32x32xbf16>
    %cst_124 = arith.constant dense<0.000000e+00> : vector<8x32xf32>
    %260 = tpu.matmul %258, %259, %cst_124 {dimension_numbers = #tpu.dot_dimension_numbers<[1], [0], [0], [1], [0, 0, 1, 1], [], []>} : vector<8x32xbf16>, vector<32x32xbf16>, vector<8x32xf32> -> vector<8x32xf32>
    %c0_125 = arith.constant 0 : index
    %c0_126 = arith.constant 0 : index
    %261 = vector.load %arg24[%c0_125, %c0_126] : memref<1x32xf32, #tpu.memory_space<vmem>>, vector<1x32xf32>
    %262 = vector.broadcast %261 : vector<1x32xf32> to vector<8x32xf32>
    %263 = arith.addf %260, %262 : vector<8x32xf32>
    %264 = arith.truncf %263 : vector<8x32xf32> to vector<8x32xbf16>
    %c0_127 = arith.constant 0 : index
    %c0_128 = arith.constant 0 : index
    %265 = vector.load %arg22[%c0_127, %c0_128] : memref<32x32xbf16, #tpu.memory_space<vmem>>, vector<32x32xbf16>
    %cst_129 = arith.constant dense<0.000000e+00> : vector<8x32xf32>
    %266 = tpu.matmul %4, %265, %cst_129 {dimension_numbers = #tpu.dot_dimension_numbers<[1], [0], [0], [1], [0, 0, 1, 1], [], []>} : vector<8x32xbf16>, vector<32x32xbf16>, vector<8x32xf32> -> vector<8x32xf32>
    %c0_130 = arith.constant 0 : index
    %c0_131 = arith.constant 0 : index
    %267 = vector.load %arg25[%c0_130, %c0_131] : memref<1x32xf32, #tpu.memory_space<vmem>>, vector<1x32xf32>
    %268 = vector.broadcast %267 : vector<1x32xf32> to vector<8x32xf32>
    %269 = arith.addf %266, %268 : vector<8x32xf32>
    %270 = arith.truncf %269 : vector<8x32xf32> to vector<8x32xbf16>
    %c0_132 = arith.constant 0 : index
    %c0_133 = arith.constant 0 : index
    %271 = vector.load %arg23[%c0_132, %c0_133] : memref<32x32xbf16, #tpu.memory_space<vmem>>, vector<32x32xbf16>
    %cst_134 = arith.constant dense<0.000000e+00> : vector<8x32xf32>
    %272 = tpu.matmul %6, %271, %cst_134 {dimension_numbers = #tpu.dot_dimension_numbers<[1], [0], [0], [1], [0, 0, 1, 1], [], []>} : vector<8x32xbf16>, vector<32x32xbf16>, vector<8x32xf32> -> vector<8x32xf32>
    %c0_135 = arith.constant 0 : index
    %c0_136 = arith.constant 0 : index
    %273 = vector.load %arg26[%c0_135, %c0_136] : memref<1x32xf32, #tpu.memory_space<vmem>>, vector<1x32xf32>
    %274 = vector.broadcast %273 : vector<1x32xf32> to vector<8x32xf32>
    %275 = arith.addf %272, %274 : vector<8x32xf32>
    %276 = arith.truncf %275 : vector<8x32xf32> to vector<8x32xbf16>
    %c0_137 = arith.constant 0 : index
    %c0_138 = arith.constant 0 : index
    %277 = vector.load %arg28[%c0_137, %c0_138] : memref<1x32xf32, #tpu.memory_space<vmem>>, vector<1x32xf32>
    %278 = vector.broadcast %277 : vector<1x32xf32> to vector<8x32xf32>
    %279 = arith.addf %278, %244 : vector<8x32xf32>
    %280 = vector.extract_strided_slice %264 {offsets = [0, 0], sizes = [8, 4], strides = [1, 1]} : vector<8x32xbf16> to vector<8x4xbf16>
    %281 = vector.extract_strided_slice %270 {offsets = [0, 0], sizes = [8, 4], strides = [1, 1]} : vector<8x32xbf16> to vector<8x4xbf16>
    %cst_139 = arith.constant dense<0.000000e+00> : vector<8x8xf32>
    %282 = tpu.matmul %280, %281, %cst_139 {dimension_numbers = #tpu.dot_dimension_numbers<[1], [1], [0], [0], [0, 0, 1, 0], [], []>} : vector<8x4xbf16>, vector<8x4xbf16>, vector<8x8xf32> -> vector<8x8xf32>
    %cst_140 = arith.constant dense<0xFF800000> : vector<8xf32>
    %283 = vector.multi_reduction <maximumf>, %282, %cst_140 [1] : vector<8x8xf32> to vector<8xf32>
    %284 = vector.shape_cast %283 : vector<8xf32> to vector<8x1xf32>
    %285 = vector.broadcast %284 : vector<8x1xf32> to vector<8x8xf32>
    %286 = arith.subf %282, %285 : vector<8x8xf32>
    %287 = math.exp %286 : vector<8x8xf32>
    %cst_141 = arith.constant dense<0.000000e+00> : vector<8xf32>
    %288 = vector.multi_reduction <add>, %287, %cst_141 [1] : vector<8x8xf32> to vector<8xf32>
    %289 = vector.shape_cast %288 : vector<8xf32> to vector<8x1xf32>
    %290 = tpu.reciprocal %289 {approx = true} : vector<8x1xf32> -> vector<8x1xf32>
    %291 = vector.broadcast %290 : vector<8x1xf32> to vector<8x8xf32>
    %292 = arith.mulf %287, %291 : vector<8x8xf32>
    %293 = arith.truncf %292 : vector<8x8xf32> to vector<8x8xbf16>
    %294 = vector.extract_strided_slice %276 {offsets = [0, 0], sizes = [8, 4], strides = [1, 1]} : vector<8x32xbf16> to vector<8x4xbf16>
    %cst_142 = arith.constant dense<0.000000e+00> : vector<8x4xf32>
    %295 = tpu.matmul %293, %294, %cst_142 {dimension_numbers = #tpu.dot_dimension_numbers<[1], [0], [0], [1], [0, 0, 1, 1], [], []>} : vector<8x8xbf16>, vector<8x4xbf16>, vector<8x4xf32> -> vector<8x4xf32>
    %296 = arith.truncf %295 : vector<8x4xf32> to vector<8x4xbf16>
    %c0_143 = arith.constant 0 : index
    %c0_144 = arith.constant 0 : index
    %297 = vector.load %arg27[%c0_143, %c0_144] : memref<32x32xbf16, #tpu.memory_space<vmem>>, vector<4x32xbf16>
    %cst_145 = arith.constant dense<0.000000e+00> : vector<8x32xf32>
    %298 = tpu.matmul %296, %297, %cst_145 {dimension_numbers = #tpu.dot_dimension_numbers<[1], [0], [0], [1], [0, 0, 1, 1], [], []>} : vector<8x4xbf16>, vector<4x32xbf16>, vector<8x32xf32> -> vector<8x32xf32>
    %299 = arith.addf %279, %298 : vector<8x32xf32>
    %300 = vector.extract_strided_slice %264 {offsets = [0, 4], sizes = [8, 4], strides = [1, 1]} : vector<8x32xbf16> to vector<8x4xbf16>
    %301 = vector.extract_strided_slice %270 {offsets = [0, 4], sizes = [8, 4], strides = [1, 1]} : vector<8x32xbf16> to vector<8x4xbf16>
    %cst_146 = arith.constant dense<0.000000e+00> : vector<8x8xf32>
    %302 = tpu.matmul %300, %301, %cst_146 {dimension_numbers = #tpu.dot_dimension_numbers<[1], [1], [0], [0], [0, 0, 1, 0], [], []>} : vector<8x4xbf16>, vector<8x4xbf16>, vector<8x8xf32> -> vector<8x8xf32>
    %cst_147 = arith.constant dense<0xFF800000> : vector<8xf32>
    %303 = vector.multi_reduction <maximumf>, %302, %cst_147 [1] : vector<8x8xf32> to vector<8xf32>
    %304 = vector.shape_cast %303 : vector<8xf32> to vector<8x1xf32>
    %305 = vector.broadcast %304 : vector<8x1xf32> to vector<8x8xf32>
    %306 = arith.subf %302, %305 : vector<8x8xf32>
    %307 = math.exp %306 : vector<8x8xf32>
    %cst_148 = arith.constant dense<0.000000e+00> : vector<8xf32>
    %308 = vector.multi_reduction <add>, %307, %cst_148 [1] : vector<8x8xf32> to vector<8xf32>
    %309 = vector.shape_cast %308 : vector<8xf32> to vector<8x1xf32>
    %310 = tpu.reciprocal %309 {approx = true} : vector<8x1xf32> -> vector<8x1xf32>
    %311 = vector.broadcast %310 : vector<8x1xf32> to vector<8x8xf32>
    %312 = arith.mulf %307, %311 : vector<8x8xf32>
    %313 = arith.truncf %312 : vector<8x8xf32> to vector<8x8xbf16>
    %314 = vector.extract_strided_slice %276 {offsets = [0, 4], sizes = [8, 4], strides = [1, 1]} : vector<8x32xbf16> to vector<8x4xbf16>
    %cst_149 = arith.constant dense<0.000000e+00> : vector<8x4xf32>
    %315 = tpu.matmul %313, %314, %cst_149 {dimension_numbers = #tpu.dot_dimension_numbers<[1], [0], [0], [1], [0, 0, 1, 1], [], []>} : vector<8x8xbf16>, vector<8x4xbf16>, vector<8x4xf32> -> vector<8x4xf32>
    %316 = arith.truncf %315 : vector<8x4xf32> to vector<8x4xbf16>
    %c4_150 = arith.constant 4 : index
    %c0_151 = arith.constant 0 : index
    %317 = vector.load %arg27[%c4_150, %c0_151] : memref<32x32xbf16, #tpu.memory_space<vmem>>, vector<4x32xbf16>
    %cst_152 = arith.constant dense<0.000000e+00> : vector<8x32xf32>
    %318 = tpu.matmul %316, %317, %cst_152 {dimension_numbers = #tpu.dot_dimension_numbers<[1], [0], [0], [1], [0, 0, 1, 1], [], []>} : vector<8x4xbf16>, vector<4x32xbf16>, vector<8x32xf32> -> vector<8x32xf32>
    %319 = arith.addf %299, %318 : vector<8x32xf32>
    %320 = vector.extract_strided_slice %264 {offsets = [0, 8], sizes = [8, 4], strides = [1, 1]} : vector<8x32xbf16> to vector<8x4xbf16>
    %321 = vector.extract_strided_slice %270 {offsets = [0, 8], sizes = [8, 4], strides = [1, 1]} : vector<8x32xbf16> to vector<8x4xbf16>
    %cst_153 = arith.constant dense<0.000000e+00> : vector<8x8xf32>
    %322 = tpu.matmul %320, %321, %cst_153 {dimension_numbers = #tpu.dot_dimension_numbers<[1], [1], [0], [0], [0, 0, 1, 0], [], []>} : vector<8x4xbf16>, vector<8x4xbf16>, vector<8x8xf32> -> vector<8x8xf32>
    %cst_154 = arith.constant dense<0xFF800000> : vector<8xf32>
    %323 = vector.multi_reduction <maximumf>, %322, %cst_154 [1] : vector<8x8xf32> to vector<8xf32>
    %324 = vector.shape_cast %323 : vector<8xf32> to vector<8x1xf32>
    %325 = vector.broadcast %324 : vector<8x1xf32> to vector<8x8xf32>
    %326 = arith.subf %322, %325 : vector<8x8xf32>
    %327 = math.exp %326 : vector<8x8xf32>
    %cst_155 = arith.constant dense<0.000000e+00> : vector<8xf32>
    %328 = vector.multi_reduction <add>, %327, %cst_155 [1] : vector<8x8xf32> to vector<8xf32>
    %329 = vector.shape_cast %328 : vector<8xf32> to vector<8x1xf32>
    %330 = tpu.reciprocal %329 {approx = true} : vector<8x1xf32> -> vector<8x1xf32>
    %331 = vector.broadcast %330 : vector<8x1xf32> to vector<8x8xf32>
    %332 = arith.mulf %327, %331 : vector<8x8xf32>
    %333 = arith.truncf %332 : vector<8x8xf32> to vector<8x8xbf16>
    %334 = vector.extract_strided_slice %276 {offsets = [0, 8], sizes = [8, 4], strides = [1, 1]} : vector<8x32xbf16> to vector<8x4xbf16>
    %cst_156 = arith.constant dense<0.000000e+00> : vector<8x4xf32>
    %335 = tpu.matmul %333, %334, %cst_156 {dimension_numbers = #tpu.dot_dimension_numbers<[1], [0], [0], [1], [0, 0, 1, 1], [], []>} : vector<8x8xbf16>, vector<8x4xbf16>, vector<8x4xf32> -> vector<8x4xf32>
    %336 = arith.truncf %335 : vector<8x4xf32> to vector<8x4xbf16>
    %c8_157 = arith.constant 8 : index
    %c0_158 = arith.constant 0 : index
    %337 = vector.load %arg27[%c8_157, %c0_158] : memref<32x32xbf16, #tpu.memory_space<vmem>>, vector<4x32xbf16>
    %cst_159 = arith.constant dense<0.000000e+00> : vector<8x32xf32>
    %338 = tpu.matmul %336, %337, %cst_159 {dimension_numbers = #tpu.dot_dimension_numbers<[1], [0], [0], [1], [0, 0, 1, 1], [], []>} : vector<8x4xbf16>, vector<4x32xbf16>, vector<8x32xf32> -> vector<8x32xf32>
    %339 = arith.addf %319, %338 : vector<8x32xf32>
    %340 = vector.extract_strided_slice %264 {offsets = [0, 12], sizes = [8, 4], strides = [1, 1]} : vector<8x32xbf16> to vector<8x4xbf16>
    %341 = vector.extract_strided_slice %270 {offsets = [0, 12], sizes = [8, 4], strides = [1, 1]} : vector<8x32xbf16> to vector<8x4xbf16>
    %cst_160 = arith.constant dense<0.000000e+00> : vector<8x8xf32>
    %342 = tpu.matmul %340, %341, %cst_160 {dimension_numbers = #tpu.dot_dimension_numbers<[1], [1], [0], [0], [0, 0, 1, 0], [], []>} : vector<8x4xbf16>, vector<8x4xbf16>, vector<8x8xf32> -> vector<8x8xf32>
    %cst_161 = arith.constant dense<0xFF800000> : vector<8xf32>
    %343 = vector.multi_reduction <maximumf>, %342, %cst_161 [1] : vector<8x8xf32> to vector<8xf32>
    %344 = vector.shape_cast %343 : vector<8xf32> to vector<8x1xf32>
    %345 = vector.broadcast %344 : vector<8x1xf32> to vector<8x8xf32>
    %346 = arith.subf %342, %345 : vector<8x8xf32>
    %347 = math.exp %346 : vector<8x8xf32>
    %cst_162 = arith.constant dense<0.000000e+00> : vector<8xf32>
    %348 = vector.multi_reduction <add>, %347, %cst_162 [1] : vector<8x8xf32> to vector<8xf32>
    %349 = vector.shape_cast %348 : vector<8xf32> to vector<8x1xf32>
    %350 = tpu.reciprocal %349 {approx = true} : vector<8x1xf32> -> vector<8x1xf32>
    %351 = vector.broadcast %350 : vector<8x1xf32> to vector<8x8xf32>
    %352 = arith.mulf %347, %351 : vector<8x8xf32>
    %353 = arith.truncf %352 : vector<8x8xf32> to vector<8x8xbf16>
    %354 = vector.extract_strided_slice %276 {offsets = [0, 12], sizes = [8, 4], strides = [1, 1]} : vector<8x32xbf16> to vector<8x4xbf16>
    %cst_163 = arith.constant dense<0.000000e+00> : vector<8x4xf32>
    %355 = tpu.matmul %353, %354, %cst_163 {dimension_numbers = #tpu.dot_dimension_numbers<[1], [0], [0], [1], [0, 0, 1, 1], [], []>} : vector<8x8xbf16>, vector<8x4xbf16>, vector<8x4xf32> -> vector<8x4xf32>
    %356 = arith.truncf %355 : vector<8x4xf32> to vector<8x4xbf16>
    %c12 = arith.constant 12 : index
    %c0_164 = arith.constant 0 : index
    %357 = vector.load %arg27[%c12, %c0_164] : memref<32x32xbf16, #tpu.memory_space<vmem>>, vector<4x32xbf16>
    %cst_165 = arith.constant dense<0.000000e+00> : vector<8x32xf32>
    %358 = tpu.matmul %356, %357, %cst_165 {dimension_numbers = #tpu.dot_dimension_numbers<[1], [0], [0], [1], [0, 0, 1, 1], [], []>} : vector<8x4xbf16>, vector<4x32xbf16>, vector<8x32xf32> -> vector<8x32xf32>
    %359 = arith.addf %339, %358 : vector<8x32xf32>
    %360 = vector.extract_strided_slice %264 {offsets = [0, 16], sizes = [8, 4], strides = [1, 1]} : vector<8x32xbf16> to vector<8x4xbf16>
    %361 = vector.extract_strided_slice %270 {offsets = [0, 16], sizes = [8, 4], strides = [1, 1]} : vector<8x32xbf16> to vector<8x4xbf16>
    %cst_166 = arith.constant dense<0.000000e+00> : vector<8x8xf32>
    %362 = tpu.matmul %360, %361, %cst_166 {dimension_numbers = #tpu.dot_dimension_numbers<[1], [1], [0], [0], [0, 0, 1, 0], [], []>} : vector<8x4xbf16>, vector<8x4xbf16>, vector<8x8xf32> -> vector<8x8xf32>
    %cst_167 = arith.constant dense<0xFF800000> : vector<8xf32>
    %363 = vector.multi_reduction <maximumf>, %362, %cst_167 [1] : vector<8x8xf32> to vector<8xf32>
    %364 = vector.shape_cast %363 : vector<8xf32> to vector<8x1xf32>
    %365 = vector.broadcast %364 : vector<8x1xf32> to vector<8x8xf32>
    %366 = arith.subf %362, %365 : vector<8x8xf32>
    %367 = math.exp %366 : vector<8x8xf32>
    %cst_168 = arith.constant dense<0.000000e+00> : vector<8xf32>
    %368 = vector.multi_reduction <add>, %367, %cst_168 [1] : vector<8x8xf32> to vector<8xf32>
    %369 = vector.shape_cast %368 : vector<8xf32> to vector<8x1xf32>
    %370 = tpu.reciprocal %369 {approx = true} : vector<8x1xf32> -> vector<8x1xf32>
    %371 = vector.broadcast %370 : vector<8x1xf32> to vector<8x8xf32>
    %372 = arith.mulf %367, %371 : vector<8x8xf32>
    %373 = arith.truncf %372 : vector<8x8xf32> to vector<8x8xbf16>
    %374 = vector.extract_strided_slice %276 {offsets = [0, 16], sizes = [8, 4], strides = [1, 1]} : vector<8x32xbf16> to vector<8x4xbf16>
    %cst_169 = arith.constant dense<0.000000e+00> : vector<8x4xf32>
    %375 = tpu.matmul %373, %374, %cst_169 {dimension_numbers = #tpu.dot_dimension_numbers<[1], [0], [0], [1], [0, 0, 1, 1], [], []>} : vector<8x8xbf16>, vector<8x4xbf16>, vector<8x4xf32> -> vector<8x4xf32>
    %376 = arith.truncf %375 : vector<8x4xf32> to vector<8x4xbf16>
    %c16 = arith.constant 16 : index
    %c0_170 = arith.constant 0 : index
    %377 = vector.load %arg27[%c16, %c0_170] : memref<32x32xbf16, #tpu.memory_space<vmem>>, vector<4x32xbf16>
    %cst_171 = arith.constant dense<0.000000e+00> : vector<8x32xf32>
    %378 = tpu.matmul %376, %377, %cst_171 {dimension_numbers = #tpu.dot_dimension_numbers<[1], [0], [0], [1], [0, 0, 1, 1], [], []>} : vector<8x4xbf16>, vector<4x32xbf16>, vector<8x32xf32> -> vector<8x32xf32>
    %379 = arith.addf %359, %378 : vector<8x32xf32>
    %380 = vector.extract_strided_slice %264 {offsets = [0, 20], sizes = [8, 4], strides = [1, 1]} : vector<8x32xbf16> to vector<8x4xbf16>
    %381 = vector.extract_strided_slice %270 {offsets = [0, 20], sizes = [8, 4], strides = [1, 1]} : vector<8x32xbf16> to vector<8x4xbf16>
    %cst_172 = arith.constant dense<0.000000e+00> : vector<8x8xf32>
    %382 = tpu.matmul %380, %381, %cst_172 {dimension_numbers = #tpu.dot_dimension_numbers<[1], [1], [0], [0], [0, 0, 1, 0], [], []>} : vector<8x4xbf16>, vector<8x4xbf16>, vector<8x8xf32> -> vector<8x8xf32>
    %cst_173 = arith.constant dense<0xFF800000> : vector<8xf32>
    %383 = vector.multi_reduction <maximumf>, %382, %cst_173 [1] : vector<8x8xf32> to vector<8xf32>
    %384 = vector.shape_cast %383 : vector<8xf32> to vector<8x1xf32>
    %385 = vector.broadcast %384 : vector<8x1xf32> to vector<8x8xf32>
    %386 = arith.subf %382, %385 : vector<8x8xf32>
    %387 = math.exp %386 : vector<8x8xf32>
    %cst_174 = arith.constant dense<0.000000e+00> : vector<8xf32>
    %388 = vector.multi_reduction <add>, %387, %cst_174 [1] : vector<8x8xf32> to vector<8xf32>
    %389 = vector.shape_cast %388 : vector<8xf32> to vector<8x1xf32>
    %390 = tpu.reciprocal %389 {approx = true} : vector<8x1xf32> -> vector<8x1xf32>
    %391 = vector.broadcast %390 : vector<8x1xf32> to vector<8x8xf32>
    %392 = arith.mulf %387, %391 : vector<8x8xf32>
    %393 = arith.truncf %392 : vector<8x8xf32> to vector<8x8xbf16>
    %394 = vector.extract_strided_slice %276 {offsets = [0, 20], sizes = [8, 4], strides = [1, 1]} : vector<8x32xbf16> to vector<8x4xbf16>
    %cst_175 = arith.constant dense<0.000000e+00> : vector<8x4xf32>
    %395 = tpu.matmul %393, %394, %cst_175 {dimension_numbers = #tpu.dot_dimension_numbers<[1], [0], [0], [1], [0, 0, 1, 1], [], []>} : vector<8x8xbf16>, vector<8x4xbf16>, vector<8x4xf32> -> vector<8x4xf32>
    %396 = arith.truncf %395 : vector<8x4xf32> to vector<8x4xbf16>
    %c20 = arith.constant 20 : index
    %c0_176 = arith.constant 0 : index
    %397 = vector.load %arg27[%c20, %c0_176] : memref<32x32xbf16, #tpu.memory_space<vmem>>, vector<4x32xbf16>
    %cst_177 = arith.constant dense<0.000000e+00> : vector<8x32xf32>
    %398 = tpu.matmul %396, %397, %cst_177 {dimension_numbers = #tpu.dot_dimension_numbers<[1], [0], [0], [1], [0, 0, 1, 1], [], []>} : vector<8x4xbf16>, vector<4x32xbf16>, vector<8x32xf32> -> vector<8x32xf32>
    %399 = arith.addf %379, %398 : vector<8x32xf32>
    %400 = vector.extract_strided_slice %264 {offsets = [0, 24], sizes = [8, 4], strides = [1, 1]} : vector<8x32xbf16> to vector<8x4xbf16>
    %401 = vector.extract_strided_slice %270 {offsets = [0, 24], sizes = [8, 4], strides = [1, 1]} : vector<8x32xbf16> to vector<8x4xbf16>
    %cst_178 = arith.constant dense<0.000000e+00> : vector<8x8xf32>
    %402 = tpu.matmul %400, %401, %cst_178 {dimension_numbers = #tpu.dot_dimension_numbers<[1], [1], [0], [0], [0, 0, 1, 0], [], []>} : vector<8x4xbf16>, vector<8x4xbf16>, vector<8x8xf32> -> vector<8x8xf32>
    %cst_179 = arith.constant dense<0xFF800000> : vector<8xf32>
    %403 = vector.multi_reduction <maximumf>, %402, %cst_179 [1] : vector<8x8xf32> to vector<8xf32>
    %404 = vector.shape_cast %403 : vector<8xf32> to vector<8x1xf32>
    %405 = vector.broadcast %404 : vector<8x1xf32> to vector<8x8xf32>
    %406 = arith.subf %402, %405 : vector<8x8xf32>
    %407 = math.exp %406 : vector<8x8xf32>
    %cst_180 = arith.constant dense<0.000000e+00> : vector<8xf32>
    %408 = vector.multi_reduction <add>, %407, %cst_180 [1] : vector<8x8xf32> to vector<8xf32>
    %409 = vector.shape_cast %408 : vector<8xf32> to vector<8x1xf32>
    %410 = tpu.reciprocal %409 {approx = true} : vector<8x1xf32> -> vector<8x1xf32>
    %411 = vector.broadcast %410 : vector<8x1xf32> to vector<8x8xf32>
    %412 = arith.mulf %407, %411 : vector<8x8xf32>
    %413 = arith.truncf %412 : vector<8x8xf32> to vector<8x8xbf16>
    %414 = vector.extract_strided_slice %276 {offsets = [0, 24], sizes = [8, 4], strides = [1, 1]} : vector<8x32xbf16> to vector<8x4xbf16>
    %cst_181 = arith.constant dense<0.000000e+00> : vector<8x4xf32>
    %415 = tpu.matmul %413, %414, %cst_181 {dimension_numbers = #tpu.dot_dimension_numbers<[1], [0], [0], [1], [0, 0, 1, 1], [], []>} : vector<8x8xbf16>, vector<8x4xbf16>, vector<8x4xf32> -> vector<8x4xf32>
    %416 = arith.truncf %415 : vector<8x4xf32> to vector<8x4xbf16>
    %c24 = arith.constant 24 : index
    %c0_182 = arith.constant 0 : index
    %417 = vector.load %arg27[%c24, %c0_182] : memref<32x32xbf16, #tpu.memory_space<vmem>>, vector<4x32xbf16>
    %cst_183 = arith.constant dense<0.000000e+00> : vector<8x32xf32>
    %418 = tpu.matmul %416, %417, %cst_183 {dimension_numbers = #tpu.dot_dimension_numbers<[1], [0], [0], [1], [0, 0, 1, 1], [], []>} : vector<8x4xbf16>, vector<4x32xbf16>, vector<8x32xf32> -> vector<8x32xf32>
    %419 = arith.addf %399, %418 : vector<8x32xf32>
    %420 = vector.extract_strided_slice %264 {offsets = [0, 28], sizes = [8, 4], strides = [1, 1]} : vector<8x32xbf16> to vector<8x4xbf16>
    %421 = vector.extract_strided_slice %270 {offsets = [0, 28], sizes = [8, 4], strides = [1, 1]} : vector<8x32xbf16> to vector<8x4xbf16>
    %cst_184 = arith.constant dense<0.000000e+00> : vector<8x8xf32>
    %422 = tpu.matmul %420, %421, %cst_184 {dimension_numbers = #tpu.dot_dimension_numbers<[1], [1], [0], [0], [0, 0, 1, 0], [], []>} : vector<8x4xbf16>, vector<8x4xbf16>, vector<8x8xf32> -> vector<8x8xf32>
    %cst_185 = arith.constant dense<0xFF800000> : vector<8xf32>
    %423 = vector.multi_reduction <maximumf>, %422, %cst_185 [1] : vector<8x8xf32> to vector<8xf32>
    %424 = vector.shape_cast %423 : vector<8xf32> to vector<8x1xf32>
    %425 = vector.broadcast %424 : vector<8x1xf32> to vector<8x8xf32>
    %426 = arith.subf %422, %425 : vector<8x8xf32>
    %427 = math.exp %426 : vector<8x8xf32>
    %cst_186 = arith.constant dense<0.000000e+00> : vector<8xf32>
    %428 = vector.multi_reduction <add>, %427, %cst_186 [1] : vector<8x8xf32> to vector<8xf32>
    %429 = vector.shape_cast %428 : vector<8xf32> to vector<8x1xf32>
    %430 = tpu.reciprocal %429 {approx = true} : vector<8x1xf32> -> vector<8x1xf32>
    %431 = vector.broadcast %430 : vector<8x1xf32> to vector<8x8xf32>
    %432 = arith.mulf %427, %431 : vector<8x8xf32>
    %433 = arith.truncf %432 : vector<8x8xf32> to vector<8x8xbf16>
    %434 = vector.extract_strided_slice %276 {offsets = [0, 28], sizes = [8, 4], strides = [1, 1]} : vector<8x32xbf16> to vector<8x4xbf16>
    %cst_187 = arith.constant dense<0.000000e+00> : vector<8x4xf32>
    %435 = tpu.matmul %433, %434, %cst_187 {dimension_numbers = #tpu.dot_dimension_numbers<[1], [0], [0], [1], [0, 0, 1, 1], [], []>} : vector<8x8xbf16>, vector<8x4xbf16>, vector<8x4xf32> -> vector<8x4xf32>
    %436 = arith.truncf %435 : vector<8x4xf32> to vector<8x4xbf16>
    %c28 = arith.constant 28 : index
    %c0_188 = arith.constant 0 : index
    %437 = vector.load %arg27[%c28, %c0_188] : memref<32x32xbf16, #tpu.memory_space<vmem>>, vector<4x32xbf16>
    %cst_189 = arith.constant dense<0.000000e+00> : vector<8x32xf32>
    %438 = tpu.matmul %436, %437, %cst_189 {dimension_numbers = #tpu.dot_dimension_numbers<[1], [0], [0], [1], [0, 0, 1, 1], [], []>} : vector<8x4xbf16>, vector<4x32xbf16>, vector<8x32xf32> -> vector<8x32xf32>
    %439 = arith.addf %419, %438 : vector<8x32xf32>
    %c4_190 = arith.constant 4 : index
    %c0_191 = arith.constant 0 : index
    %440 = vector.load %arg4[%c4_190, %c0_191] : memref<5x32xf32, #tpu.memory_space<vmem>>, vector<1x32xf32>
    %441 = arith.mulf %439, %439 : vector<8x32xf32>
    %cst_192 = arith.constant dense<0.000000e+00> : vector<8xf32>
    %442 = vector.multi_reduction <add>, %441, %cst_192 [1] : vector<8x32xf32> to vector<8xf32>
    %443 = vector.shape_cast %442 : vector<8xf32> to vector<8x1xf32>
    %cst_193 = arith.constant 3.200000e-15 : f32
    %444 = vector.broadcast %cst_193 : f32 to vector<8x1xf32>
    %445 = arith.maximumf %443, %444 : vector<8x1xf32>
    %446 = math.rsqrt %445 : vector<8x1xf32>
    %cst_194 = arith.constant 5.65685415 : f32
    %447 = vector.broadcast %cst_194 : f32 to vector<8x1xf32>
    %448 = arith.mulf %446, %447 : vector<8x1xf32>
    %449 = vector.broadcast %448 : vector<8x1xf32> to vector<8x32xf32>
    %450 = arith.mulf %439, %449 : vector<8x32xf32>
    %451 = vector.broadcast %440 : vector<1x32xf32> to vector<8x32xf32>
    %452 = arith.mulf %450, %451 : vector<8x32xf32>
    %453 = arith.truncf %452 : vector<8x32xf32> to vector<8x32xbf16>
    %c0_195 = arith.constant 0 : index
    %c0_196 = arith.constant 0 : index
    %454 = vector.load %arg29[%c0_195, %c0_196] : memref<32x128xbf16, #tpu.memory_space<vmem>>, vector<32x128xbf16>
    %cst_197 = arith.constant dense<0.000000e+00> : vector<8x128xf32>
    %455 = tpu.matmul %453, %454, %cst_197 {dimension_numbers = #tpu.dot_dimension_numbers<[1], [0], [0], [1], [0, 0, 1, 1], [], []>} : vector<8x32xbf16>, vector<32x128xbf16>, vector<8x128xf32> -> vector<8x128xf32>
    %c0_198 = arith.constant 0 : index
    %c0_199 = arith.constant 0 : index
    %456 = vector.load %arg30[%c0_198, %c0_199] : memref<1x128xf32, #tpu.memory_space<vmem>>, vector<1x128xf32>
    %457 = vector.broadcast %456 : vector<1x128xf32> to vector<8x128xf32>
    %458 = arith.addf %455, %457 : vector<8x128xf32>
    %cst_200 = arith.constant 0.000000e+00 : f32
    %459 = vector.broadcast %cst_200 : f32 to vector<8x128xf32>
    %460 = arith.maximumf %458, %459 : vector<8x128xf32>
    %461 = arith.truncf %460 : vector<8x128xf32> to vector<8x128xbf16>
    %c0_201 = arith.constant 0 : index
    %c0_202 = arith.constant 0 : index
    %462 = vector.load %arg31[%c0_201, %c0_202] : memref<128x32xbf16, #tpu.memory_space<vmem>>, vector<128x32xbf16>
    %cst_203 = arith.constant dense<0.000000e+00> : vector<8x32xf32>
    %463 = tpu.matmul %461, %462, %cst_203 {dimension_numbers = #tpu.dot_dimension_numbers<[1], [0], [0], [1], [0, 0, 1, 1], [], []>} : vector<8x128xbf16>, vector<128x32xbf16>, vector<8x32xf32> -> vector<8x32xf32>
    %c0_204 = arith.constant 0 : index
    %c0_205 = arith.constant 0 : index
    %464 = vector.load %arg32[%c0_204, %c0_205] : memref<1x32xf32, #tpu.memory_space<vmem>>, vector<1x32xf32>
    %465 = vector.broadcast %464 : vector<1x32xf32> to vector<8x32xf32>
    %466 = arith.addf %463, %465 : vector<8x32xf32>
    %467 = arith.addf %466, %439 : vector<8x32xf32>
    %c0_206 = arith.constant 0 : index
    %c0_207 = arith.constant 0 : index
    %c0_208 = arith.constant 0 : index
    %468 = vector.load %arg33[%c0_206, %c0_207, %c0_208] : memref<1x8x32xf32, #tpu.memory_space<vmem>>, vector<1x8x32xf32>
    %469 = vector.shape_cast %468 : vector<1x8x32xf32> to vector<8x32xf32>
    %470 = vector.shape_cast %467 : vector<8x32xf32> to vector<1x8x32xf32>
    tpu.vector_store %arg33[%c0_206, %c0_207, %c0_208], %470 {strides = array<i32>} : memref<1x8x32xf32, #tpu.memory_space<vmem>>, vector<1x8x32xf32>,
    return
  }
  func.func @transform_0(%arg0: i32) -> (i32, i32, i32) {
    %c0_i32 = arith.constant 0 : i32
    %c0_i32_0 = arith.constant 0 : i32
    %c0_i32_1 = arith.constant 0 : i32
    return %arg0, %c0_i32, %c0_i32_0 : i32, i32, i32
  }
  func.func @transform_1(%arg0: i32) -> (i32, i32, i32) {
    %c0_i32 = arith.constant 0 : i32
    %c0_i32_0 = arith.constant 0 : i32
    %c0_i32_1 = arith.constant 0 : i32
    return %arg0, %c0_i32, %c0_i32_0 : i32, i32, i32
  }
  func.func @transform_2(%arg0: i32) -> (i32, i32, i32) {
    %c0_i32 = arith.constant 0 : i32
    %c0_i32_0 = arith.constant 0 : i32
    %c0_i32_1 = arith.constant 0 : i32
    return %arg0, %c0_i32, %c0_i32_0 : i32, i32, i32
  }
  func.func @transform_3(%arg0: i32) -> (i32, i32) {
    %c0_i32 = arith.constant 0 : i32
    %c0_i32_0 = arith.constant 0 : i32
    %c0_i32_1 = arith.constant 0 : i32
    return %c0_i32, %c0_i32_0 : i32, i32
  }
  func.func @transform_4(%arg0: i32) -> (i32, i32, i32) {
    %c0_i32 = arith.constant 0 : i32
    %c0_i32_0 = arith.constant 0 : i32
    %c0_i32_1 = arith.constant 0 : i32
    %c0_i32_2 = arith.constant 0 : i32
    return %c0_i32, %c0_i32_0, %c0_i32_1 : i32, i32, i32
  }
  func.func @transform_5(%arg0: i32) -> (i32, i32) {
    %c0_i32 = arith.constant 0 : i32
    %c0_i32_0 = arith.constant 0 : i32
    %c0_i32_1 = arith.constant 0 : i32
    return %c0_i32, %c0_i32_0 : i32, i32
  }
  func.func @transform_6(%arg0: i32) -> (i32, i32) {
    %c0_i32 = arith.constant 0 : i32
    %c0_i32_0 = arith.constant 0 : i32
    %c0_i32_1 = arith.constant 0 : i32
    return %c0_i32, %c0_i32_0 : i32, i32
  }
  func.func @transform_7(%arg0: i32) -> (i32, i32) {
    %c0_i32 = arith.constant 0 : i32
    %c0_i32_0 = arith.constant 0 : i32
    %c0_i32_1 = arith.constant 0 : i32
    return %c0_i32, %c0_i32_0 : i32, i32
  }
  func.func @transform_8(%arg0: i32) -> (i32, i32) {
    %c0_i32 = arith.constant 0 : i32
    %c0_i32_0 = arith.constant 0 : i32
    %c0_i32_1 = arith.constant 0 : i32
    return %c0_i32, %c0_i32_0 : i32, i32
  }
  func.func @transform_9(%arg0: i32) -> (i32, i32) {
    %c0_i32 = arith.constant 0 : i32
    %c0_i32_0 = arith.constant 0 : i32
    %c0_i32_1 = arith.constant 0 : i32
    return %c0_i32, %c0_i32_0 : i32, i32
  }
  func.func @transform_10(%arg0: i32) -> (i32, i32, i32) {
    %c0_i32 = arith.constant 0 : i32
    %c0_i32_0 = arith.constant 0 : i32
    %c0_i32_1 = arith.constant 0 : i32
    %c0_i32_2 = arith.constant 0 : i32
    return %c0_i32, %c0_i32_0, %c0_i32_1 : i32, i32, i32
  }
  func.func @transform_11(%arg0: i32) -> (i32, i32) {
    %c0_i32 = arith.constant 0 : i32
    %c0_i32_0 = arith.constant 0 : i32
    %c0_i32_1 = arith.constant 0 : i32
    return %c0_i32, %c0_i32_0 : i32, i32
  }
  func.func @transform_12(%arg0: i32) -> (i32, i32) {
    %c0_i32 = arith.constant 0 : i32
    %c0_i32_0 = arith.constant 0 : i32
    %c0_i32_1 = arith.constant 0 : i32
    return %c0_i32, %c0_i32_0 : i32, i32
  }
  func.func @transform_13(%arg0: i32) -> (i32, i32) {
    %c0_i32 = arith.constant 0 : i32
    %c0_i32_0 = arith.constant 0 : i32
    %c0_i32_1 = arith.constant 0 : i32
    return %c0_i32, %c0_i32_0 : i32, i32
  }
  func.func @transform_14(%arg0: i32) -> (i32, i32) {
    %c0_i32 = arith.constant 0 : i32
    %c0_i32_0 = arith.constant 0 : i32
    %c0_i32_1 = arith.constant 0 : i32
    return %c0_i32, %c0_i32_0 : i32, i32
  }
  func.func @transform_15(%arg0: i32) -> (i32, i32) {
    %c0_i32 = arith.constant 0 : i32
    %c0_i32_0 = arith.constant 0 : i32
    %c0_i32_1 = arith.constant 0 : i32
    return %c0_i32, %c0_i32_0 : i32, i32
  }
  func.func @transform_16(%arg0: i32) -> (i32, i32) {
    %c0_i32 = arith.constant 0 : i32
    %c0_i32_0 = arith.constant 0 : i32
    %c0_i32_1 = arith.constant 0 : i32
    return %c0_i32, %c0_i32_0 : i32, i32
  }
  func.func @transform_17(%arg0: i32) -> (i32, i32) {
    %c0_i32 = arith.constant 0 : i32
    %c0_i32_0 = arith.constant 0 : i32
    %c0_i32_1 = arith.constant 0 : i32
    return %c0_i32, %c0_i32_0 : i32, i32
  }
  func.func @transform_18(%arg0: i32) -> (i32, i32) {
    %c0_i32 = arith.constant 0 : i32
    %c0_i32_0 = arith.constant 0 : i32
    %c0_i32_1 = arith.constant 0 : i32
    return %c0_i32, %c0_i32_0 : i32, i32
  }
  func.func @transform_19(%arg0: i32) -> (i32, i32) {
    %c0_i32 = arith.constant 0 : i32
    %c0_i32_0 = arith.constant 0 : i32
    %c0_i32_1 = arith.constant 0 : i32
    return %c0_i32, %c0_i32_0 : i32, i32
  }
  func.func @transform_20(%arg0: i32) -> (i32, i32) {
    %c0_i32 = arith.constant 0 : i32
    %c0_i32_0 = arith.constant 0 : i32
    %c0_i32_1 = arith.constant 0 : i32
    return %c0_i32, %c0_i32_0 : i32, i32
  }
  func.func @transform_21(%arg0: i32) -> (i32, i32) {
    %c0_i32 = arith.constant 0 : i32
    %c0_i32_0 = arith.constant 0 : i32
    %c0_i32_1 = arith.constant 0 : i32
    return %c0_i32, %c0_i32_0 : i32, i32
  }
  func.func @transform_22(%arg0: i32) -> (i32, i32) {
    %c0_i32 = arith.constant 0 : i32
    %c0_i32_0 = arith.constant 0 : i32
    %c0_i32_1 = arith.constant 0 : i32
    return %c0_i32, %c0_i32_0 : i32, i32
  }
  func.func @transform_23(%arg0: i32) -> (i32, i32) {
    %c0_i32 = arith.constant 0 : i32
    %c0_i32_0 = arith.constant 0 : i32
    %c0_i32_1 = arith.constant 0 : i32
    return %c0_i32, %c0_i32_0 : i32, i32
  }
  func.func @transform_24(%arg0: i32) -> (i32, i32) {
    %c0_i32 = arith.constant 0 : i32
    %c0_i32_0 = arith.constant 0 : i32
    %c0_i32_1 = arith.constant 0 : i32
    return %c0_i32, %c0_i32_0 : i32, i32
  }
  func.func @transform_25(%arg0: i32) -> (i32, i32) {
    %c0_i32 = arith.constant 0 : i32
    %c0_i32_0 = arith.constant 0 : i32
    %c0_i32_1 = arith.constant 0 : i32
    return %c0_i32, %c0_i32_0 : i32, i32
  }
  func.func @transform_26(%arg0: i32) -> (i32, i32) {
    %c0_i32 = arith.constant 0 : i32
    %c0_i32_0 = arith.constant 0 : i32
    %c0_i32_1 = arith.constant 0 : i32
    return %c0_i32, %c0_i32_0 : i32, i32
  }
  func.func @transform_27(%arg0: i32) -> (i32, i32) {
    %c0_i32 = arith.constant 0 : i32
    %c0_i32_0 = arith.constant 0 : i32
    %c0_i32_1 = arith.constant 0 : i32
    return %c0_i32, %c0_i32_0 : i32, i32
  }
  func.func @transform_28(%arg0: i32) -> (i32, i32) {
    %c0_i32 = arith.constant 0 : i32
    %c0_i32_0 = arith.constant 0 : i32
    %c0_i32_1 = arith.constant 0 : i32
    return %c0_i32, %c0_i32_0 : i32, i32
  }
  func.func @transform_29(%arg0: i32) -> (i32, i32) {
    %c0_i32 = arith.constant 0 : i32
    %c0_i32_0 = arith.constant 0 : i32
    %c0_i32_1 = arith.constant 0 : i32
    return %c0_i32, %c0_i32_0 : i32, i32
  }
  func.func @transform_30(%arg0: i32) -> (i32, i32) {
    %c0_i32 = arith.constant 0 : i32
    %c0_i32_0 = arith.constant 0 : i32
    %c0_i32_1 = arith.constant 0 : i32
    return %c0_i32, %c0_i32_0 : i32, i32
  }
  func.func @transform_31(%arg0: i32) -> (i32, i32) {
    %c0_i32 = arith.constant 0 : i32
    %c0_i32_0 = arith.constant 0 : i32
    %c0_i32_1 = arith.constant 0 : i32
    return %c0_i32, %c0_i32_0 : i32, i32
  }
  func.func @transform_32(%arg0: i32) -> (i32, i32, i32) {
    %c0_i32 = arith.constant 0 : i32
    %c0_i32_0 = arith.constant 0 : i32
    %c0_i32_1 = arith.constant 0 : i32
    return %arg0, %c0_i32, %c0_i32_0 : i32, i32, i32
  }
}

</mosaic_0001>

<llo_original>
// kernel: tpu_custom_call.1
$region0: #{tpu_custom_call.1}
  #allocation0 [shape = 'u32[]', space=smem, size = 0x4, offset = 0x4, fixed_abs, tag = 'smem constant byte address 0x4 - core index']
  #allocation1 [shape = 'u32[144,128]{1,0:T(1,128)}', space=vmem, size = 0x12000, scoped, tag = 'internal scratch']
  %s0 = inlined_call_operand.smem [shape: u32[33], index: -1, kind: input, shape index: {}]
  %s1 = sld [smem:[%s0]]
  %s2 = scalar_lea.smem %s0, 1
  %s3 = sld [smem:[%s2]]
  %s4 = scalar_lea.smem %s0, 2
  %s5 = sld [smem:[%s4]]
  %s6 = scalar_lea.smem %s0, 3
  %s7 = sld [smem:[%s6]]
  %s8 = scalar_lea.smem %s0, 4
  %s9 = sld [smem:[%s8]]
  %s10 = scalar_lea.smem %s0, 5
  %s11 = sld [smem:[%s10]]
  %s12 = scalar_lea.smem %s0, 6
  %s13 = sld [smem:[%s12]]
  %s14 = scalar_lea.smem %s0, 7
  %s15 = sld [smem:[%s14]]
  %s16 = scalar_lea.smem %s0, 8
  %s17 = sld [smem:[%s16]]
  %s18 = scalar_lea.smem %s0, 9
  %s19 = sld [smem:[%s18]]
  %s20 = scalar_lea.smem %s0, 10
  %s21 = sld [smem:[%s20]]
  %s22 = scalar_lea.smem %s0, 11
  %s23 = sld [smem:[%s22]]
  %s24 = scalar_lea.smem %s0, 12
  %s25 = sld [smem:[%s24]]
  %s26 = scalar_lea.smem %s0, 13
  %s27 = sld [smem:[%s26]]
  %s28 = scalar_lea.smem %s0, 14
  %s29 = sld [smem:[%s28]]
  %s30 = scalar_lea.smem %s0, 15
  %s31 = sld [smem:[%s30]]
  %s32 = scalar_lea.smem %s0, 16
  %s33 = sld [smem:[%s32]]
  %s34 = scalar_lea.smem %s0, 17
  %s35 = sld [smem:[%s34]]
  %s36 = scalar_lea.smem %s0, 18
  %s37 = sld [smem:[%s36]]
  %s38 = scalar_lea.smem %s0, 19
  %s39 = sld [smem:[%s38]]
  %s40 = scalar_lea.smem %s0, 20
  %s41 = sld [smem:[%s40]]
  %s42 = scalar_lea.smem %s0, 21
  %s43 = sld [smem:[%s42]]
  %s44 = scalar_lea.smem %s0, 22
  %s45 = sld [smem:[%s44]]
  %s46 = scalar_lea.smem %s0, 23
  %s47 = sld [smem:[%s46]]
  %s48 = scalar_lea.smem %s0, 24
  %s49 = sld [smem:[%s48]]
  %s50 = scalar_lea.smem %s0, 25
  %s51 = sld [smem:[%s50]]
  %s52 = scalar_lea.smem %s0, 26
  %s53 = sld [smem:[%s52]]
  %s54 = scalar_lea.smem %s0, 27
  %s55 = sld [smem:[%s54]]
  %s56 = scalar_lea.smem %s0, 28
  %s57 = sld [smem:[%s56]]
  %s58 = scalar_lea.smem %s0, 29
  %s59 = sld [smem:[%s58]]
  %s60 = scalar_lea.smem %s0, 30
  %s61 = sld [smem:[%s60]]
  %s62 = scalar_lea.smem %s0, 31
  %s63 = sld [smem:[%s62]]
  %s64 = scalar_lea.smem %s0, 32
  %s65 = sld [smem:[%s64]]
  %s66 = sld [smem:[#allocation0]]
  $region161: #{tpu_custom_call.1} parent=0
    _
  %s68 = ssub.s32 1, %s66
  %s69 = scalar_select 0, %s68, %s66
  $region1: #{tpu_custom_call.1} parent=0
    #allocation2 [shape = 'u8[8192]{0}', space=vmem, size = 0x2000, scoped, tag = 'output window, operand 0']
    #allocation3 [shape = 's32[2]{0}', space=sflag, size = 0x8, scoped, tag = 'scoped memory for tpu_custom_call.1']
    %70 = vsyncpa [#allocation3], 0
    %s71 = scalar_lea.sflag [#allocation3], 1
    %72 = vsyncpa %s71, 0
    loop: start=0, step=1, limit=4
    $region2: #{tpu_custom_call.1} parent=1 // loop_pre_header
      _
    $region3: #{tpu_custom_call.1} parent=1 // loop_header
      %s74 = sphi 0, %s78
      %p75 = scmp.ge.s32.totalorder %s74, 4
      %s84 = sphi 0, %s86
      %s87 = sphi 0, %s84
      %s88 = sphi 0, %s87
      %s104 = sphi 0, %s88
      %s110 = sphi 0, %s112
      %s113 = sphi 0, %s110
      %s114 = sphi 0, %s113
      %s130 = sphi 0, %s114
      %s136 = sphi 0, %s138
      %s139 = sphi 0, %s136
      %s140 = sphi 0, %s139
      %s156 = sphi 0, %s140
      %s160 = sphi 0, %s160
      %s162 = sphi 0, %s160
      %s163 = sphi 0, %s162
      %s177 = sphi 0, %s163
      %s181 = sphi 0, %s181
      %s183 = sphi 0, %s181
      %s184 = sphi 0, %s183
      %s198 = sphi 0, %s184
      %s202 = sphi 0, %s202
      %s204 = sphi 0, %s202
      %s205 = sphi 0, %s204
      %s219 = sphi 0, %s205
      %s223 = sphi 0, %s223
      %s225 = sphi 0, %s223
      %s226 = sphi 0, %s225
      %s240 = sphi 0, %s226
      %s244 = sphi 0, %s244
      %s246 = sphi 0, %s244
      %s247 = sphi 0, %s246
      %s261 = sphi 0, %s247
      %s265 = sphi 0, %s265
      %s267 = sphi 0, %s265
      %s268 = sphi 0, %s267
      %s282 = sphi 0, %s268
      %s286 = sphi 0, %s286
      %s288 = sphi 0, %s286
      %s289 = sphi 0, %s288
      %s303 = sphi 0, %s289
      %s307 = sphi 0, %s307
      %s309 = sphi 0, %s307
      %s310 = sphi 0, %s309
      %s324 = sphi 0, %s310
      %s328 = sphi 0, %s328
      %s330 = sphi 0, %s328
      %s331 = sphi 0, %s330
      %s345 = sphi 0, %s331
      %s349 = sphi 0, %s349
      %s351 = sphi 0, %s349
      %s352 = sphi 0, %s351
      %s366 = sphi 0, %s352
      %s370 = sphi 0, %s370
      %s372 = sphi 0, %s370
      %s373 = sphi 0, %s372
      %s387 = sphi 0, %s373
      %s391 = sphi 0, %s391
      %s393 = sphi 0, %s391
      %s394 = sphi 0, %s393
      %s408 = sphi 0, %s394
      %s412 = sphi 0, %s412
      %s414 = sphi 0, %s412
      %s415 = sphi 0, %s414
      %s429 = sphi 0, %s415
      %s433 = sphi 0, %s433
      %s435 = sphi 0, %s433
      %s436 = sphi 0, %s435
      %s450 = sphi 0, %s436
      %s454 = sphi 0, %s454
      %s456 = sphi 0, %s454
      %s457 = sphi 0, %s456
      %s471 = sphi 0, %s457
      %s475 = sphi 0, %s475
      %s477 = sphi 0, %s475
      %s478 = sphi 0, %s477
      %s492 = sphi 0, %s478
      %s496 = sphi 0, %s496
      %s498 = sphi 0, %s496
      %s499 = sphi 0, %s498
      %s513 = sphi 0, %s499
      %s517 = sphi 0, %s517
      %s519 = sphi 0, %s517
      %s520 = sphi 0, %s519
      %s534 = sphi 0, %s520
      %s538 = sphi 0, %s538
      %s540 = sphi 0, %s538
      %s541 = sphi 0, %s540
      %s555 = sphi 0, %s541
      %s559 = sphi 0, %s559
      %s561 = sphi 0, %s559
      %s562 = sphi 0, %s561
      %s576 = sphi 0, %s562
      %s580 = sphi 0, %s580
      %s582 = sphi 0, %s580
      %s583 = sphi 0, %s582
      %s597 = sphi 0, %s583
      %s601 = sphi 0, %s601
      %s603 = sphi 0, %s601
      %s604 = sphi 0, %s603
      %s618 = sphi 0, %s604
      %s622 = sphi 0, %s622
      %s624 = sphi 0, %s622
      %s625 = sphi 0, %s624
      %s639 = sphi 0, %s625
      %s643 = sphi 0, %s643
      %s645 = sphi 0, %s643
      %s646 = sphi 0, %s645
      %s660 = sphi 0, %s646
      %s664 = sphi 0, %s664
      %s666 = sphi 0, %s664
      %s667 = sphi 0, %s666
      %s681 = sphi 0, %s667
      %s685 = sphi 0, %s685
      %s687 = sphi 0, %s685
      %s688 = sphi 0, %s687
      %s702 = sphi 0, %s688
      %s706 = sphi 0, %s706
      %s708 = sphi 0, %s706
      %s709 = sphi 0, %s708
      %s723 = sphi 0, %s709
      %s727 = sphi 0, %s727
      %s729 = sphi 0, %s727
      %s730 = sphi 0, %s729
      %s744 = sphi 0, %s730
      %s748 = sphi 0, %s748
      %s750 = sphi 0, %s748
      %s751 = sphi 0, %s750
      %s765 = sphi 0, %s751
      %s771 = sphi 0, %s773
      %s774 = sphi 0, %s771
      %s775 = sphi 0, %s774
      %s791 = sphi 0, %s775
    $region4: #{tpu_custom_call.1} parent=1 // loop_header_branch
      %77 = sbr.rel (%p75) target = $region8
    $region5: #{tpu_custom_call.1} parent=1 // loop_body
      %s79 = ssub.s32 %s74, 1
      %s80 = ssub.s32 %s74, 2
      %s81 = sadd.s32 %s74, 1
      %s82 = ssub.s32 %s74, %s81
      %p83 = scmp.eq.s32.totalorder %s82, 0
      %s85 = sadd.s32 %s84, 1
      %s86 = scalar_select %p83, %s84, %s85
      %p89 = pneg %p83
      %p90 = scmp.eq.s32.totalorder %s74, 1
      %p91 = por %p89, %p90
      %p92 = scmp.ne.s32.totalorder %s84, %s87
      %p93 = scmp.eq.s32.totalorder %s74, 0
      %p94 = por %p92, %p93
      %p95 = scmp.ne.s32.totalorder %s84, %s87
      %p96 = scmp.eq.s32.totalorder %s79, 1
      %p97 = por %p95, %p96
      %p98 = scmp.ne.s32.totalorder %s87, %s88
      %p99 = scmp.eq.s32.totalorder %s79, 0
      %p100 = por %p98, %p99
      %p101 = scmp.ne.s32.totalorder %s87, %s88
      %p102 = scmp.eq.s32.totalorder %s80, 1
      %p103 = por %p101, %p102
      %p105 = scmp.ne.s32.totalorder %s88, %s104
      %p106 = scmp.eq.s32.totalorder %s80, 0
      %p107 = por %p105, %p106
      %s108 = ssub.s32 %s74, %s81
      %p109 = scmp.eq.s32.totalorder %s108, 0
      %s111 = sadd.s32 %s110, 1
      %s112 = scalar_select %p109, %s110, %s111
      %p115 = pneg %p109
      %p116 = scmp.eq.s32.totalorder %s74, 1
      %p117 = por %p115, %p116
      %p118 = scmp.ne.s32.totalorder %s110, %s113
      %p119 = scmp.eq.s32.totalorder %s74, 0
      %p120 = por %p118, %p119
      %p121 = scmp.ne.s32.totalorder %s110, %s113
      %p122 = scmp.eq.s32.totalorder %s79, 1
      %p123 = por %p121, %p122
      %p124 = scmp.ne.s32.totalorder %s113, %s114
      %p125 = scmp.eq.s32.totalorder %s79, 0
      %p126 = por %p124, %p125
      %p127 = scmp.ne.s32.totalorder %s113, %s114
      %p128 = scmp.eq.s32.totalorder %s80, 1
      %p129 = por %p127, %p128
      %p131 = scmp.ne.s32.totalorder %s114, %s130
      %p132 = scmp.eq.s32.totalorder %s80, 0
      %p133 = por %p131, %p132
      %s134 = ssub.s32 %s74, %s81
      %p135 = scmp.eq.s32.totalorder %s134, 0
      %s137 = sadd.s32 %s136, 1
      %s138 = scalar_select %p135, %s136, %s137
      %p141 = pneg %p135
      %p142 = scmp.eq.s32.totalorder %s74, 1
      %p143 = por %p141, %p142
      %p144 = scmp.ne.s32.totalorder %s136, %s139
      %p145 = scmp.eq.s32.totalorder %s74, 0
      %p146 = por %p144, %p145
      %p147 = scmp.ne.s32.totalorder %s136, %s139
      %p148 = scmp.eq.s32.totalorder %s79, 1
      %p149 = por %p147, %p148
      %p150 = scmp.ne.s32.totalorder %s139, %s140
      %p151 = scmp.eq.s32.totalorder %s79, 0
      %p152 = por %p150, %p151
      %p153 = scmp.ne.s32.totalorder %s139, %s140
      %p154 = scmp.eq.s32.totalorder %s80, 1
      %p155 = por %p153, %p154
      %p157 = scmp.ne.s32.totalorder %s140, %s156
      %p158 = scmp.eq.s32.totalorder %s80, 0
      %p159 = por %p157, %p158
      %s161 = sadd.s32 %s160, 1
      %p164 = scmp.eq.s32.totalorder %s74, 1
      %p165 = scmp.ne.s32.totalorder %s160, %s162
      %p166 = scmp.eq.s32.totalorder %s74, 0
      %p167 = por %p165, %p166
      %p168 = scmp.ne.s32.totalorder %s160, %s162
      %p169 = scmp.eq.s32.totalorder %s79, 1
      %p170 = por %p168, %p169
      %p171 = scmp.ne.s32.totalorder %s162, %s163
      %p172 = scmp.eq.s32.totalorder %s79, 0
      %p173 = por %p171, %p172
      %p174 = scmp.ne.s32.totalorder %s162, %s163
      %p175 = scmp.eq.s32.totalorder %s80, 1
      %p176 = por %p174, %p175
      %p178 = scmp.ne.s32.totalorder %s163, %s177
      %p179 = scmp.eq.s32.totalorder %s80, 0
      %p180 = por %p178, %p179
      %s182 = sadd.s32 %s181, 1
      %p185 = scmp.eq.s32.totalorder %s74, 1
      %p186 = scmp.ne.s32.totalorder %s181, %s183
      %p187 = scmp.eq.s32.totalorder %s74, 0
      %p188 = por %p186, %p187
      %p189 = scmp.ne.s32.totalorder %s181, %s183
      %p190 = scmp.eq.s32.totalorder %s79, 1
      %p191 = por %p189, %p190
      %p192 = scmp.ne.s32.totalorder %s183, %s184
      %p193 = scmp.eq.s32.totalorder %s79, 0
      %p194 = por %p192, %p193
      %p195 = scmp.ne.s32.totalorder %s183, %s184
      %p196 = scmp.eq.s32.totalorder %s80, 1
      %p197 = por %p195, %p196
      %p199 = scmp.ne.s32.totalorder %s184, %s198
      %p200 = scmp.eq.s32.totalorder %s80, 0
      %p201 = por %p199, %p200
      %s203 = sadd.s32 %s202, 1
      %p206 = scmp.eq.s32.totalorder %s74, 1
      %p207 = scmp.ne.s32.totalorder %s202, %s204
      %p208 = scmp.eq.s32.totalorder %s74, 0
      %p209 = por %p207, %p208
      %p210 = scmp.ne.s32.totalorder %s202, %s204
      %p211 = scmp.eq.s32.totalorder %s79, 1
      %p212 = por %p210, %p211
      %p213 = scmp.ne.s32.totalorder %s204, %s205
      %p214 = scmp.eq.s32.totalorder %s79, 0
      %p215 = por %p213, %p214
      %p216 = scmp.ne.s32.totalorder %s204, %s205
      %p217 = scmp.eq.s32.totalorder %s80, 1
      %p218 = por %p216, %p217
      %p220 = scmp.ne.s32.totalorder %s205, %s219
      %p221 = scmp.eq.s32.totalorder %s80, 0
      %p222 = por %p220, %p221
      %s224 = sadd.s32 %s223, 1
      %p227 = scmp.eq.s32.totalorder %s74, 1
      %p228 = scmp.ne.s32.totalorder %s223, %s225
      %p229 = scmp.eq.s32.totalorder %s74, 0
      %p230 = por %p228, %p229
      %p231 = scmp.ne.s32.totalorder %s223, %s225
      %p232 = scmp.eq.s32.totalorder %s79, 1
      %p233 = por %p231, %p232
      %p234 = scmp.ne.s32.totalorder %s225, %s226
      %p235 = scmp.eq.s32.totalorder %s79, 0
      %p236 = por %p234, %p235
      %p237 = scmp.ne.s32.totalorder %s225, %s226
      %p238 = scmp.eq.s32.totalorder %s80, 1
      %p239 = por %p237, %p238
      %p241 = scmp.ne.s32.totalorder %s226, %s240
      %p242 = scmp.eq.s32.totalorder %s80, 0
      %p243 = por %p241, %p242
      %s245 = sadd.s32 %s244, 1
      %p248 = scmp.eq.s32.totalorder %s74, 1
      %p249 = scmp.ne.s32.totalorder %s244, %s246
      %p250 = scmp.eq.s32.totalorder %s74, 0
      %p251 = por %p249, %p250
      %p252 = scmp.ne.s32.totalorder %s244, %s246
      %p253 = scmp.eq.s32.totalorder %s79, 1
      %p254 = por %p252, %p253
      %p255 = scmp.ne.s32.totalorder %s246, %s247
      %p256 = scmp.eq.s32.totalorder %s79, 0
      %p257 = por %p255, %p256
      %p258 = scmp.ne.s32.totalorder %s246, %s247
      %p259 = scmp.eq.s32.totalorder %s80, 1
      %p260 = por %p258, %p259
      %p262 = scmp.ne.s32.totalorder %s247, %s261
      %p263 = scmp.eq.s32.totalorder %s80, 0
      %p264 = por %p262, %p263
      %s266 = sadd.s32 %s265, 1
      %p269 = scmp.eq.s32.totalorder %s74, 1
      %p270 = scmp.ne.s32.totalorder %s265, %s267
      %p271 = scmp.eq.s32.totalorder %s74, 0
      %p272 = por %p270, %p271
      %p273 = scmp.ne.s32.totalorder %s265, %s267
      %p274 = scmp.eq.s32.totalorder %s79, 1
      %p275 = por %p273, %p274
      %p276 = scmp.ne.s32.totalorder %s267, %s268
      %p277 = scmp.eq.s32.totalorder %s79, 0
      %p278 = por %p276, %p277
      %p279 = scmp.ne.s32.totalorder %s267, %s268
      %p280 = scmp.eq.s32.totalorder %s80, 1
      %p281 = por %p279, %p280
      %p283 = scmp.ne.s32.totalorder %s268, %s282
      %p284 = scmp.eq.s32.totalorder %s80, 0
      %p285 = por %p283, %p284
      %s287 = sadd.s32 %s286, 1
      %p290 = scmp.eq.s32.totalorder %s74, 1
      %p291 = scmp.ne.s32.totalorder %s286, %s288
      %p292 = scmp.eq.s32.totalorder %s74, 0
      %p293 = por %p291, %p292
      %p294 = scmp.ne.s32.totalorder %s286, %s288
      %p295 = scmp.eq.s32.totalorder %s79, 1
      %p296 = por %p294, %p295
      %p297 = scmp.ne.s32.totalorder %s288, %s289
      %p298 = scmp.eq.s32.totalorder %s79, 0
      %p299 = por %p297, %p298
      %p300 = scmp.ne.s32.totalorder %s288, %s289
      %p301 = scmp.eq.s32.totalorder %s80, 1
      %p302 = por %p300, %p301
      %p304 = scmp.ne.s32.totalorder %s289, %s303
      %p305 = scmp.eq.s32.totalorder %s80, 0
      %p306 = por %p304, %p305
      %s308 = sadd.s32 %s307, 1
      %p311 = scmp.eq.s32.totalorder %s74, 1
      %p312 = scmp.ne.s32.totalorder %s307, %s309
      %p313 = scmp.eq.s32.totalorder %s74, 0
      %p314 = por %p312, %p313
      %p315 = scmp.ne.s32.totalorder %s307, %s309
      %p316 = scmp.eq.s32.totalorder %s79, 1
      %p317 = por %p315, %p316
      %p318 = scmp.ne.s32.totalorder %s309, %s310
      %p319 = scmp.eq.s32.totalorder %s79, 0
      %p320 = por %p318, %p319
      %p321 = scmp.ne.s32.totalorder %s309, %s310
      %p322 = scmp.eq.s32.totalorder %s80, 1
      %p323 = por %p321, %p322
      %p325 = scmp.ne.s32.totalorder %s310, %s324
      %p326 = scmp.eq.s32.totalorder %s80, 0
      %p327 = por %p325, %p326
      %s329 = sadd.s32 %s328, 1
      %p332 = scmp.eq.s32.totalorder %s74, 1
      %p333 = scmp.ne.s32.totalorder %s328, %s330
      %p334 = scmp.eq.s32.totalorder %s74, 0
      %p335 = por %p333, %p334
      %p336 = scmp.ne.s32.totalorder %s328, %s330
      %p337 = scmp.eq.s32.totalorder %s79, 1
      %p338 = por %p336, %p337
      %p339 = scmp.ne.s32.totalorder %s330, %s331
      %p340 = scmp.eq.s32.totalorder %s79, 0
      %p341 = por %p339, %p340
      %p342 = scmp.ne.s32.totalorder %s330, %s331
      %p343 = scmp.eq.s32.totalorder %s80, 1
      %p344 = por %p342, %p343
      %p346 = scmp.ne.s32.totalorder %s331, %s345
      %p347 = scmp.eq.s32.totalorder %s80, 0
      %p348 = por %p346, %p347
      %s350 = sadd.s32 %s349, 1
      %p353 = scmp.eq.s32.totalorder %s74, 1
      %p354 = scmp.ne.s32.totalorder %s349, %s351
      %p355 = scmp.eq.s32.totalorder %s74, 0
      %p356 = por %p354, %p355
      %p357 = scmp.ne.s32.totalorder %s349, %s351
      %p358 = scmp.eq.s32.totalorder %s79, 1
      %p359 = por %p357, %p358
      %p360 = scmp.ne.s32.totalorder %s351, %s352
      %p361 = scmp.eq.s32.totalorder %s79, 0
      %p362 = por %p360, %p361
      %p363 = scmp.ne.s32.totalorder %s351, %s352
      %p364 = scmp.eq.s32.totalorder %s80, 1
      %p365 = por %p363, %p364
      %p367 = scmp.ne.s32.totalorder %s352, %s366
      %p368 = scmp.eq.s32.totalorder %s80, 0
      %p369 = por %p367, %p368
      %s371 = sadd.s32 %s370, 1
      %p374 = scmp.eq.s32.totalorder %s74, 1
      %p375 = scmp.ne.s32.totalorder %s370, %s372
      %p376 = scmp.eq.s32.totalorder %s74, 0
      %p377 = por %p375, %p376
      %p378 = scmp.ne.s32.totalorder %s370, %s372
      %p379 = scmp.eq.s32.totalorder %s79, 1
      %p380 = por %p378, %p379
      %p381 = scmp.ne.s32.totalorder %s372, %s373
      %p382 = scmp.eq.s32.totalorder %s79, 0
      %p383 = por %p381, %p382
      %p384 = scmp.ne.s32.totalorder %s372, %s373
      %p385 = scmp.eq.s32.totalorder %s80, 1
      %p386 = por %p384, %p385
      %p388 = scmp.ne.s32.totalorder %s373, %s387
      %p389 = scmp.eq.s32.totalorder %s80, 0
      %p390 = por %p388, %p389
      %s392 = sadd.s32 %s391, 1
      %p395 = scmp.eq.s32.totalorder %s74, 1
      %p396 = scmp.ne.s32.totalorder %s391, %s393
      %p397 = scmp.eq.s32.totalorder %s74, 0
      %p398 = por %p396, %p397
      %p399 = scmp.ne.s32.totalorder %s391, %s393
      %p400 = scmp.eq.s32.totalorder %s79, 1
      %p401 = por %p399, %p400
      %p402 = scmp.ne.s32.totalorder %s393, %s394
      %p403 = scmp.eq.s32.totalorder %s79, 0
      %p404 = por %p402, %p403
      %p405 = scmp.ne.s32.totalorder %s393, %s394
      %p406 = scmp.eq.s32.totalorder %s80, 1
      %p407 = por %p405, %p406
      %p409 = scmp.ne.s32.totalorder %s394, %s408
      %p410 = scmp.eq.s32.totalorder %s80, 0
      %p411 = por %p409, %p410
      %s413 = sadd.s32 %s412, 1
      %p416 = scmp.eq.s32.totalorder %s74, 1
      %p417 = scmp.ne.s32.totalorder %s412, %s414
      %p418 = scmp.eq.s32.totalorder %s74, 0
      %p419 = por %p417, %p418
      %p420 = scmp.ne.s32.totalorder %s412, %s414
      %p421 = scmp.eq.s32.totalorder %s79, 1
      %p422 = por %p420, %p421
      %p423 = scmp.ne.s32.totalorder %s414, %s415
      %p424 = scmp.eq.s32.totalorder %s79, 0
      %p425 = por %p423, %p424
      %p426 = scmp.ne.s32.totalorder %s414, %s415
      %p427 = scmp.eq.s32.totalorder %s80, 1
      %p428 = por %p426, %p427
      %p430 = scmp.ne.s32.totalorder %s415, %s429
      %p431 = scmp.eq.s32.totalorder %s80, 0
      %p432 = por %p430, %p431
      %s434 = sadd.s32 %s433, 1
      %p437 = scmp.eq.s32.totalorder %s74, 1
      %p438 = scmp.ne.s32.totalorder %s433, %s435
      %p439 = scmp.eq.s32.totalorder %s74, 0
      %p440 = por %p438, %p439
      %p441 = scmp.ne.s32.totalorder %s433, %s435
      %p442 = scmp.eq.s32.totalorder %s79, 1
      %p443 = por %p441, %p442
      %p444 = scmp.ne.s32.totalorder %s435, %s436
      %p445 = scmp.eq.s32.totalorder %s79, 0
      %p446 = por %p444, %p445
      %p447 = scmp.ne.s32.totalorder %s435, %s436
      %p448 = scmp.eq.s32.totalorder %s80, 1
      %p449 = por %p447, %p448
      %p451 = scmp.ne.s32.totalorder %s436, %s450
      %p452 = scmp.eq.s32.totalorder %s80, 0
      %p453 = por %p451, %p452
      %s455 = sadd.s32 %s454, 1
      %p458 = scmp.eq.s32.totalorder %s74, 1
      %p459 = scmp.ne.s32.totalorder %s454, %s456
      %p460 = scmp.eq.s32.totalorder %s74, 0
      %p461 = por %p459, %p460
      %p462 = scmp.ne.s32.totalorder %s454, %s456
      %p463 = scmp.eq.s32.totalorder %s79, 1
      %p464 = por %p462, %p463
      %p465 = scmp.ne.s32.totalorder %s456, %s457
      %p466 = scmp.eq.s32.totalorder %s79, 0
      %p467 = por %p465, %p466
      %p468 = scmp.ne.s32.totalorder %s456, %s457
      %p469 = scmp.eq.s32.totalorder %s80, 1
      %p470 = por %p468, %p469
      %p472 = scmp.ne.s32.totalorder %s457, %s471
      %p473 = scmp.eq.s32.totalorder %s80, 0
      %p474 = por %p472, %p473
      %s476 = sadd.s32 %s475, 1
      %p479 = scmp.eq.s32.totalorder %s74, 1
      %p480 = scmp.ne.s32.totalorder %s475, %s477
      %p481 = scmp.eq.s32.totalorder %s74, 0
      %p482 = por %p480, %p481
      %p483 = scmp.ne.s32.totalorder %s475, %s477
      %p484 = scmp.eq.s32.totalorder %s79, 1
      %p485 = por %p483, %p484
      %p486 = scmp.ne.s32.totalorder %s477, %s478
      %p487 = scmp.eq.s32.totalorder %s79, 0
      %p488 = por %p486, %p487
      %p489 = scmp.ne.s32.totalorder %s477, %s478
      %p490 = scmp.eq.s32.totalorder %s80, 1
      %p491 = por %p489, %p490
      %p493 = scmp.ne.s32.totalorder %s478, %s492
      %p494 = scmp.eq.s32.totalorder %s80, 0
      %p495 = por %p493, %p494
      %s497 = sadd.s32 %s496, 1
      %p500 = scmp.eq.s32.totalorder %s74, 1
      %p501 = scmp.ne.s32.totalorder %s496, %s498
      %p502 = scmp.eq.s32.totalorder %s74, 0
      %p503 = por %p501, %p502
      %p504 = scmp.ne.s32.totalorder %s496, %s498
      %p505 = scmp.eq.s32.totalorder %s79, 1
      %p506 = por %p504, %p505
      %p507 = scmp.ne.s32.totalorder %s498, %s499
      %p508 = scmp.eq.s32.totalorder %s79, 0
      %p509 = por %p507, %p508
      %p510 = scmp.ne.s32.totalorder %s498, %s499
      %p511 = scmp.eq.s32.totalorder %s80, 1
      %p512 = por %p510, %p511
      %p514 = scmp.ne.s32.totalorder %s499, %s513
      %p515 = scmp.eq.s32.totalorder %s80, 0
      %p516 = por %p514, %p515
      %s518 = sadd.s32 %s517, 1
      %p521 = scmp.eq.s32.totalorder %s74, 1
      %p522 = scmp.ne.s32.totalorder %s517, %s519
      %p523 = scmp.eq.s32.totalorder %s74, 0
      %p524 = por %p522, %p523
      %p525 = scmp.ne.s32.totalorder %s517, %s519
      %p526 = scmp.eq.s32.totalorder %s79, 1
      %p527 = por %p525, %p526
      %p528 = scmp.ne.s32.totalorder %s519, %s520
      %p529 = scmp.eq.s32.totalorder %s79, 0
      %p530 = por %p528, %p529
      %p531 = scmp.ne.s32.totalorder %s519, %s520
      %p532 = scmp.eq.s32.totalorder %s80, 1
      %p533 = por %p531, %p532
      %p535 = scmp.ne.s32.totalorder %s520, %s534
      %p536 = scmp.eq.s32.totalorder %s80, 0
      %p537 = por %p535, %p536
      %s539 = sadd.s32 %s538, 1
      %p542 = scmp.eq.s32.totalorder %s74, 1
      %p543 = scmp.ne.s32.totalorder %s538, %s540
      %p544 = scmp.eq.s32.totalorder %s74, 0
      %p545 = por %p543, %p544
      %p546 = scmp.ne.s32.totalorder %s538, %s540
      %p547 = scmp.eq.s32.totalorder %s79, 1
      %p548 = por %p546, %p547
      %p549 = scmp.ne.s32.totalorder %s540, %s541
      %p550 = scmp.eq.s32.totalorder %s79, 0
      %p551 = por %p549, %p550
      %p552 = scmp.ne.s32.totalorder %s540, %s541
      %p553 = scmp.eq.s32.totalorder %s80, 1
      %p554 = por %p552, %p553
      %p556 = scmp.ne.s32.totalorder %s541, %s555
      %p557 = scmp.eq.s32.totalorder %s80, 0
      %p558 = por %p556, %p557
      %s560 = sadd.s32 %s559, 1
      %p563 = scmp.eq.s32.totalorder %s74, 1
      %p564 = scmp.ne.s32.totalorder %s559, %s561
      %p565 = scmp.eq.s32.totalorder %s74, 0
      %p566 = por %p564, %p565
      %p567 = scmp.ne.s32.totalorder %s559, %s561
      %p568 = scmp.eq.s32.totalorder %s79, 1
      %p569 = por %p567, %p568
      %p570 = scmp.ne.s32.totalorder %s561, %s562
      %p571 = scmp.eq.s32.totalorder %s79, 0
      %p572 = por %p570, %p571
      %p573 = scmp.ne.s32.totalorder %s561, %s562
      %p574 = scmp.eq.s32.totalorder %s80, 1
      %p575 = por %p573, %p574
      %p577 = scmp.ne.s32.totalorder %s562, %s576
      %p578 = scmp.eq.s32.totalorder %s80, 0
      %p579 = por %p577, %p578
      %s581 = sadd.s32 %s580, 1
      %p584 = scmp.eq.s32.totalorder %s74, 1
      %p585 = scmp.ne.s32.totalorder %s580, %s582
      %p586 = scmp.eq.s32.totalorder %s74, 0
      %p587 = por %p585, %p586
      %p588 = scmp.ne.s32.totalorder %s580, %s582
      %p589 = scmp.eq.s32.totalorder %s79, 1
      %p590 = por %p588, %p589
      %p591 = scmp.ne.s32.totalorder %s582, %s583
      %p592 = scmp.eq.s32.totalorder %s79, 0
      %p593 = por %p591, %p592
      %p594 = scmp.ne.s32.totalorder %s582, %s583
      %p595 = scmp.eq.s32.totalorder %s80, 1
      %p596 = por %p594, %p595
      %p598 = scmp.ne.s32.totalorder %s583, %s597
      %p599 = scmp.eq.s32.totalorder %s80, 0
      %p600 = por %p598, %p599
      %s602 = sadd.s32 %s601, 1
      %p605 = scmp.eq.s32.totalorder %s74, 1
      %p606 = scmp.ne.s32.totalorder %s601, %s603
      %p607 = scmp.eq.s32.totalorder %s74, 0
      %p608 = por %p606, %p607
      %p609 = scmp.ne.s32.totalorder %s601, %s603
      %p610 = scmp.eq.s32.totalorder %s79, 1
      %p611 = por %p609, %p610
      %p612 = scmp.ne.s32.totalorder %s603, %s604
      %p613 = scmp.eq.s32.totalorder %s79, 0
      %p614 = por %p612, %p613
      %p615 = scmp.ne.s32.totalorder %s603, %s604
      %p616 = scmp.eq.s32.totalorder %s80, 1
      %p617 = por %p615, %p616
      %p619 = scmp.ne.s32.totalorder %s604, %s618
      %p620 = scmp.eq.s32.totalorder %s80, 0
      %p621 = por %p619, %p620
      %s623 = sadd.s32 %s622, 1
      %p626 = scmp.eq.s32.totalorder %s74, 1
      %p627 = scmp.ne.s32.totalorder %s622, %s624
      %p628 = scmp.eq.s32.totalorder %s74, 0
      %p629 = por %p627, %p628
      %p630 = scmp.ne.s32.totalorder %s622, %s624
      %p631 = scmp.eq.s32.totalorder %s79, 1
      %p632 = por %p630, %p631
      %p633 = scmp.ne.s32.totalorder %s624, %s625
      %p634 = scmp.eq.s32.totalorder %s79, 0
      %p635 = por %p633, %p634
      %p636 = scmp.ne.s32.totalorder %s624, %s625
      %p637 = scmp.eq.s32.totalorder %s80, 1
      %p638 = por %p636, %p637
      %p640 = scmp.ne.s32.totalorder %s625, %s639
      %p641 = scmp.eq.s32.totalorder %s80, 0
      %p642 = por %p640, %p641
      %s644 = sadd.s32 %s643, 1
      %p647 = scmp.eq.s32.totalorder %s74, 1
      %p648 = scmp.ne.s32.totalorder %s643, %s645
      %p649 = scmp.eq.s32.totalorder %s74, 0
      %p650 = por %p648, %p649
      %p651 = scmp.ne.s32.totalorder %s643, %s645
      %p652 = scmp.eq.s32.totalorder %s79, 1
      %p653 = por %p651, %p652
      %p654 = scmp.ne.s32.totalorder %s645, %s646
      %p655 = scmp.eq.s32.totalorder %s79, 0
      %p656 = por %p654, %p655
      %p657 = scmp.ne.s32.totalorder %s645, %s646
      %p658 = scmp.eq.s32.totalorder %s80, 1
      %p659 = por %p657, %p658
      %p661 = scmp.ne.s32.totalorder %s646, %s660
      %p662 = scmp.eq.s32.totalorder %s80, 0
      %p663 = por %p661, %p662
      %s665 = sadd.s32 %s664, 1
      %p668 = scmp.eq.s32.totalorder %s74, 1
      %p669 = scmp.ne.s32.totalorder %s664, %s666
      %p670 = scmp.eq.s32.totalorder %s74, 0
      %p671 = por %p669, %p670
      %p672 = scmp.ne.s32.totalorder %s664, %s666
      %p673 = scmp.eq.s32.totalorder %s79, 1
      %p674 = por %p672, %p673
      %p675 = scmp.ne.s32.totalorder %s666, %s667
      %p676 = scmp.eq.s32.totalorder %s79, 0
      %p677 = por %p675, %p676
      %p678 = scmp.ne.s32.totalorder %s666, %s667
      %p679 = scmp.eq.s32.totalorder %s80, 1
      %p680 = por %p678, %p679
      %p682 = scmp.ne.s32.totalorder %s667, %s681
      %p683 = scmp.eq.s32.totalorder %s80, 0
      %p684 = por %p682, %p683
      %s686 = sadd.s32 %s685, 1
      %p689 = scmp.eq.s32.totalorder %s74, 1
      %p690 = scmp.ne.s32.totalorder %s685, %s687
      %p691 = scmp.eq.s32.totalorder %s74, 0
      %p692 = por %p690, %p691
      %p693 = scmp.ne.s32.totalorder %s685, %s687
      %p694 = scmp.eq.s32.totalorder %s79, 1
      %p695 = por %p693, %p694
      %p696 = scmp.ne.s32.totalorder %s687, %s688
      %p697 = scmp.eq.s32.totalorder %s79, 0
      %p698 = por %p696, %p697
      %p699 = scmp.ne.s32.totalorder %s687, %s688
      %p700 = scmp.eq.s32.totalorder %s80, 1
      %p701 = por %p699, %p700
      %p703 = scmp.ne.s32.totalorder %s688, %s702
      %p704 = scmp.eq.s32.totalorder %s80, 0
      %p705 = por %p703, %p704
      %s707 = sadd.s32 %s706, 1
      %p710 = scmp.eq.s32.totalorder %s74, 1
      %p711 = scmp.ne.s32.totalorder %s706, %s708
      %p712 = scmp.eq.s32.totalorder %s74, 0
      %p713 = por %p711, %p712
      %p714 = scmp.ne.s32.totalorder %s706, %s708
      %p715 = scmp.eq.s32.totalorder %s79, 1
      %p716 = por %p714, %p715
      %p717 = scmp.ne.s32.totalorder %s708, %s709
      %p718 = scmp.eq.s32.totalorder %s79, 0
      %p719 = por %p717, %p718
      %p720 = scmp.ne.s32.totalorder %s708, %s709
      %p721 = scmp.eq.s32.totalorder %s80, 1
      %p722 = por %p720, %p721
      %p724 = scmp.ne.s32.totalorder %s709, %s723
      %p725 = scmp.eq.s32.totalorder %s80, 0
      %p726 = por %p724, %p725
      %s728 = sadd.s32 %s727, 1
      %p731 = scmp.eq.s32.totalorder %s74, 1
      %p732 = scmp.ne.s32.totalorder %s727, %s729
      %p733 = scmp.eq.s32.totalorder %s74, 0
      %p734 = por %p732, %p733
      %p735 = scmp.ne.s32.totalorder %s727, %s729
      %p736 = scmp.eq.s32.totalorder %s79, 1
      %p737 = por %p735, %p736
      %p738 = scmp.ne.s32.totalorder %s729, %s730
      %p739 = scmp.eq.s32.totalorder %s79, 0
      %p740 = por %p738, %p739
      %p741 = scmp.ne.s32.totalorder %s729, %s730
      %p742 = scmp.eq.s32.totalorder %s80, 1
      %p743 = por %p741, %p742
      %p745 = scmp.ne.s32.totalorder %s730, %s744
      %p746 = scmp.eq.s32.totalorder %s80, 0
      %p747 = por %p745, %p746
      %s749 = sadd.s32 %s748, 1
      %p752 = scmp.eq.s32.totalorder %s74, 1
      %p753 = scmp.ne.s32.totalorder %s748, %s750
      %p754 = scmp.eq.s32.totalorder %s74, 0
      %p755 = por %p753, %p754
      %p756 = scmp.ne.s32.totalorder %s748, %s750
      %p757 = scmp.eq.s32.totalorder %s79, 1
      %p758 = por %p756, %p757
      %p759 = scmp.ne.s32.totalorder %s750, %s751
      %p760 = scmp.eq.s32.totalorder %s79, 0
      %p761 = por %p759, %p760
      %p762 = scmp.ne.s32.totalorder %s750, %s751
      %p763 = scmp.eq.s32.totalorder %s80, 1
      %p764 = por %p762, %p763
      %p766 = scmp.ne.s32.totalorder %s751, %s765
      %p767 = scmp.eq.s32.totalorder %s80, 0
      %p768 = por %p766, %p767
      %s769 = ssub.s32 %s74, %s81
      %p770 = scmp.eq.s32.totalorder %s769, 0
      %s772 = sadd.s32 %s771, 1
      %s773 = scalar_select %p770, %s771, %s772
      %p776 = pneg %p770
      %p777 = scmp.eq.s32.totalorder %s74, 1
      %p778 = por %p776, %p777
      %p779 = scmp.ne.s32.totalorder %s771, %s774
      %p780 = scmp.eq.s32.totalorder %s74, 0
      %p781 = por %p779, %p780
      %p782 = scmp.ne.s32.totalorder %s771, %s774
      %p783 = scmp.eq.s32.totalorder %s79, 1
      %p784 = por %p782, %p783
      %p785 = scmp.ne.s32.totalorder %s774, %s775
      %p786 = scmp.eq.s32.totalorder %s79, 0
      %p787 = por %p785, %p786
      %p788 = scmp.ne.s32.totalorder %s774, %s775
      %p789 = scmp.eq.s32.totalorder %s80, 1
      %p790 = por %p788, %p789
      %p792 = scmp.ne.s32.totalorder %s775, %s791
      %p793 = scmp.eq.s32.totalorder %s80, 0
      %p794 = por %p792, %p793
      %p795 = scmp.le.s32.totalorder 1, %s74
      %p796 = scmp.lt.s32.totalorder %s74, 3
      %p797 = pnand %p795, %p796
      %p798 = pneg %p797
      // Predicated region
      $region9: #{tpu_custom_call.1} parent=5 // pred_check
        _
      $region10: #{tpu_custom_call.1} parent=5 // pred_check_branch
        %800 = sbr.rel (%p797) target = $region12
      $region11: #{tpu_custom_call.1} parent=5 // pred_region
        %s801 = ssub.s32 %s74, 1
        // Predicated region
        $region13: #{tpu_custom_call.1} parent=11 // pred_check
          %p802 = pneg %p173
        $region14: #{tpu_custom_call.1} parent=11 // pred_check_branch
          %804 = sbr.rel (%p802) target = $region16
        $region15: #{tpu_custom_call.1} parent=11 // pred_region
          _
        $region16: #{tpu_custom_call.1} parent=11 // pred_fallthru
          _
        // Predicated region
        $region17: #{tpu_custom_call.1} parent=11 // pred_check
          %p805 = pneg %p194
        $region18: #{tpu_custom_call.1} parent=11 // pred_check_branch
          %807 = sbr.rel (%p805) target = $region20
        $region19: #{tpu_custom_call.1} parent=11 // pred_region
          _
        $region20: #{tpu_custom_call.1} parent=11 // pred_fallthru
          _
        // Predicated region
        $region21: #{tpu_custom_call.1} parent=11 // pred_check
          %p808 = pneg %p215
        $region22: #{tpu_custom_call.1} parent=11 // pred_check_branch
          %810 = sbr.rel (%p808) target = $region24
        $region23: #{tpu_custom_call.1} parent=11 // pred_region
          _
        $region24: #{tpu_custom_call.1} parent=11 // pred_fallthru
          _
        // Predicated region
        $region25: #{tpu_custom_call.1} parent=11 // pred_check
          %p811 = pneg %p236
        $region26: #{tpu_custom_call.1} parent=11 // pred_check_branch
          %813 = sbr.rel (%p811) target = $region28
        $region27: #{tpu_custom_call.1} parent=11 // pred_region
          _
        $region28: #{tpu_custom_call.1} parent=11 // pred_fallthru
          _
        // Predicated region
        $region29: #{tpu_custom_call.1} parent=11 // pred_check
          %p814 = pneg %p257
        $region30: #{tpu_custom_call.1} parent=11 // pred_check_branch
          %816 = sbr.rel (%p814) target = $region32
        $region31: #{tpu_custom_call.1} parent=11 // pred_region
          _
        $region32: #{tpu_custom_call.1} parent=11 // pred_fallthru
          _
        // Predicated region
        $region33: #{tpu_custom_call.1} parent=11 // pred_check
          %p817 = pneg %p278
        $region34: #{tpu_custom_call.1} parent=11 // pred_check_branch
          %819 = sbr.rel (%p817) target = $region36
        $region35: #{tpu_custom_call.1} parent=11 // pred_region
          _
        $region36: #{tpu_custom_call.1} parent=11 // pred_fallthru
          _
        // Predicated region
        $region37: #{tpu_custom_call.1} parent=11 // pred_check
          %p820 = pneg %p299
        $region38: #{tpu_custom_call.1} parent=11 // pred_check_branch
          %822 = sbr.rel (%p820) target = $region40
        $region39: #{tpu_custom_call.1} parent=11 // pred_region
          _
        $region40: #{tpu_custom_call.1} parent=11 // pred_fallthru
          _
        // Predicated region
        $region41: #{tpu_custom_call.1} parent=11 // pred_check
          %p823 = pneg %p320
        $region42: #{tpu_custom_call.1} parent=11 // pred_check_branch
          %825 = sbr.rel (%p823) target = $region44
        $region43: #{tpu_custom_call.1} parent=11 // pred_region
          _
        $region44: #{tpu_custom_call.1} parent=11 // pred_fallthru
          _
        // Predicated region
        $region45: #{tpu_custom_call.1} parent=11 // pred_check
          %p826 = pneg %p341
        $region46: #{tpu_custom_call.1} parent=11 // pred_check_branch
          %828 = sbr.rel (%p826) target = $region48
        $region47: #{tpu_custom_call.1} parent=11 // pred_region
          _
        $region48: #{tpu_custom_call.1} parent=11 // pred_fallthru
          _
        // Predicated region
        $region49: #{tpu_custom_call.1} parent=11 // pred_check
          %p829 = pneg %p362
        $region50: #{tpu_custom_call.1} parent=11 // pred_check_branch
          %831 = sbr.rel (%p829) target = $region52
        $region51: #{tpu_custom_call.1} parent=11 // pred_region
          _
        $region52: #{tpu_custom_call.1} parent=11 // pred_fallthru
          _
        // Predicated region
        $region53: #{tpu_custom_call.1} parent=11 // pred_check
          %p832 = pneg %p383
        $region54: #{tpu_custom_call.1} parent=11 // pred_check_branch
          %834 = sbr.rel (%p832) target = $region56
        $region55: #{tpu_custom_call.1} parent=11 // pred_region
          _
        $region56: #{tpu_custom_call.1} parent=11 // pred_fallthru
          _
        // Predicated region
        $region57: #{tpu_custom_call.1} parent=11 // pred_check
          %p835 = pneg %p404
        $region58: #{tpu_custom_call.1} parent=11 // pred_check_branch
          %837 = sbr.rel (%p835) target = $region60
        $region59: #{tpu_custom_call.1} parent=11 // pred_region
          _
        $region60: #{tpu_custom_call.1} parent=11 // pred_fallthru
          _
        // Predicated region
        $region61: #{tpu_custom_call.1} parent=11 // pred_check
          %p838 = pneg %p425
        $region62: #{tpu_custom_call.1} parent=11 // pred_check_branch
          %840 = sbr.rel (%p838) target = $region64
        $region63: #{tpu_custom_call.1} parent=11 // pred_region
          _
        $region64: #{tpu_custom_call.1} parent=11 // pred_fallthru
          _
        // Predicated region
        $region65: #{tpu_custom_call.1} parent=11 // pred_check
          %p841 = pneg %p446
        $region66: #{tpu_custom_call.1} parent=11 // pred_check_branch
          %843 = sbr.rel (%p841) target = $region68
        $region67: #{tpu_custom_call.1} parent=11 // pred_region
          _
        $region68: #{tpu_custom_call.1} parent=11 // pred_fallthru
          _
        // Predicated region
        $region69: #{tpu_custom_call.1} parent=11 // pred_check
          %p844 = pneg %p467
        $region70: #{tpu_custom_call.1} parent=11 // pred_check_branch
          %846 = sbr.rel (%p844) target = $region72
        $region71: #{tpu_custom_call.1} parent=11 // pred_region
          _
        $region72: #{tpu_custom_call.1} parent=11 // pred_fallthru
          _
        // Predicated region
        $region73: #{tpu_custom_call.1} parent=11 // pred_check
          %p847 = pneg %p488
        $region74: #{tpu_custom_call.1} parent=11 // pred_check_branch
          %849 = sbr.rel (%p847) target = $region76
        $region75: #{tpu_custom_call.1} parent=11 // pred_region
          _
        $region76: #{tpu_custom_call.1} parent=11 // pred_fallthru
          _
        // Predicated region
        $region77: #{tpu_custom_call.1} parent=11 // pred_check
          %p850 = pneg %p509
        $region78: #{tpu_custom_call.1} parent=11 // pred_check_branch
          %852 = sbr.rel (%p850) target = $region80
        $region79: #{tpu_custom_call.1} parent=11 // pred_region
          _
        $region80: #{tpu_custom_call.1} parent=11 // pred_fallthru
          _
        // Predicated region
        $region81: #{tpu_custom_call.1} parent=11 // pred_check
          %p853 = pneg %p530
        $region82: #{tpu_custom_call.1} parent=11 // pred_check_branch
          %855 = sbr.rel (%p853) target = $region84
        $region83: #{tpu_custom_call.1} parent=11 // pred_region
          _
        $region84: #{tpu_custom_call.1} parent=11 // pred_fallthru
          _
        // Predicated region
        $region85: #{tpu_custom_call.1} parent=11 // pred_check
          %p856 = pneg %p551
        $region86: #{tpu_custom_call.1} parent=11 // pred_check_branch
          %858 = sbr.rel (%p856) target = $region88
        $region87: #{tpu_custom_call.1} parent=11 // pred_region
          _
        $region88: #{tpu_custom_call.1} parent=11 // pred_fallthru
          _
        // Predicated region
        $region89: #{tpu_custom_call.1} parent=11 // pred_check
          %p859 = pneg %p572
        $region90: #{tpu_custom_call.1} parent=11 // pred_check_branch
          %861 = sbr.rel (%p859) target = $region92
        $region91: #{tpu_custom_call.1} parent=11 // pred_region
          _
        $region92: #{tpu_custom_call.1} parent=11 // pred_fallthru
          _
        // Predicated region
        $region93: #{tpu_custom_call.1} parent=11 // pred_check
          %p862 = pneg %p593
        $region94: #{tpu_custom_call.1} parent=11 // pred_check_branch
          %864 = sbr.rel (%p862) target = $region96
        $region95: #{tpu_custom_call.1} parent=11 // pred_region
          _
        $region96: #{tpu_custom_call.1} parent=11 // pred_fallthru
          _
        // Predicated region
        $region97: #{tpu_custom_call.1} parent=11 // pred_check
          %p865 = pneg %p614
        $region98: #{tpu_custom_call.1} parent=11 // pred_check_branch
          %867 = sbr.rel (%p865) target = $region100
        $region99: #{tpu_custom_call.1} parent=11 // pred_region
          _
        $region100: #{tpu_custom_call.1} parent=11 // pred_fallthru
          _
        // Predicated region
        $region101: #{tpu_custom_call.1} parent=11 // pred_check
          %p868 = pneg %p635
        $region102: #{tpu_custom_call.1} parent=11 // pred_check_branch
          %870 = sbr.rel (%p868) target = $region104
        $region103: #{tpu_custom_call.1} parent=11 // pred_region
          _
        $region104: #{tpu_custom_call.1} parent=11 // pred_fallthru
          _
        // Predicated region
        $region105: #{tpu_custom_call.1} parent=11 // pred_check
          %p871 = pneg %p656
        $region106: #{tpu_custom_call.1} parent=11 // pred_check_branch
          %873 = sbr.rel (%p871) target = $region108
        $region107: #{tpu_custom_call.1} parent=11 // pred_region
          _
        $region108: #{tpu_custom_call.1} parent=11 // pred_fallthru
          _
        // Predicated region
        $region109: #{tpu_custom_call.1} parent=11 // pred_check
          %p874 = pneg %p677
        $region110: #{tpu_custom_call.1} parent=11 // pred_check_branch
          %876 = sbr.rel (%p874) target = $region112
        $region111: #{tpu_custom_call.1} parent=11 // pred_region
          _
        $region112: #{tpu_custom_call.1} parent=11 // pred_fallthru
          _
        // Predicated region
        $region113: #{tpu_custom_call.1} parent=11 // pred_check
          %p877 = pneg %p698
        $region114: #{tpu_custom_call.1} parent=11 // pred_check_branch
          %879 = sbr.rel (%p877) target = $region116
        $region115: #{tpu_custom_call.1} parent=11 // pred_region
          _
        $region116: #{tpu_custom_call.1} parent=11 // pred_fallthru
          _
        // Predicated region
        $region117: #{tpu_custom_call.1} parent=11 // pred_check
          %p880 = pneg %p719
        $region118: #{tpu_custom_call.1} parent=11 // pred_check_branch
          %882 = sbr.rel (%p880) target = $region120
        $region119: #{tpu_custom_call.1} parent=11 // pred_region
          _
        $region120: #{tpu_custom_call.1} parent=11 // pred_fallthru
          _
        // Predicated region
        $region121: #{tpu_custom_call.1} parent=11 // pred_check
          %p883 = pneg %p740
        $region122: #{tpu_custom_call.1} parent=11 // pred_check_branch
          %885 = sbr.rel (%p883) target = $region124
        $region123: #{tpu_custom_call.1} parent=11 // pred_region
          _
        $region124: #{tpu_custom_call.1} parent=11 // pred_fallthru
          _
        // Predicated region
        $region125: #{tpu_custom_call.1} parent=11 // pred_check
          %p886 = pneg %p761
        $region126: #{tpu_custom_call.1} parent=11 // pred_check_branch
          %888 = sbr.rel (%p886) target = $region128
        $region127: #{tpu_custom_call.1} parent=11 // pred_region
          _
        $region128: #{tpu_custom_call.1} parent=11 // pred_fallthru
          _
      $region12: #{tpu_custom_call.1} parent=5 // pred_fallthru
        _
      %p889 = scmp.lt.s32.totalorder %s74, 2
      // Predicated region
      $region129: #{tpu_custom_call.1} parent=5 // pred_check
        %p890 = pneg %p889
      $region130: #{tpu_custom_call.1} parent=5 // pred_check_branch
        %892 = sbr.rel (%p890) target = $region132
      $region131: #{tpu_custom_call.1} parent=5 // pred_region
        // Predicated region
        $region133: #{tpu_custom_call.1} parent=131 // pred_check
          %p893 = pneg %p94
        $region134: #{tpu_custom_call.1} parent=131 // pred_check_branch
          %895 = sbr.rel (%p893) target = $region136
        $region135: #{tpu_custom_call.1} parent=131 // pred_region
          %p896 = scmp.lt.s32.totalorder %s74, 1
          %s897 = scalar_select %p896, %s74, 1
          %s898 = smul.addr %s897, 8
          %s899 = scalar_lea.vmem %s1, %s898
        $region136: #{tpu_custom_call.1} parent=131 // pred_fallthru
          _
        // Predicated region
        $region137: #{tpu_custom_call.1} parent=131 // pred_check
          %p900 = pneg %p120
        $region138: #{tpu_custom_call.1} parent=131 // pred_check_branch
          %902 = sbr.rel (%p900) target = $region140
        $region139: #{tpu_custom_call.1} parent=131 // pred_region
          %p903 = scmp.lt.s32.totalorder %s74, 1
          %s904 = scalar_select %p903, %s74, 1
          %s905 = smul.addr %s904, 4
          %s906 = scalar_lea.vmem %s3, %s905
        $region140: #{tpu_custom_call.1} parent=131 // pred_fallthru
          _
        // Predicated region
        $region141: #{tpu_custom_call.1} parent=131 // pred_check
          %p907 = pneg %p146
        $region142: #{tpu_custom_call.1} parent=131 // pred_check_branch
          %909 = sbr.rel (%p907) target = $region144
        $region143: #{tpu_custom_call.1} parent=131 // pred_region
          %p910 = scmp.lt.s32.totalorder %s74, 1
          %s911 = scalar_select %p910, %s74, 1
          %s912 = smul.addr %s911, 4
          %s913 = scalar_lea.vmem %s5, %s912
        $region144: #{tpu_custom_call.1} parent=131 // pred_fallthru
          _
      $region132: #{tpu_custom_call.1} parent=5 // pred_fallthru
        _
      %p914 = scmp.le.s32.totalorder 1, %s74
      %p915 = scmp.lt.s32.totalorder %s74, 3
      %p916 = pnand %p914, %p915
      %p917 = pneg %p916
      // Predicated region
      $region145: #{tpu_custom_call.1} parent=5 // pred_check
        _
      $region146: #{tpu_custom_call.1} parent=5 // pred_check_branch
        %919 = sbr.rel (%p916) target = $region148
      $region147: #{tpu_custom_call.1} parent=5 // pred_region
        %s920 = ssub.s32 %s74, 1
        %p921 = scmp.lt.s32.totalorder %s79, 1
        %s922 = scalar_select %p921, %s79, 1
        %s923 = smul.addr %s922, 8
        %s924 = scalar_lea.vmem %s1, %s923
        %p925 = pneg %p100
        %p926 = pneg %p97
        %p927 = scmp.lt.s32.totalorder %s79, 1
        %s928 = scalar_select %p927, %s79, 1
        %s929 = smul.addr %s928, 4
        %s930 = scalar_lea.vmem %s3, %s929
        %p931 = pneg %p126
        %p932 = pneg %p123
        %p933 = scmp.lt.s32.totalorder %s79, 1
        %s934 = scalar_select %p933, %s79, 1
        %s935 = smul.addr %s934, 4
        %s936 = scalar_lea.vmem %s5, %s935
        %p937 = pneg %p152
        %p938 = pneg %p149
        %p939 = pneg %p173
        %p940 = pneg %p170
        %p941 = pneg %p194
        %p942 = pneg %p191
        %p943 = pneg %p215
        %p944 = pneg %p212
        %p945 = pneg %p236
        %p946 = pneg %p233
        %p947 = pneg %p257
        %p948 = pneg %p254
        %p949 = pneg %p278
        %p950 = pneg %p275
        %p951 = pneg %p299
        %p952 = pneg %p296
        %p953 = pneg %p320
        %p954 = pneg %p317
        %p955 = pneg %p341
        %p956 = pneg %p338
        %p957 = pneg %p362
        %p958 = pneg %p359
        %p959 = pneg %p383
        %p960 = pneg %p380
        %p961 = pneg %p404
        %p962 = pneg %p401
        %p963 = pneg %p425
        %p964 = pneg %p422
        %p965 = pneg %p446
        %p966 = pneg %p443
        %p967 = pneg %p467
        %p968 = pneg %p464
        %p969 = pneg %p488
        %p970 = pneg %p485
        %p971 = pneg %p509
        %p972 = pneg %p506
        %p973 = pneg %p530
        %p974 = pneg %p527
        %p975 = pneg %p551
        %p976 = pneg %p548
        %p977 = pneg %p572
        %p978 = pneg %p569
        %p979 = pneg %p593
        %p980 = pneg %p590
        %p981 = pneg %p614
        %p982 = pneg %p611
        %p983 = pneg %p635
        %p984 = pneg %p632
        %p985 = pneg %p656
        %p986 = pneg %p653
        %p987 = pneg %p677
        %p988 = pneg %p674
        %p989 = pneg %p698
        %p990 = pneg %p695
        %p991 = pneg %p719
        %p992 = pneg %p716
        %p993 = pneg %p740
        %p994 = pneg %p737
        %p995 = pneg %p761
        %p996 = pneg %p758
        %p997 = pneg %p787
        %p998 = pneg %p784
        %s999 = sand.u32 %s774, 1
        %s1000 = scalar_lea.sflag [#allocation3], %s999
        %s1001 = sand.u32 %s774, 1
        %s1002 = smul.addr %s1001, 8
        %s1003 = scalar_lea.vmem [#allocation2], %s1002
        %p1004 = scmp.lt.s32.totalorder %s79, 1
        %s1005 = scalar_select %p1004, %s79, 1
        %s1006 = smul.addr %s1005, 8
        %s1007 = scalar_lea.vmem %s1, %s1006
        %p1008 = scmp.lt.s32.totalorder %s79, 1
        %s1009 = scalar_select %p1008, %s79, 1
        %s1010 = smul.addr %s1009, 4
        %s1011 = scalar_lea.vmem %s3, %s1010
        %p1012 = scmp.lt.s32.totalorder %s79, 1
        %s1013 = scalar_select %p1012, %s79, 1
        %s1014 = smul.addr %s1013, 4
        %s1015 = scalar_lea.vmem %s5, %s1014
        %v1017 = vlaneseq
        %v1018 = vshrl.u32 %v1017, 7
        %v1019 = vld [vmem:[%s1007] sm:$0xff]
        %v1020 = vld [vmem:[%s1011] sm:$0xf]
        %v1021 = vld [vmem:[%s1015] sm:$0xf]
        %v1022 = vld [vmem:[%s7] sm:$0x1]
        %v1023 = vmul.f32 %v1019, %v1019
        %vm1024 = vcmask 261120
        %v1025 = vsel %vm1024, %v1023, 0.0
        %1026 = vadd.xlane.f32.xlu0 %v1025
        %v1027 = vpop.xlane.xlu0 %1026
        %v1028 = vmax.f32 %v1027, 3.2e-15
        %v1029 = vrsqrt.pop %v1028
        %v1030 = vmul.f32 %v1029, 5.656854
        %v1031 = vmul.f32 %v1019, %v1030
        %v1032 = vlaneseq
        %v1033 = vshrl.u32 %v1032, 7
        %v1034 = vsub.s32 0, %v1033
        %v1035 = vrot.slane %v1022, %v1034
        %v1036 = vmul.f32 %v1031, %v1035
        %v1037 = vpack.c.bf16 %v1036, %v1036
        %v1038 = vrot.slane %v1036, 6
        %vm1039 = vcmp.ge.s32.totalorder %v1018, 2
        %v1040 = vsel %vm1039, 1, 0
        %vm1041 = vcmp.eq.s32.totalorder %v1040, 1
        %v1042 = vsel %vm1041, %v1038, 0.0
        %v1043 = vpack.c.bf16 %v1042, %v1042
        %v1044 = vld [vmem:[%s9] sm:$0xf]
        %v1045 = vld [vmem:[%s9 + $0x4] sm:$0xf]
        %v1046 = vld [vmem:[%s9 + $0x8] sm:$0xf]
        %v1047 = vld [vmem:[%s9 + $0xc] sm:$0xf]
        %v1048 = vrot.slane %v1036, 7
        %vm1049 = vcmp.ge.s32.totalorder %v1018, 1
        %v1050 = vsel %vm1049, 1, 0
        %vm1051 = vcmp.eq.s32.totalorder %v1050, 1
        %v1052 = vsel %vm1051, %v1048, 0.0
        %v1053 = vpack.c.bf16 %v1052, %v1052
        %s1054 = scalar_lea.vmem %s9, 16
        %v1055 = vld [vmem:[%s1054] sm:$0xf]
        %v1056 = vld [vmem:[%s1054 + $0x4] sm:$0xf]
        %v1057 = vld [vmem:[%s1054 + $0x8] sm:$0xf]
        %v1058 = vld [vmem:[%s1054 + $0xc] sm:$0xf]
        %v1063 = vunpack.c.l.b16 %v1055
        %v1064 = vunpack.c.l.b16 %v1056
        %v1065 = vunpack.c.l.b16 %v1057
        %v1066 = vunpack.c.l.b16 %v1058
        %v1067 = vpack.c.b16 %v1064, %v1063
        %v1068 = vpack.c.b16 %v1066, %v1065
        %v1072 = vsel %vm1024, %v1053, 0
        %1074 = vmatprep.subr.bf16.mxu0 0
        %1075 = vmatpush1.bf16.msra.mxu0 %v1067
        %1076 = vmatprep.subr.bf16.mxu0 0
        %1077 = vmatpush1.bf16.msra.mxu0 %v1068
        %1078 = vmatprep.subr.bf16.mxu0 0
        %1079 = vmatpush1.bf16.msra.mxu0 0
        %1080 = vmatprep.subr.bf16.mxu0 0
        %1081 = vmatpush1.bf16.msra.mxu0 0
        %1082 = vmatprep.subr.bf16.mxu0 0
        %1083 = vmatpush1.bf16.msra.mxu0 0
        %1084 = vmatprep.subr.bf16.mxu0 0
        %1085 = vmatpush1.bf16.msra.mxu0 0
        %1086 = vmatprep.subr.bf16.mxu0 0
        %1087 = vmatpush1.bf16.msra.mxu0 0
        %1088 = vmatprep.subr.bf16.mxu0 0
        %1089 = vmatpush1.bf16.msra.mxu0 0
        %1090 = vmatprep.subr.bf16.mxu0 0
        %1091 = vmatpush1.bf16.msra.mxu0 0
        %1092 = vmatprep.subr.bf16.mxu0 0
        %1093 = vmatpush1.bf16.msra.mxu0 0
        %1094 = vmatprep.subr.bf16.mxu0 0
        %1095 = vmatpush1.bf16.msra.mxu0 0
        %1096 = vmatprep.subr.bf16.mxu0 0
        %1097 = vmatpush1.bf16.msra.mxu0 0
        %1098 = vmatprep.subr.bf16.mxu0 0
        %1099 = vmatpush1.bf16.msra.mxu0 0
        %1100 = vmatprep.subr.bf16.mxu0 0
        %1101 = vmatpush1.bf16.msra.mxu0 0
        %1102 = vmatprep.subr.bf16.mxu0 0
        %1103 = vmatpush1.bf16.msra.mxu0 0
        %1104 = vmatprep.subr.bf16.mxu0 0
        %1105 = vmatpush1.bf16.msra.mxu0 0
        %1106 = vmatprep.mubr.bf16.mxu0 0
        %1107 = vmatmul.mubr.bf16.gmra.mrb[0].mxu0 %v1072
        %v1108 = vpop.f32.mrb[0].mxu0
        %v1109 = vadd.f32 0.0, %v1108
        %v1110 = vpop.f32.mrb[0].mxu0
        %v1111 = vpop.f32.mrb[0].mxu0
        %v1112 = vpop.f32.mrb[0].mxu0
        %1113 = vdwg.mxu0
        %v1118 = vunpack.c.l.b16 %v1044
        %v1119 = vunpack.c.l.b16 %v1045
        %v1120 = vunpack.c.l.b16 %v1046
        %v1121 = vunpack.c.l.b16 %v1047
        %v1122 = vpack.c.b16 %v1119, %v1118
        %v1123 = vpack.c.b16 %v1121, %v1120
        %v1127 = vsel %vm1024, %v1043, 0
        %1129 = vmatprep.subr.bf16.mxu0 0
        %1130 = vmatpush1.bf16.msra.mxu0 %v1122
        %1131 = vmatprep.subr.bf16.mxu0 0
        %1132 = vmatpush1.bf16.msra.mxu0 %v1123
        %1133 = vmatprep.subr.bf16.mxu0 0
        %1134 = vmatpush1.bf16.msra.mxu0 0
        %1135 = vmatprep.subr.bf16.mxu0 0
        %1136 = vmatpush1.bf16.msra.mxu0 0
        %1137 = vmatprep.subr.bf16.mxu0 0
        %1138 = vmatpush1.bf16.msra.mxu0 0
        %1139 = vmatprep.subr.bf16.mxu0 0
        %1140 = vmatpush1.bf16.msra.mxu0 0
        %1141 = vmatprep.subr.bf16.mxu0 0
        %1142 = vmatpush1.bf16.msra.mxu0 0
        %1143 = vmatprep.subr.bf16.mxu0 0
        %1144 = vmatpush1.bf16.msra.mxu0 0
        %1145 = vmatprep.subr.bf16.mxu0 0
        %1146 = vmatpush1.bf16.msra.mxu0 0
        %1147 = vmatprep.subr.bf16.mxu0 0
        %1148 = vmatpush1.bf16.msra.mxu0 0
        %1149 = vmatprep.subr.bf16.mxu0 0
        %1150 = vmatpush1.bf16.msra.mxu0 0
        %1151 = vmatprep.subr.bf16.mxu0 0
        %1152 = vmatpush1.bf16.msra.mxu0 0
        %1153 = vmatprep.subr.bf16.mxu0 0
        %1154 = vmatpush1.bf16.msra.mxu0 0
        %1155 = vmatprep.subr.bf16.mxu0 0
        %1156 = vmatpush1.bf16.msra.mxu0 0
        %1157 = vmatprep.subr.bf16.mxu0 0
        %1158 = vmatpush1.bf16.msra.mxu0 0
        %1159 = vmatprep.subr.bf16.mxu0 0
        %1160 = vmatpush1.bf16.msra.mxu0 0
        %1161 = vmatprep.mubr.bf16.mxu0 0
        %1162 = vmatmul.mubr.bf16.gmra.mrb[0].mxu0 %v1127
        %v1163 = vpop.f32.mrb[0].mxu0
        %v1164 = vadd.f32 %v1109, %v1163
        %v1165 = vpop.f32.mrb[0].mxu0
        %v1166 = vpop.f32.mrb[0].mxu0
        %v1167 = vpop.f32.mrb[0].mxu0
        %1168 = vdwg.mxu0
        %s1169 = scalar_lea.vmem %s9, 32
        %v1170 = vld [vmem:[%s1169] sm:$0xf]
        %v1171 = vld [vmem:[%s1169 + $0x4] sm:$0xf]
        %v1172 = vld [vmem:[%s1169 + $0x8] sm:$0xf]
        %v1173 = vld [vmem:[%s1169 + $0xc] sm:$0xf]
        %v1178 = vunpack.c.l.b16 %v1170
        %v1179 = vunpack.c.l.b16 %v1171
        %v1180 = vunpack.c.l.b16 %v1172
        %v1181 = vunpack.c.l.b16 %v1173
        %v1182 = vpack.c.b16 %v1179, %v1178
        %v1183 = vpack.c.b16 %v1181, %v1180
        %v1187 = vsel %vm1024, %v1037, 0
        %1189 = vmatprep.subr.bf16.mxu0 0
        %1190 = vmatpush1.bf16.msra.mxu0 %v1182
        %1191 = vmatprep.subr.bf16.mxu0 0
        %1192 = vmatpush1.bf16.msra.mxu0 %v1183
        %1193 = vmatprep.subr.bf16.mxu0 0
        %1194 = vmatpush1.bf16.msra.mxu0 0
        %1195 = vmatprep.subr.bf16.mxu0 0
        %1196 = vmatpush1.bf16.msra.mxu0 0
        %1197 = vmatprep.subr.bf16.mxu0 0
        %1198 = vmatpush1.bf16.msra.mxu0 0
        %1199 = vmatprep.subr.bf16.mxu0 0
        %1200 = vmatpush1.bf16.msra.mxu0 0
        %1201 = vmatprep.subr.bf16.mxu0 0
        %1202 = vmatpush1.bf16.msra.mxu0 0
        %1203 = vmatprep.subr.bf16.mxu0 0
        %1204 = vmatpush1.bf16.msra.mxu0 0
        %1205 = vmatprep.subr.bf16.mxu0 0
        %1206 = vmatpush1.bf16.msra.mxu0 0
        %1207 = vmatprep.subr.bf16.mxu0 0
        %1208 = vmatpush1.bf16.msra.mxu0 0
        %1209 = vmatprep.subr.bf16.mxu0 0
        %1210 = vmatpush1.bf16.msra.mxu0 0
        %1211 = vmatprep.subr.bf16.mxu0 0
        %1212 = vmatpush1.bf16.msra.mxu0 0
        %1213 = vmatprep.subr.bf16.mxu0 0
        %1214 = vmatpush1.bf16.msra.mxu0 0
        %1215 = vmatprep.subr.bf16.mxu0 0
        %1216 = vmatpush1.bf16.msra.mxu0 0
        %1217 = vmatprep.subr.bf16.mxu0 0
        %1218 = vmatpush1.bf16.msra.mxu0 0
        %1219 = vmatprep.subr.bf16.mxu0 0
        %1220 = vmatpush1.bf16.msra.mxu0 0
        %1221 = vmatprep.mubr.bf16.mxu0 0
        %1222 = vmatmul.mubr.bf16.gmra.mrb[0].mxu0 %v1187
        %v1223 = vpop.f32.mrb[0].mxu0
        %v1224 = vadd.f32 0.0, %v1223
        %v1225 = vpop.f32.mrb[0].mxu0
        %v1226 = vpop.f32.mrb[0].mxu0
        %v1227 = vpop.f32.mrb[0].mxu0
        %1228 = vdwg.mxu0
        %v1229 = vadd.f32 %v1164, %v1224
        %v1230 = vld [vmem:[%s11] sm:$0x1]
        %v1232 = vlaneseq
        %v1233 = vshrl.u32 %v1232, 7
        %v1234 = vsub.s32 0, %v1233
        %v1235 = vrot.slane %v1230, %v1234
        %v1237 = vadd.f32 %v1229, %v1235
        %v1238 = vxor.u32 %v1237, 2147483648
        %v1239 = vmul.f32 %v1238, 1.442695
        %v1240 = vpow.pop %v1239
        %v1241 = vadd.f32 %v1240, 1.0
        %v1242 = vrcp.pop %v1241
        %v1243 = vmul.f32 1.0, %v1242
        %1245 = vrot.lane.b32.xlu0 %v1243, 96
        %v1246 = vpop.permute.xlu0 %1245
        %v1248 = vmul.f32 %v1237, %v1246
        %v1249 = vadd.f32 %v1248, %v1019
        %v1250 = vld [vmem:[%s7 + $0x1] sm:$0x1]
        %v1251 = vmul.f32 %v1249, %v1249
        %v1252 = vsel %vm1024, %v1251, 0.0
        %1253 = vadd.xlane.f32.xlu0 %v1252
        %v1254 = vpop.xlane.xlu0 %1253
        %v1255 = vmax.f32 %v1254, 3.2e-15
        %v1256 = vrsqrt.pop %v1255
        %v1257 = vmul.f32 %v1256, 5.656854
        %v1258 = vmul.f32 %v1249, %v1257
        %v1259 = vlaneseq
        %v1260 = vshrl.u32 %v1259, 7
        %v1261 = vsub.s32 0, %v1260
        %v1262 = vrot.slane %v1250, %v1261
        %v1263 = vmul.f32 %v1258, %v1262
        %v1264 = vpack.c.bf16 %v1263, %v1263
        %v1265 = vld [vmem:[%s13] sm:$0xf]
        %v1266 = vld [vmem:[%s13 + $0x4] sm:$0xf]
        %v1267 = vld [vmem:[%s13 + $0x8] sm:$0xf]
        %v1268 = vld [vmem:[%s13 + $0xc] sm:$0xf]
        %v1269 = vld [vmem:[%s15] sm:$0x1]
        %v1271 = vlaneseq
        %v1272 = vshrl.u32 %v1271, 7
        %v1273 = vsub.s32 0, %v1272
        %v1274 = vrot.slane %v1269, %v1273
        %v1280 = vunpack.c.l.b16 %v1265
        %v1281 = vunpack.c.l.b16 %v1266
        %v1282 = vunpack.c.l.b16 %v1267
        %v1283 = vunpack.c.l.b16 %v1268
        %v1284 = vpack.c.b16 %v1281, %v1280
        %v1285 = vpack.c.b16 %v1283, %v1282
        %v1289 = vsel %vm1024, %v1264, 0
        %1291 = vmatprep.subr.bf16.mxu0 0
        %1292 = vmatpush1.bf16.msra.mxu0 %v1284
        %1293 = vmatprep.subr.bf16.mxu0 0
        %1294 = vmatpush1.bf16.msra.mxu0 %v1285
        %1295 = vmatprep.subr.bf16.mxu0 0
        %1296 = vmatpush1.bf16.msra.mxu0 0
        %1297 = vmatprep.subr.bf16.mxu0 0
        %1298 = vmatpush1.bf16.msra.mxu0 0
        %1299 = vmatprep.subr.bf16.mxu0 0
        %1300 = vmatpush1.bf16.msra.mxu0 0
        %1301 = vmatprep.subr.bf16.mxu0 0
        %1302 = vmatpush1.bf16.msra.mxu0 0
        %1303 = vmatprep.subr.bf16.mxu0 0
        %1304 = vmatpush1.bf16.msra.mxu0 0
        %1305 = vmatprep.subr.bf16.mxu0 0
        %1306 = vmatpush1.bf16.msra.mxu0 0
        %1307 = vmatprep.subr.bf16.mxu0 0
        %1308 = vmatpush1.bf16.msra.mxu0 0
        %1309 = vmatprep.subr.bf16.mxu0 0
        %1310 = vmatpush1.bf16.msra.mxu0 0
        %1311 = vmatprep.subr.bf16.mxu0 0
        %1312 = vmatpush1.bf16.msra.mxu0 0
        %1313 = vmatprep.subr.bf16.mxu0 0
        %1314 = vmatpush1.bf16.msra.mxu0 0
        %1315 = vmatprep.subr.bf16.mxu0 0
        %1316 = vmatpush1.bf16.msra.mxu0 0
        %1317 = vmatprep.subr.bf16.mxu0 0
        %1318 = vmatpush1.bf16.msra.mxu0 0
        %1319 = vmatprep.subr.bf16.mxu0 0
        %1320 = vmatpush1.bf16.msra.mxu0 0
        %1321 = vmatprep.subr.bf16.mxu0 0
        %1322 = vmatpush1.bf16.msra.mxu0 0
        %1323 = vmatprep.mubr.bf16.mxu0 0
        %1324 = vmatmul.mubr.bf16.gmra.mrb[0].mxu0 %v1289
        %v1325 = vpop.f32.mrb[0].mxu0
        %v1326 = vadd.f32 %v1274, %v1325
        %v1327 = vpop.f32.mrb[0].mxu0
        %v1328 = vpop.f32.mrb[0].mxu0
        %v1329 = vpop.f32.mrb[0].mxu0
        %1330 = vdwg.mxu0
        %v1331 = vmax.f32 %v1326, 0.0
        %v1332 = vpack.c.bf16 %v1331, %v1331
        %v1333 = vld [vmem:[%s17] sm:$0xf]
        %v1334 = vld [vmem:[%s17 + $0x4] sm:$0xf]
        %v1335 = vld [vmem:[%s17 + $0x8] sm:$0xf]
        %v1336 = vld [vmem:[%s17 + $0xc] sm:$0xf]
        %v1337 = vld [vmem:[%s17 + $0x10] sm:$0xf]
        %v1338 = vld [vmem:[%s17 + $0x14] sm:$0xf]
        %v1339 = vld [vmem:[%s17 + $0x18] sm:$0xf]
        %v1340 = vld [vmem:[%s17 + $0x1c] sm:$0xf]
        %v1341 = vld [vmem:[%s17 + $0x20] sm:$0xf]
        %v1342 = vld [vmem:[%s17 + $0x24] sm:$0xf]
        %v1343 = vld [vmem:[%s17 + $0x28] sm:$0xf]
        %v1344 = vld [vmem:[%s17 + $0x2c] sm:$0xf]
        %v1345 = vld [vmem:[%s17 + $0x30] sm:$0xf]
        %v1346 = vld [vmem:[%s17 + $0x34] sm:$0xf]
        %v1347 = vld [vmem:[%s17 + $0x38] sm:$0xf]
        %v1348 = vld [vmem:[%s17 + $0x3c] sm:$0xf]
        %v1349 = vld [vmem:[%s19] sm:$0x1]
        %v1351 = vlaneseq
        %v1352 = vshrl.u32 %v1351, 7
        %v1353 = vsub.s32 0, %v1352
        %v1354 = vrot.slane %v1349, %v1353
        %v1372 = vunpack.c.l.b16 %v1333
        %v1373 = vunpack.c.l.b16 %v1334
        %v1374 = vunpack.c.l.b16 %v1335
        %v1375 = vunpack.c.l.b16 %v1336
        %v1376 = vunpack.c.l.b16 %v1337
        %v1377 = vunpack.c.l.b16 %v1338
        %v1378 = vunpack.c.l.b16 %v1339
        %v1379 = vunpack.c.l.b16 %v1340
        %v1380 = vunpack.c.l.b16 %v1341
        %v1381 = vunpack.c.l.b16 %v1342
        %v1382 = vunpack.c.l.b16 %v1343
        %v1383 = vunpack.c.l.b16 %v1344
        %v1384 = vunpack.c.l.b16 %v1345
        %v1385 = vunpack.c.l.b16 %v1346
        %v1386 = vunpack.c.l.b16 %v1347
        %v1387 = vunpack.c.l.b16 %v1348
        %v1388 = vpack.c.b16 %v1373, %v1372
        %v1389 = vpack.c.b16 %v1375, %v1374
        %v1390 = vpack.c.b16 %v1377, %v1376
        %v1391 = vpack.c.b16 %v1379, %v1378
        %v1392 = vpack.c.b16 %v1381, %v1380
        %v1393 = vpack.c.b16 %v1383, %v1382
        %v1394 = vpack.c.b16 %v1385, %v1384
        %v1395 = vpack.c.b16 %v1387, %v1386
        %1404 = vmatprep.subr.bf16.mxu0 0
        %1405 = vmatpush1.bf16.msra.mxu0 %v1388
        %1406 = vmatprep.subr.bf16.mxu0 0
        %1407 = vmatpush1.bf16.msra.mxu0 %v1389
        %1408 = vmatprep.subr.bf16.mxu0 0
        %1409 = vmatpush1.bf16.msra.mxu0 %v1390
        %1410 = vmatprep.subr.bf16.mxu0 0
        %1411 = vmatpush1.bf16.msra.mxu0 %v1391
        %1412 = vmatprep.subr.bf16.mxu0 0
        %1413 = vmatpush1.bf16.msra.mxu0 %v1392
        %1414 = vmatprep.subr.bf16.mxu0 0
        %1415 = vmatpush1.bf16.msra.mxu0 %v1393
        %1416 = vmatprep.subr.bf16.mxu0 0
        %1417 = vmatpush1.bf16.msra.mxu0 %v1394
        %1418 = vmatprep.subr.bf16.mxu0 0
        %1419 = vmatpush1.bf16.msra.mxu0 %v1395
        %1420 = vmatprep.subr.bf16.mxu0 0
        %1421 = vmatpush1.bf16.msra.mxu0 0
        %1422 = vmatprep.subr.bf16.mxu0 0
        %1423 = vmatpush1.bf16.msra.mxu0 0
        %1424 = vmatprep.subr.bf16.mxu0 0
        %1425 = vmatpush1.bf16.msra.mxu0 0
        %1426 = vmatprep.subr.bf16.mxu0 0
        %1427 = vmatpush1.bf16.msra.mxu0 0
        %1428 = vmatprep.subr.bf16.mxu0 0
        %1429 = vmatpush1.bf16.msra.mxu0 0
        %1430 = vmatprep.subr.bf16.mxu0 0
        %1431 = vmatpush1.bf16.msra.mxu0 0
        %1432 = vmatprep.subr.bf16.mxu0 0
        %1433 = vmatpush1.bf16.msra.mxu0 0
        %1434 = vmatprep.subr.bf16.mxu0 0
        %1435 = vmatpush1.bf16.msra.mxu0 0
        %1436 = vmatprep.mubr.bf16.mxu0 0
        %1437 = vmatmul.mubr.bf16.gmra.mrb[0].mxu0 %v1332
        %v1438 = vpop.f32.mrb[0].mxu0
        %v1439 = vadd.f32 %v1354, %v1438
        %v1440 = vpop.f32.mrb[0].mxu0
        %v1441 = vpop.f32.mrb[0].mxu0
        %v1442 = vpop.f32.mrb[0].mxu0
        %1443 = vdwg.mxu0
        %v1444 = vrot.slane %v1263, 7
        %v1445 = vsel %vm1051, %v1444, 0.0
        %v1446 = vpack.c.bf16 %v1445, %v1445
        %v1447 = vld [vmem:[%s21] sm:$0xf]
        %v1448 = vld [vmem:[%s21 + $0x4] sm:$0xf]
        %v1449 = vld [vmem:[%s21 + $0x8] sm:$0xf]
        %v1450 = vld [vmem:[%s21 + $0xc] sm:$0xf]
        %s1451 = scalar_lea.vmem %s21, 16
        %v1452 = vld [vmem:[%s1451] sm:$0xf]
        %v1453 = vld [vmem:[%s1451 + $0x4] sm:$0xf]
        %v1454 = vld [vmem:[%s1451 + $0x8] sm:$0xf]
        %v1455 = vld [vmem:[%s1451 + $0xc] sm:$0xf]
        %v1460 = vunpack.c.l.b16 %v1452
        %v1461 = vunpack.c.l.b16 %v1453
        %v1462 = vunpack.c.l.b16 %v1454
        %v1463 = vunpack.c.l.b16 %v1455
        %v1464 = vpack.c.b16 %v1461, %v1460
        %v1465 = vpack.c.b16 %v1463, %v1462
        %1468 = vmatprep.subr.bf16.mxu0 0
        %1469 = vmatpush1.bf16.msra.mxu0 %v1464
        %1470 = vmatprep.subr.bf16.mxu0 0
        %1471 = vmatpush1.bf16.msra.mxu0 %v1465
        %1472 = vmatprep.subr.bf16.mxu0 0
        %1473 = vmatpush1.bf16.msra.mxu0 0
        %1474 = vmatprep.subr.bf16.mxu0 0
        %1475 = vmatpush1.bf16.msra.mxu0 0
        %1476 = vmatprep.subr.bf16.mxu0 0
        %1477 = vmatpush1.bf16.msra.mxu0 0
        %1478 = vmatprep.subr.bf16.mxu0 0
        %1479 = vmatpush1.bf16.msra.mxu0 0
        %1480 = vmatprep.subr.bf16.mxu0 0
        %1481 = vmatpush1.bf16.msra.mxu0 0
        %1482 = vmatprep.subr.bf16.mxu0 0
        %1483 = vmatpush1.bf16.msra.mxu0 0
        %1484 = vmatprep.subr.bf16.mxu0 0
        %1485 = vmatpush1.bf16.msra.mxu0 0
        %1486 = vmatprep.subr.bf16.mxu0 0
        %1487 = vmatpush1.bf16.msra.mxu0 0
        %1488 = vmatprep.subr.bf16.mxu0 0
        %1489 = vmatpush1.bf16.msra.mxu0 0
        %1490 = vmatprep.subr.bf16.mxu0 0
        %1491 = vmatpush1.bf16.msra.mxu0 0
        %1492 = vmatprep.subr.bf16.mxu0 0
        %1493 = vmatpush1.bf16.msra.mxu0 0
        %1494 = vmatprep.subr.bf16.mxu0 0
        %1495 = vmatpush1.bf16.msra.mxu0 0
        %1496 = vmatprep.subr.bf16.mxu0 0
        %1497 = vmatpush1.bf16.msra.mxu0 0
        %1498 = vmatprep.subr.bf16.mxu0 0
        %1499 = vmatpush1.bf16.msra.mxu0 0
        %1500 = vmatprep.mubr.bf16.mxu0 0
        %1501 = vmatmul.mubr.bf16.gmra.mrb[0].mxu0 %v1289
        %v1502 = vpop.f32.mrb[0].mxu0
        %v1503 = vadd.f32 0.0, %v1502
        %v1504 = vpop.f32.mrb[0].mxu0
        %v1505 = vpop.f32.mrb[0].mxu0
        %v1506 = vpop.f32.mrb[0].mxu0
        %1507 = vdwg.mxu0
        %v1512 = vunpack.c.l.b16 %v1447
        %v1513 = vunpack.c.l.b16 %v1448
        %v1514 = vunpack.c.l.b16 %v1449
        %v1515 = vunpack.c.l.b16 %v1450
        %v1516 = vpack.c.b16 %v1513, %v1512
        %v1517 = vpack.c.b16 %v1515, %v1514
        %v1521 = vsel %vm1024, %v1446, 0
        %1523 = vmatprep.subr.bf16.mxu0 0
        %1524 = vmatpush1.bf16.msra.mxu0 %v1516
        %1525 = vmatprep.subr.bf16.mxu0 0
        %1526 = vmatpush1.bf16.msra.mxu0 %v1517
        %1527 = vmatprep.subr.bf16.mxu0 0
        %1528 = vmatpush1.bf16.msra.mxu0 0
        %1529 = vmatprep.subr.bf16.mxu0 0
        %1530 = vmatpush1.bf16.msra.mxu0 0
        %1531 = vmatprep.subr.bf16.mxu0 0
        %1532 = vmatpush1.bf16.msra.mxu0 0
        %1533 = vmatprep.subr.bf16.mxu0 0
        %1534 = vmatpush1.bf16.msra.mxu0 0
        %1535 = vmatprep.subr.bf16.mxu0 0
        %1536 = vmatpush1.bf16.msra.mxu0 0
        %1537 = vmatprep.subr.bf16.mxu0 0
        %1538 = vmatpush1.bf16.msra.mxu0 0
        %1539 = vmatprep.subr.bf16.mxu0 0
        %1540 = vmatpush1.bf16.msra.mxu0 0
        %1541 = vmatprep.subr.bf16.mxu0 0
        %1542 = vmatpush1.bf16.msra.mxu0 0
        %1543 = vmatprep.subr.bf16.mxu0 0
        %1544 = vmatpush1.bf16.msra.mxu0 0
        %1545 = vmatprep.subr.bf16.mxu0 0
        %1546 = vmatpush1.bf16.msra.mxu0 0
        %1547 = vmatprep.subr.bf16.mxu0 0
        %1548 = vmatpush1.bf16.msra.mxu0 0
        %1549 = vmatprep.subr.bf16.mxu0 0
        %1550 = vmatpush1.bf16.msra.mxu0 0
        %1551 = vmatprep.subr.bf16.mxu0 0
        %1552 = vmatpush1.bf16.msra.mxu0 0
        %1553 = vmatprep.subr.bf16.mxu0 0
        %1554 = vmatpush1.bf16.msra.mxu0 0
        %1555 = vmatprep.mubr.bf16.mxu0 0
        %1556 = vmatmul.mubr.bf16.gmra.mrb[0].mxu0 %v1521
        %v1557 = vpop.f32.mrb[0].mxu0
        %v1558 = vadd.f32 %v1503, %v1557
        %v1559 = vpop.f32.mrb[0].mxu0
        %v1560 = vpop.f32.mrb[0].mxu0
        %v1561 = vpop.f32.mrb[0].mxu0
        %1562 = vdwg.mxu0
        %v1563 = vrot.slane %v1263, 1
        %vm1564 = vcmp.lt.s32.totalorder %v1018, 7
        %v1565 = vsel %vm1564, 1, 0
        %vm1566 = vcmp.eq.s32.totalorder %v1565, 1
        %v1567 = vsel %vm1566, %v1563, 0.0
        %v1568 = vpack.c.bf16 %v1567, %v1567
        %s1569 = scalar_lea.vmem %s21, 32
        %v1570 = vld [vmem:[%s1569] sm:$0xf]
        %v1571 = vld [vmem:[%s1569 + $0x4] sm:$0xf]
        %v1572 = vld [vmem:[%s1569 + $0x8] sm:$0xf]
        %v1573 = vld [vmem:[%s1569 + $0xc] sm:$0xf]
        %v1578 = vunpack.c.l.b16 %v1570
        %v1579 = vunpack.c.l.b16 %v1571
        %v1580 = vunpack.c.l.b16 %v1572
        %v1581 = vunpack.c.l.b16 %v1573
        %v1582 = vpack.c.b16 %v1579, %v1578
        %v1583 = vpack.c.b16 %v1581, %v1580
        %v1587 = vsel %vm1024, %v1568, 0
        %1589 = vmatprep.subr.bf16.mxu0 0
        %1590 = vmatpush1.bf16.msra.mxu0 %v1582
        %1591 = vmatprep.subr.bf16.mxu0 0
        %1592 = vmatpush1.bf16.msra.mxu0 %v1583
        %1593 = vmatprep.subr.bf16.mxu0 0
        %1594 = vmatpush1.bf16.msra.mxu0 0
        %1595 = vmatprep.subr.bf16.mxu0 0
        %1596 = vmatpush1.bf16.msra.mxu0 0
        %1597 = vmatprep.subr.bf16.mxu0 0
        %1598 = vmatpush1.bf16.msra.mxu0 0
        %1599 = vmatprep.subr.bf16.mxu0 0
        %1600 = vmatpush1.bf16.msra.mxu0 0
        %1601 = vmatprep.subr.bf16.mxu0 0
        %1602 = vmatpush1.bf16.msra.mxu0 0
        %1603 = vmatprep.subr.bf16.mxu0 0
        %1604 = vmatpush1.bf16.msra.mxu0 0
        %1605 = vmatprep.subr.bf16.mxu0 0
        %1606 = vmatpush1.bf16.msra.mxu0 0
        %1607 = vmatprep.subr.bf16.mxu0 0
        %1608 = vmatpush1.bf16.msra.mxu0 0
        %1609 = vmatprep.subr.bf16.mxu0 0
        %1610 = vmatpush1.bf16.msra.mxu0 0
        %1611 = vmatprep.subr.bf16.mxu0 0
        %1612 = vmatpush1.bf16.msra.mxu0 0
        %1613 = vmatprep.subr.bf16.mxu0 0
        %1614 = vmatpush1.bf16.msra.mxu0 0
        %1615 = vmatprep.subr.bf16.mxu0 0
        %1616 = vmatpush1.bf16.msra.mxu0 0
        %1617 = vmatprep.subr.bf16.mxu0 0
        %1618 = vmatpush1.bf16.msra.mxu0 0
        %1619 = vmatprep.subr.bf16.mxu0 0
        %1620 = vmatpush1.bf16.msra.mxu0 0
        %1621 = vmatprep.mubr.bf16.mxu0 0
        %1622 = vmatmul.mubr.bf16.gmra.mrb[0].mxu0 %v1587
        %v1623 = vpop.f32.mrb[0].mxu0
        %v1624 = vadd.f32 0.0, %v1623
        %v1625 = vpop.f32.mrb[0].mxu0
        %v1626 = vpop.f32.mrb[0].mxu0
        %v1627 = vpop.f32.mrb[0].mxu0
        %1628 = vdwg.mxu0
        %v1629 = vadd.f32 %v1558, %v1624
        %v1630 = vld [vmem:[%s23] sm:$0x1]
        %v1632 = vlaneseq
        %v1633 = vshrl.u32 %v1632, 7
        %v1634 = vsub.s32 0, %v1633
        %v1635 = vrot.slane %v1630, %v1634
        %v1637 = vadd.f32 %v1629, %v1635
        %v1638 = vmax.f32 %v1637, 0.0
        %v1639 = vpack.c.bf16 %v1638, %v1638
        %v1640 = vld [vmem:[%s25] sm:$0xf]
        %v1641 = vld [vmem:[%s25 + $0x4] sm:$0xf]
        %v1642 = vld [vmem:[%s25 + $0x8] sm:$0xf]
        %v1643 = vld [vmem:[%s25 + $0xc] sm:$0xf]
        %v1644 = vld [vmem:[%s25 + $0x10] sm:$0xf]
        %v1645 = vld [vmem:[%s25 + $0x14] sm:$0xf]
        %v1646 = vld [vmem:[%s25 + $0x18] sm:$0xf]
        %v1647 = vld [vmem:[%s25 + $0x1c] sm:$0xf]
        %v1648 = vld [vmem:[%s25 + $0x20] sm:$0xf]
        %v1649 = vld [vmem:[%s25 + $0x24] sm:$0xf]
        %v1650 = vld [vmem:[%s25 + $0x28] sm:$0xf]
        %v1651 = vld [vmem:[%s25 + $0x2c] sm:$0xf]
        %v1652 = vld [vmem:[%s25 + $0x30] sm:$0xf]
        %v1653 = vld [vmem:[%s25 + $0x34] sm:$0xf]
        %v1654 = vld [vmem:[%s25 + $0x38] sm:$0xf]
        %v1655 = vld [vmem:[%s25 + $0x3c] sm:$0xf]
        %v1656 = vld [vmem:[%s27] sm:$0x1]
        %v1658 = vlaneseq
        %v1659 = vshrl.u32 %v1658, 7
        %v1660 = vsub.s32 0, %v1659
        %v1661 = vrot.slane %v1656, %v1660
        %v1679 = vunpack.c.l.b16 %v1640
        %v1680 = vunpack.c.l.b16 %v1641
        %v1681 = vunpack.c.l.b16 %v1642
        %v1682 = vunpack.c.l.b16 %v1643
        %v1683 = vunpack.c.l.b16 %v1644
        %v1684 = vunpack.c.l.b16 %v1645
        %v1685 = vunpack.c.l.b16 %v1646
        %v1686 = vunpack.c.l.b16 %v1647
        %v1687 = vunpack.c.l.b16 %v1648
        %v1688 = vunpack.c.l.b16 %v1649
        %v1689 = vunpack.c.l.b16 %v1650
        %v1690 = vunpack.c.l.b16 %v1651
        %v1691 = vunpack.c.l.b16 %v1652
        %v1692 = vunpack.c.l.b16 %v1653
        %v1693 = vunpack.c.l.b16 %v1654
        %v1694 = vunpack.c.l.b16 %v1655
        %v1695 = vpack.c.b16 %v1680, %v1679
        %v1696 = vpack.c.b16 %v1682, %v1681
        %v1697 = vpack.c.b16 %v1684, %v1683
        %v1698 = vpack.c.b16 %v1686, %v1685
        %v1699 = vpack.c.b16 %v1688, %v1687
        %v1700 = vpack.c.b16 %v1690, %v1689
        %v1701 = vpack.c.b16 %v1692, %v1691
        %v1702 = vpack.c.b16 %v1694, %v1693
        %1711 = vmatprep.subr.bf16.mxu0 0
        %1712 = vmatpush1.bf16.msra.mxu0 %v1695
        %1713 = vmatprep.subr.bf16.mxu0 0
        %1714 = vmatpush1.bf16.msra.mxu0 %v1696
        %1715 = vmatprep.subr.bf16.mxu0 0
        %1716 = vmatpush1.bf16.msra.mxu0 %v1697
        %1717 = vmatprep.subr.bf16.mxu0 0
        %1718 = vmatpush1.bf16.msra.mxu0 %v1698
        %1719 = vmatprep.subr.bf16.mxu0 0
        %1720 = vmatpush1.bf16.msra.mxu0 %v1699
        %1721 = vmatprep.subr.bf16.mxu0 0
        %1722 = vmatpush1.bf16.msra.mxu0 %v1700
        %1723 = vmatprep.subr.bf16.mxu0 0
        %1724 = vmatpush1.bf16.msra.mxu0 %v1701
        %1725 = vmatprep.subr.bf16.mxu0 0
        %1726 = vmatpush1.bf16.msra.mxu0 %v1702
        %1727 = vmatprep.subr.bf16.mxu0 0
        %1728 = vmatpush1.bf16.msra.mxu0 0
        %1729 = vmatprep.subr.bf16.mxu0 0
        %1730 = vmatpush1.bf16.msra.mxu0 0
        %1731 = vmatprep.subr.bf16.mxu0 0
        %1732 = vmatpush1.bf16.msra.mxu0 0
        %1733 = vmatprep.subr.bf16.mxu0 0
        %1734 = vmatpush1.bf16.msra.mxu0 0
        %1735 = vmatprep.subr.bf16.mxu0 0
        %1736 = vmatpush1.bf16.msra.mxu0 0
        %1737 = vmatprep.subr.bf16.mxu0 0
        %1738 = vmatpush1.bf16.msra.mxu0 0
        %1739 = vmatprep.subr.bf16.mxu0 0
        %1740 = vmatpush1.bf16.msra.mxu0 0
        %1741 = vmatprep.subr.bf16.mxu0 0
        %1742 = vmatpush1.bf16.msra.mxu0 0
        %1743 = vmatprep.mubr.bf16.mxu0 0
        %1744 = vmatmul.mubr.bf16.gmra.mrb[0].mxu0 %v1639
        %v1745 = vpop.f32.mrb[0].mxu0
        %v1746 = vadd.f32 %v1661, %v1745
        %v1747 = vpop.f32.mrb[0].mxu0
        %v1748 = vpop.f32.mrb[0].mxu0
        %v1749 = vpop.f32.mrb[0].mxu0
        %1750 = vdwg.mxu0
        %v1751 = vadd.f32 %v1439, %v1746
        %v1752 = vld [vmem:[%s7 + $0x2] sm:$0x1]
        %v1753 = vmul.f32 %v1751, %v1751
        %v1754 = vsel %vm1024, %v1753, 0.0
        %1755 = vadd.xlane.f32.xlu0 %v1754
        %v1756 = vpop.xlane.xlu0 %1755
        %v1757 = vmax.f32 %v1756, 3.2e-15
        %v1758 = vrsqrt.pop %v1757
        %v1759 = vmul.f32 %v1758, 5.656854
        %v1760 = vmul.f32 %v1751, %v1759
        %v1761 = vlaneseq
        %v1762 = vshrl.u32 %v1761, 7
        %v1763 = vsub.s32 0, %v1762
        %v1764 = vrot.slane %v1752, %v1763
        %v1765 = vmul.f32 %v1760, %v1764
        %v1766 = vpack.c.bf16 %v1765, %v1765
        %v1767 = vld [vmem:[%s29] sm:$0xf]
        %v1768 = vld [vmem:[%s29 + $0x4] sm:$0xf]
        %v1769 = vld [vmem:[%s29 + $0x8] sm:$0xf]
        %v1770 = vld [vmem:[%s29 + $0xc] sm:$0xf]
        %v1771 = vld [vmem:[%s31] sm:$0x1]
        %v1773 = vlaneseq
        %v1774 = vshrl.u32 %v1773, 7
        %v1775 = vsub.s32 0, %v1774
        %v1776 = vrot.slane %v1771, %v1775
        %v1782 = vunpack.c.l.b16 %v1767
        %v1783 = vunpack.c.l.b16 %v1768
        %v1784 = vunpack.c.l.b16 %v1769
        %v1785 = vunpack.c.l.b16 %v1770
        %v1786 = vpack.c.b16 %v1783, %v1782
        %v1787 = vpack.c.b16 %v1785, %v1784
        %v1791 = vsel %vm1024, %v1766, 0
        %1793 = vmatprep.subr.bf16.mxu0 0
        %1794 = vmatpush1.bf16.msra.mxu0 %v1786
        %1795 = vmatprep.subr.bf16.mxu0 0
        %1796 = vmatpush1.bf16.msra.mxu0 %v1787
        %1797 = vmatprep.subr.bf16.mxu0 0
        %1798 = vmatpush1.bf16.msra.mxu0 0
        %1799 = vmatprep.subr.bf16.mxu0 0
        %1800 = vmatpush1.bf16.msra.mxu0 0
        %1801 = vmatprep.subr.bf16.mxu0 0
        %1802 = vmatpush1.bf16.msra.mxu0 0
        %1803 = vmatprep.subr.bf16.mxu0 0
        %1804 = vmatpush1.bf16.msra.mxu0 0
        %1805 = vmatprep.subr.bf16.mxu0 0
        %1806 = vmatpush1.bf16.msra.mxu0 0
        %1807 = vmatprep.subr.bf16.mxu0 0
        %1808 = vmatpush1.bf16.msra.mxu0 0
        %1809 = vmatprep.subr.bf16.mxu0 0
        %1810 = vmatpush1.bf16.msra.mxu0 0
        %1811 = vmatprep.subr.bf16.mxu0 0
        %1812 = vmatpush1.bf16.msra.mxu0 0
        %1813 = vmatprep.subr.bf16.mxu0 0
        %1814 = vmatpush1.bf16.msra.mxu0 0
        %1815 = vmatprep.subr.bf16.mxu0 0
        %1816 = vmatpush1.bf16.msra.mxu0 0
        %1817 = vmatprep.subr.bf16.mxu0 0
        %1818 = vmatpush1.bf16.msra.mxu0 0
        %1819 = vmatprep.subr.bf16.mxu0 0
        %1820 = vmatpush1.bf16.msra.mxu0 0
        %1821 = vmatprep.subr.bf16.mxu0 0
        %1822 = vmatpush1.bf16.msra.mxu0 0
        %1823 = vmatprep.subr.bf16.mxu0 0
        %1824 = vmatpush1.bf16.msra.mxu0 0
        %1825 = vmatprep.mubr.bf16.mxu0 0
        %1826 = vmatmul.mubr.bf16.gmra.mrb[0].mxu0 %v1791
        %v1827 = vpop.f32.mrb[0].mxu0
        %v1828 = vadd.f32 %v1776, %v1827
        %v1829 = vpop.f32.mrb[0].mxu0
        %v1830 = vpop.f32.mrb[0].mxu0
        %v1831 = vpop.f32.mrb[0].mxu0
        %1832 = vdwg.mxu0
        %vm1833 = vcmp.ge.s32.totalorder %v1018, 8
        %v1834 = vsel %vm1833, 1, 0
        %vm1835 = vcmp.eq.s32.totalorder %v1834, 1
        %v1836 = vsel %vm1835, %v1828, 0.0
        %v1837 = vld [vmem:[%s33] sm:$0x1]
        %v1838 = vlaneseq
        %v1839 = vshrl.u32 %v1838, 7
        %v1840 = vsub.s32 0, %v1839
        %v1841 = vrot.slane %v1837, %v1840
        %v1842 = vmul.f32 %v1836, %v1841
        %v1843 = vrot.slane %v1828, 1
        %vm1844 = vcmp.ge.s32.totalorder %v1018, 7
        %v1845 = vsel %vm1844, 1, 0
        %vm1846 = vcmp.eq.s32.totalorder %v1845, 1
        %v1847 = vsel %vm1846, %v1843, 0.0
        %v1848 = vld [vmem:[%s33 + $0x1] sm:$0x1]
        %v1849 = vlaneseq
        %v1850 = vshrl.u32 %v1849, 7
        %v1851 = vsub.s32 0, %v1850
        %v1852 = vrot.slane %v1848, %v1851
        %v1853 = vmul.f32 %v1847, %v1852
        %v1854 = vadd.f32 %v1842, %v1853
        %v1855 = vrot.slane %v1828, 2
        %vm1856 = vcmp.ge.s32.totalorder %v1018, 6
        %v1857 = vsel %vm1856, 1, 0
        %vm1858 = vcmp.eq.s32.totalorder %v1857, 1
        %v1859 = vsel %vm1858, %v1855, 0.0
        %v1860 = vld [vmem:[%s33 + $0x2] sm:$0x1]
        %v1861 = vlaneseq
        %v1862 = vshrl.u32 %v1861, 7
        %v1863 = vsub.s32 0, %v1862
        %v1864 = vrot.slane %v1860, %v1863
        %v1865 = vmul.f32 %v1859, %v1864
        %v1866 = vadd.f32 %v1854, %v1865
        %v1867 = vrot.slane %v1828, 3
        %vm1868 = vcmp.ge.s32.totalorder %v1018, 5
        %v1869 = vsel %vm1868, 1, 0
        %vm1870 = vcmp.eq.s32.totalorder %v1869, 1
        %v1871 = vsel %vm1870, %v1867, 0.0
        %v1872 = vld [vmem:[%s33 + $0x3] sm:$0x1]
        %v1873 = vlaneseq
        %v1874 = vshrl.u32 %v1873, 7
        %v1875 = vsub.s32 0, %v1874
        %v1876 = vrot.slane %v1872, %v1875
        %v1877 = vmul.f32 %v1871, %v1876
        %v1878 = vadd.f32 %v1866, %v1877
        %v1879 = vrot.slane %v1828, 4
        %vm1880 = vcmp.ge.s32.totalorder %v1018, 4
        %v1881 = vsel %vm1880, 1, 0
        %vm1882 = vcmp.eq.s32.totalorder %v1881, 1
        %v1883 = vsel %vm1882, %v1879, 0.0
        %v1884 = vld [vmem:[%s33 + $0x4] sm:$0x1]
        %v1885 = vlaneseq
        %v1886 = vshrl.u32 %v1885, 7
        %v1887 = vsub.s32 0, %v1886
        %v1888 = vrot.slane %v1884, %v1887
        %v1889 = vmul.f32 %v1883, %v1888
        %v1890 = vadd.f32 %v1878, %v1889
        %v1891 = vrot.slane %v1828, 5
        %vm1892 = vcmp.ge.s32.totalorder %v1018, 3
        %v1893 = vsel %vm1892, 1, 0
        %vm1894 = vcmp.eq.s32.totalorder %v1893, 1
        %v1895 = vsel %vm1894, %v1891, 0.0
        %v1896 = vld [vmem:[%s33 + $0x5] sm:$0x1]
        %v1897 = vlaneseq
        %v1898 = vshrl.u32 %v1897, 7
        %v1899 = vsub.s32 0, %v1898
        %v1900 = vrot.slane %v1896, %v1899
        %v1901 = vmul.f32 %v1895, %v1900
        %v1902 = vadd.f32 %v1890, %v1901
        %v1903 = vrot.slane %v1828, 6
        %v1904 = vsel %vm1041, %v1903, 0.0
        %v1905 = vld [vmem:[%s33 + $0x6] sm:$0x1]
        %v1906 = vlaneseq
        %v1907 = vshrl.u32 %v1906, 7
        %v1908 = vsub.s32 0, %v1907
        %v1909 = vrot.slane %v1905, %v1908
        %v1910 = vmul.f32 %v1904, %v1909
        %v1911 = vadd.f32 %v1902, %v1910
        %v1912 = vrot.slane %v1828, 7
        %v1913 = vsel %vm1051, %v1912, 0.0
        %v1914 = vld [vmem:[%s33 + $0x7] sm:$0x1]
        %v1915 = vlaneseq
        %v1916 = vshrl.u32 %v1915, 7
        %v1917 = vsub.s32 0, %v1916
        %v1918 = vrot.slane %v1914, %v1917
        %v1919 = vmul.f32 %v1913, %v1918
        %v1920 = vadd.f32 %v1911, %v1919
        %v1921 = vld [vmem:[%s33 + $0x8] sm:$0x1]
        %v1922 = vlaneseq
        %v1923 = vshrl.u32 %v1922, 7
        %v1924 = vsub.s32 0, %v1923
        %v1925 = vrot.slane %v1921, %v1924
        %v1926 = vmul.f32 %v1828, %v1925
        %v1927 = vadd.f32 %v1920, %v1926
        %v1928 = vld [vmem:[%s35] sm:$0x1]
        %v1930 = vlaneseq
        %v1931 = vshrl.u32 %v1930, 7
        %v1932 = vsub.s32 0, %v1931
        %v1933 = vrot.slane %v1928, %v1932
        %v1935 = vadd.f32 %v1927, %v1933
        %v1936 = vpack.c.bf16 %v1935, %v1935
        %v1937 = vld [vmem:[%s37] sm:$0xf]
        %v1938 = vld [vmem:[%s37 + $0x4] sm:$0xf]
        %v1939 = vld [vmem:[%s37 + $0x8] sm:$0xf]
        %v1940 = vld [vmem:[%s37 + $0xc] sm:$0xf]
        %v1941 = vld [vmem:[%s37 + $0x10] sm:$0xf]
        %v1942 = vld [vmem:[%s37 + $0x14] sm:$0xf]
        %v1943 = vld [vmem:[%s37 + $0x18] sm:$0xf]
        %v1944 = vld [vmem:[%s37 + $0x1c] sm:$0xf]
        %v1945 = vld [vmem:[%s37 + $0x20] sm:$0xf]
        %v1946 = vld [vmem:[%s37 + $0x24] sm:$0xf]
        %v1947 = vld [vmem:[%s37 + $0x28] sm:$0xf]
        %v1948 = vld [vmem:[%s37 + $0x2c] sm:$0xf]
        %v1949 = vld [vmem:[%s37 + $0x30] sm:$0xf]
        %v1950 = vld [vmem:[%s37 + $0x34] sm:$0xf]
        %v1951 = vld [vmem:[%s37 + $0x38] sm:$0xf]
        %v1952 = vld [vmem:[%s37 + $0x3c] sm:$0xf]
        %v1953 = vld [vmem:[%s39] sm:$0x1]
        %v1955 = vlaneseq
        %v1956 = vshrl.u32 %v1955, 7
        %v1957 = vsub.s32 0, %v1956
        %v1958 = vrot.slane %v1953, %v1957
        %v1976 = vunpack.c.l.b16 %v1937
        %v1977 = vunpack.c.l.b16 %v1938
        %v1978 = vunpack.c.l.b16 %v1939
        %v1979 = vunpack.c.l.b16 %v1940
        %v1980 = vunpack.c.l.b16 %v1941
        %v1981 = vunpack.c.l.b16 %v1942
        %v1982 = vunpack.c.l.b16 %v1943
        %v1983 = vunpack.c.l.b16 %v1944
        %v1984 = vunpack.c.l.b16 %v1945
        %v1985 = vunpack.c.l.b16 %v1946
        %v1986 = vunpack.c.l.b16 %v1947
        %v1987 = vunpack.c.l.b16 %v1948
        %v1988 = vunpack.c.l.b16 %v1949
        %v1989 = vunpack.c.l.b16 %v1950
        %v1990 = vunpack.c.l.b16 %v1951
        %v1991 = vunpack.c.l.b16 %v1952
        %v1992 = vpack.c.b16 %v1977, %v1976
        %v1993 = vpack.c.b16 %v1979, %v1978
        %v1994 = vpack.c.b16 %v1981, %v1980
        %v1995 = vpack.c.b16 %v1983, %v1982
        %v1996 = vpack.c.b16 %v1985, %v1984
        %v1997 = vpack.c.b16 %v1987, %v1986
        %v1998 = vpack.c.b16 %v1989, %v1988
        %v1999 = vpack.c.b16 %v1991, %v1990
        %2008 = vmatprep.subr.bf16.mxu0 0
        %2009 = vmatpush1.bf16.msra.mxu0 %v1992
        %2010 = vmatprep.subr.bf16.mxu0 0
        %2011 = vmatpush1.bf16.msra.mxu0 %v1993
        %2012 = vmatprep.subr.bf16.mxu0 0
        %2013 = vmatpush1.bf16.msra.mxu0 %v1994
        %2014 = vmatprep.subr.bf16.mxu0 0
        %2015 = vmatpush1.bf16.msra.mxu0 %v1995
        %2016 = vmatprep.subr.bf16.mxu0 0
        %2017 = vmatpush1.bf16.msra.mxu0 %v1996
        %2018 = vmatprep.subr.bf16.mxu0 0
        %2019 = vmatpush1.bf16.msra.mxu0 %v1997
        %2020 = vmatprep.subr.bf16.mxu0 0
        %2021 = vmatpush1.bf16.msra.mxu0 %v1998
        %2022 = vmatprep.subr.bf16.mxu0 0
        %2023 = vmatpush1.bf16.msra.mxu0 %v1999
        %2024 = vmatprep.subr.bf16.mxu0 0
        %2025 = vmatpush1.bf16.msra.mxu0 0
        %2026 = vmatprep.subr.bf16.mxu0 0
        %2027 = vmatpush1.bf16.msra.mxu0 0
        %2028 = vmatprep.subr.bf16.mxu0 0
        %2029 = vmatpush1.bf16.msra.mxu0 0
        %2030 = vmatprep.subr.bf16.mxu0 0
        %2031 = vmatpush1.bf16.msra.mxu0 0
        %2032 = vmatprep.subr.bf16.mxu0 0
        %2033 = vmatpush1.bf16.msra.mxu0 0
        %2034 = vmatprep.subr.bf16.mxu0 0
        %2035 = vmatpush1.bf16.msra.mxu0 0
        %2036 = vmatprep.subr.bf16.mxu0 0
        %2037 = vmatpush1.bf16.msra.mxu0 0
        %2038 = vmatprep.subr.bf16.mxu0 0
        %2039 = vmatpush1.bf16.msra.mxu0 0
        %2040 = vmatprep.mubr.bf16.mxu0 0
        %2041 = vmatmul.mubr.bf16.gmra.mrb[0].mxu0 %v1936
        %v2042 = vpop.f32.mrb[0].mxu0
        %v2043 = vadd.f32 %v1958, %v2042
        %v2044 = vpop.f32.mrb[0].mxu0
        %v2045 = vpop.f32.mrb[0].mxu0
        %v2046 = vpop.f32.mrb[0].mxu0
        %2047 = vdwg.mxu0
        %v2048 = vadd.f32 %v2043, %v1249
        %v2049 = vld [vmem:[%s7 + $0x3] sm:$0x1]
        %v2050 = vmul.f32 %v2048, %v2048
        %v2051 = vsel %vm1024, %v2050, 0.0
        %2052 = vadd.xlane.f32.xlu0 %v2051
        %v2053 = vpop.xlane.xlu0 %2052
        %v2054 = vmax.f32 %v2053, 3.2e-15
        %v2055 = vrsqrt.pop %v2054
        %v2056 = vmul.f32 %v2055, 5.656854
        %v2057 = vmul.f32 %v2048, %v2056
        %v2058 = vlaneseq
        %v2059 = vshrl.u32 %v2058, 7
        %v2060 = vsub.s32 0, %v2059
        %v2061 = vrot.slane %v2049, %v2060
        %v2062 = vmul.f32 %v2057, %v2061
        %v2063 = vpack.c.bf16 %v2062, %v2062
        %v2064 = vld [vmem:[%s41] sm:$0xf]
        %v2065 = vld [vmem:[%s41 + $0x4] sm:$0xf]
        %v2066 = vld [vmem:[%s41 + $0x8] sm:$0xf]
        %v2067 = vld [vmem:[%s41 + $0xc] sm:$0xf]
        %v2068 = vld [vmem:[%s47] sm:$0x1]
        %v2070 = vlaneseq
        %v2071 = vshrl.u32 %v2070, 7
        %v2072 = vsub.s32 0, %v2071
        %v2073 = vrot.slane %v2068, %v2072
        %v2079 = vunpack.c.l.b16 %v2064
        %v2080 = vunpack.c.l.b16 %v2065
        %v2081 = vunpack.c.l.b16 %v2066
        %v2082 = vunpack.c.l.b16 %v2067
        %v2083 = vpack.c.b16 %v2080, %v2079
        %v2084 = vpack.c.b16 %v2082, %v2081
        %v2088 = vsel %vm1024, %v2063, 0
        %2090 = vmatprep.subr.bf16.mxu0 0
        %2091 = vmatpush1.bf16.msra.mxu0 %v2083
        %2092 = vmatprep.subr.bf16.mxu0 0
        %2093 = vmatpush1.bf16.msra.mxu0 %v2084
        %2094 = vmatprep.subr.bf16.mxu0 0
        %2095 = vmatpush1.bf16.msra.mxu0 0
        %2096 = vmatprep.subr.bf16.mxu0 0
        %2097 = vmatpush1.bf16.msra.mxu0 0
        %2098 = vmatprep.subr.bf16.mxu0 0
        %2099 = vmatpush1.bf16.msra.mxu0 0
        %2100 = vmatprep.subr.bf16.mxu0 0
        %2101 = vmatpush1.bf16.msra.mxu0 0
        %2102 = vmatprep.subr.bf16.mxu0 0
        %2103 = vmatpush1.bf16.msra.mxu0 0
        %2104 = vmatprep.subr.bf16.mxu0 0
        %2105 = vmatpush1.bf16.msra.mxu0 0
        %2106 = vmatprep.subr.bf16.mxu0 0
        %2107 = vmatpush1.bf16.msra.mxu0 0
        %2108 = vmatprep.subr.bf16.mxu0 0
        %2109 = vmatpush1.bf16.msra.mxu0 0
        %2110 = vmatprep.subr.bf16.mxu0 0
        %2111 = vmatpush1.bf16.msra.mxu0 0
        %2112 = vmatprep.subr.bf16.mxu0 0
        %2113 = vmatpush1.bf16.msra.mxu0 0
        %2114 = vmatprep.subr.bf16.mxu0 0
        %2115 = vmatpush1.bf16.msra.mxu0 0
        %2116 = vmatprep.subr.bf16.mxu0 0
        %2117 = vmatpush1.bf16.msra.mxu0 0
        %2118 = vmatprep.subr.bf16.mxu0 0
        %2119 = vmatpush1.bf16.msra.mxu0 0
        %2120 = vmatprep.subr.bf16.mxu0 0
        %2121 = vmatpush1.bf16.msra.mxu0 0
        %2122 = vmatprep.mubr.bf16.mxu0 0
        %2123 = vmatmul.mubr.bf16.gmra.mrb[0].mxu0 %v2088
        %v2124 = vpop.f32.mrb[0].mxu0
        %v2125 = vadd.f32 %v2073, %v2124
        %v2126 = vpop.f32.mrb[0].mxu0
        %v2127 = vpop.f32.mrb[0].mxu0
        %v2128 = vpop.f32.mrb[0].mxu0
        %2129 = vdwg.mxu0
        %v2130 = vpack.c.bf16 %v2125, %v2125
        %v2131 = vld [vmem:[%s43] sm:$0xf]
        %v2132 = vld [vmem:[%s43 + $0x4] sm:$0xf]
        %v2133 = vld [vmem:[%s43 + $0x8] sm:$0xf]
        %v2134 = vld [vmem:[%s43 + $0xc] sm:$0xf]
        %v2135 = vld [vmem:[%s49] sm:$0x1]
        %v2137 = vlaneseq
        %v2138 = vshrl.u32 %v2137, 7
        %v2139 = vsub.s32 0, %v2138
        %v2140 = vrot.slane %v2135, %v2139
        %v2146 = vunpack.c.l.b16 %v2131
        %v2147 = vunpack.c.l.b16 %v2132
        %v2148 = vunpack.c.l.b16 %v2133
        %v2149 = vunpack.c.l.b16 %v2134
        %v2150 = vpack.c.b16 %v2147, %v2146
        %v2151 = vpack.c.b16 %v2149, %v2148
        %v2155 = vsel %vm1024, %v1020, 0
        %2157 = vmatprep.subr.bf16.mxu0 0
        %2158 = vmatpush1.bf16.msra.mxu0 %v2150
        %2159 = vmatprep.subr.bf16.mxu0 0
        %2160 = vmatpush1.bf16.msra.mxu0 %v2151
        %2161 = vmatprep.subr.bf16.mxu0 0
        %2162 = vmatpush1.bf16.msra.mxu0 0
        %2163 = vmatprep.subr.bf16.mxu0 0
        %2164 = vmatpush1.bf16.msra.mxu0 0
        %2165 = vmatprep.subr.bf16.mxu0 0
        %2166 = vmatpush1.bf16.msra.mxu0 0
        %2167 = vmatprep.subr.bf16.mxu0 0
        %2168 = vmatpush1.bf16.msra.mxu0 0
        %2169 = vmatprep.subr.bf16.mxu0 0
        %2170 = vmatpush1.bf16.msra.mxu0 0
        %2171 = vmatprep.subr.bf16.mxu0 0
        %2172 = vmatpush1.bf16.msra.mxu0 0
        %2173 = vmatprep.subr.bf16.mxu0 0
        %2174 = vmatpush1.bf16.msra.mxu0 0
        %2175 = vmatprep.subr.bf16.mxu0 0
        %2176 = vmatpush1.bf16.msra.mxu0 0
        %2177 = vmatprep.subr.bf16.mxu0 0
        %2178 = vmatpush1.bf16.msra.mxu0 0
        %2179 = vmatprep.subr.bf16.mxu0 0
        %2180 = vmatpush1.bf16.msra.mxu0 0
        %2181 = vmatprep.subr.bf16.mxu0 0
        %2182 = vmatpush1.bf16.msra.mxu0 0
        %2183 = vmatprep.subr.bf16.mxu0 0
        %2184 = vmatpush1.bf16.msra.mxu0 0
        %2185 = vmatprep.subr.bf16.mxu0 0
        %2186 = vmatpush1.bf16.msra.mxu0 0
        %2187 = vmatprep.subr.bf16.mxu0 0
        %2188 = vmatpush1.bf16.msra.mxu0 0
        %2189 = vmatprep.mubr.bf16.mxu0 0
        %2190 = vmatmul.mubr.bf16.gmra.mrb[0].mxu0 %v2155
        %v2191 = vpop.f32.mrb[0].mxu0
        %v2192 = vadd.f32 %v2140, %v2191
        %v2193 = vpop.f32.mrb[0].mxu0
        %v2194 = vpop.f32.mrb[0].mxu0
        %v2195 = vpop.f32.mrb[0].mxu0
        %2196 = vdwg.mxu0
        %v2197 = vpack.c.bf16 %v2192, %v2192
        %v2198 = vld [vmem:[%s45] sm:$0xf]
        %v2199 = vld [vmem:[%s45 + $0x4] sm:$0xf]
        %v2200 = vld [vmem:[%s45 + $0x8] sm:$0xf]
        %v2201 = vld [vmem:[%s45 + $0xc] sm:$0xf]
        %v2202 = vld [vmem:[%s51] sm:$0x1]
        %v2204 = vlaneseq
        %v2205 = vshrl.u32 %v2204, 7
        %v2206 = vsub.s32 0, %v2205
        %v2207 = vrot.slane %v2202, %v2206
        %v2213 = vunpack.c.l.b16 %v2198
        %v2214 = vunpack.c.l.b16 %v2199
        %v2215 = vunpack.c.l.b16 %v2200
        %v2216 = vunpack.c.l.b16 %v2201
        %v2217 = vpack.c.b16 %v2214, %v2213
        %v2218 = vpack.c.b16 %v2216, %v2215
        %v2222 = vsel %vm1024, %v1021, 0
        %2224 = vmatprep.subr.bf16.mxu0 0
        %2225 = vmatpush1.bf16.msra.mxu0 %v2217
        %2226 = vmatprep.subr.bf16.mxu0 0
        %2227 = vmatpush1.bf16.msra.mxu0 %v2218
        %2228 = vmatprep.subr.bf16.mxu0 0
        %2229 = vmatpush1.bf16.msra.mxu0 0
        %2230 = vmatprep.subr.bf16.mxu0 0
        %2231 = vmatpush1.bf16.msra.mxu0 0
        %2232 = vmatprep.subr.bf16.mxu0 0
        %2233 = vmatpush1.bf16.msra.mxu0 0
        %2234 = vmatprep.subr.bf16.mxu0 0
        %2235 = vmatpush1.bf16.msra.mxu0 0
        %2236 = vmatprep.subr.bf16.mxu0 0
        %2237 = vmatpush1.bf16.msra.mxu0 0
        %2238 = vmatprep.subr.bf16.mxu0 0
        %2239 = vmatpush1.bf16.msra.mxu0 0
        %2240 = vmatprep.subr.bf16.mxu0 0
        %2241 = vmatpush1.bf16.msra.mxu0 0
        %2242 = vmatprep.subr.bf16.mxu0 0
        %2243 = vmatpush1.bf16.msra.mxu0 0
        %2244 = vmatprep.subr.bf16.mxu0 0
        %2245 = vmatpush1.bf16.msra.mxu0 0
        %2246 = vmatprep.subr.bf16.mxu0 0
        %2247 = vmatpush1.bf16.msra.mxu0 0
        %2248 = vmatprep.subr.bf16.mxu0 0
        %2249 = vmatpush1.bf16.msra.mxu0 0
        %2250 = vmatprep.subr.bf16.mxu0 0
        %2251 = vmatpush1.bf16.msra.mxu0 0
        %2252 = vmatprep.subr.bf16.mxu0 0
        %2253 = vmatpush1.bf16.msra.mxu0 0
        %2254 = vmatprep.subr.bf16.mxu0 0
        %2255 = vmatpush1.bf16.msra.mxu0 0
        %2256 = vmatprep.mubr.bf16.mxu0 0
        %2257 = vmatmul.mubr.bf16.gmra.mrb[0].mxu0 %v2222
        %v2258 = vpop.f32.mrb[0].mxu0
        %v2259 = vadd.f32 %v2207, %v2258
        %v2260 = vpop.f32.mrb[0].mxu0
        %v2261 = vpop.f32.mrb[0].mxu0
        %v2262 = vpop.f32.mrb[0].mxu0
        %2263 = vdwg.mxu0
        %v2264 = vpack.c.bf16 %v2259, %v2259
        %v2265 = vld [vmem:[%s55] sm:$0x1]
        %v2267 = vlaneseq
        %v2268 = vshrl.u32 %v2267, 7
        %v2269 = vsub.s32 0, %v2268
        %v2270 = vrot.slane %v2265, %v2269
        %v2272 = vadd.f32 %v2270, %v2048
        %vm2273 = vcmask 31744
        %v2275 = vsel %vm2273, %v2130, 0
        %v2278 = vsel %vm2273, %v2197, 0
        %2280 = vmatprep.subr.bf16.mxu0 0
        %2281 = vmatpush1.bf16.xpose.msra.mxu0 %v2278
        %2282 = vmatprep.subr.bf16.mxu0 0
        %2283 = vmatpush1.bf16.xpose.msra.mxu0 0
        %2284 = vmatprep.subr.bf16.mxu0 0
        %2285 = vmatpush1.bf16.xpose.msra.mxu0 0
        %2286 = vmatprep.subr.bf16.mxu0 0
        %2287 = vmatpush1.bf16.xpose.msra.mxu0 0
        %2288 = vmatprep.subr.bf16.mxu0 0
        %2289 = vmatpush1.bf16.xpose.msra.mxu0 0
        %2290 = vmatprep.subr.bf16.mxu0 0
        %2291 = vmatpush1.bf16.xpose.msra.mxu0 0
        %2292 = vmatprep.subr.bf16.mxu0 0
        %2293 = vmatpush1.bf16.xpose.msra.mxu0 0
        %2294 = vmatprep.subr.bf16.mxu0 0
        %2295 = vmatpush1.bf16.xpose.msra.mxu0 0
        %2296 = vmatprep.subr.bf16.mxu0 0
        %2297 = vmatpush1.bf16.xpose.msra.mxu0 0
        %2298 = vmatprep.subr.bf16.mxu0 0
        %2299 = vmatpush1.bf16.xpose.msra.mxu0 0
        %2300 = vmatprep.subr.bf16.mxu0 0
        %2301 = vmatpush1.bf16.xpose.msra.mxu0 0
        %2302 = vmatprep.subr.bf16.mxu0 0
        %2303 = vmatpush1.bf16.xpose.msra.mxu0 0
        %2304 = vmatprep.subr.bf16.mxu0 0
        %2305 = vmatpush1.bf16.xpose.msra.mxu0 0
        %2306 = vmatprep.subr.bf16.mxu0 0
        %2307 = vmatpush1.bf16.xpose.msra.mxu0 0
        %2308 = vmatprep.subr.bf16.mxu0 0
        %2309 = vmatpush1.bf16.xpose.msra.mxu0 0
        %2310 = vmatprep.subr.bf16.mxu0 0
        %2311 = vmatpush1.bf16.xpose.msra.mxu0 0
        %2312 = vmatprep.mubr.bf16.mxu0 0
        %2313 = vmatmul.mubr.bf16.gmra.mrb[0].mxu0 %v2275
        %v2314 = vpop.f32.mrb[0].mxu0
        %v2315 = vadd.f32 0.0, %v2314
        %v2316 = vpop.f32.mrb[0].mxu0
        %v2317 = vpop.f32.mrb[0].mxu0
        %v2318 = vpop.f32.mrb[0].mxu0
        %2319 = vdwg.mxu0
        %vm2320 = vcmask 64512
        %v2321 = vsel %vm2320, %v2315, -inf
        %2322 = vmax.xlane.f32.xlu0 %v2321
        %v2323 = vpop.xlane.xlu0 %2322
        %v2324 = vsub.f32 %v2315, %v2323
        %v2325 = vmul.f32 %v2324, 1.442695
        %v2326 = vpow.pop %v2325
        %v2327 = vsel %vm2320, %v2326, 0.0
        %2328 = vadd.xlane.f32.xlu0 %v2327
        %v2329 = vpop.xlane.xlu0 %2328
        %v2330 = vrcp.pop %v2329
        %v2331 = vmul.f32 %v2326, %v2330
        %v2332 = vpack.c.bf16 %v2331, %v2331
        %v2334 = vsel %vm2320, %v2332, 0
        %vm2336 = vcmask 1043456
        %v2338 = vsel %vm2336, %v2264, 0
        %2340 = vmatprep.subr.bf16.mxu0 0
        %2341 = vmatpush1.bf16.msra.mxu0 %v2338
        %2342 = vmatprep.subr.bf16.mxu0 0
        %2343 = vmatpush1.bf16.msra.mxu0 0
        %2344 = vmatprep.subr.bf16.mxu0 0
        %2345 = vmatpush1.bf16.msra.mxu0 0
        %2346 = vmatprep.subr.bf16.mxu0 0
        %2347 = vmatpush1.bf16.msra.mxu0 0
        %2348 = vmatprep.subr.bf16.mxu0 0
        %2349 = vmatpush1.bf16.msra.mxu0 0
        %2350 = vmatprep.subr.bf16.mxu0 0
        %2351 = vmatpush1.bf16.msra.mxu0 0
        %2352 = vmatprep.subr.bf16.mxu0 0
        %2353 = vmatpush1.bf16.msra.mxu0 0
        %2354 = vmatprep.subr.bf16.mxu0 0
        %2355 = vmatpush1.bf16.msra.mxu0 0
        %2356 = vmatprep.subr.bf16.mxu0 0
        %2357 = vmatpush1.bf16.msra.mxu0 0
        %2358 = vmatprep.subr.bf16.mxu0 0
        %2359 = vmatpush1.bf16.msra.mxu0 0
        %2360 = vmatprep.subr.bf16.mxu0 0
        %2361 = vmatpush1.bf16.msra.mxu0 0
        %2362 = vmatprep.subr.bf16.mxu0 0
        %2363 = vmatpush1.bf16.msra.mxu0 0
        %2364 = vmatprep.subr.bf16.mxu0 0
        %2365 = vmatpush1.bf16.msra.mxu0 0
        %2366 = vmatprep.subr.bf16.mxu0 0
        %2367 = vmatpush1.bf16.msra.mxu0 0
        %2368 = vmatprep.subr.bf16.mxu0 0
        %2369 = vmatpush1.bf16.msra.mxu0 0
        %2370 = vmatprep.subr.bf16.mxu0 0
        %2371 = vmatpush1.bf16.msra.mxu0 0
        %2372 = vmatprep.mubr.bf16.mxu0 0
        %2373 = vmatmul.mubr.bf16.gmra.mrb[0].mxu0 %v2334
        %v2374 = vpop.f32.mrb[0].mxu0
        %v2375 = vadd.f32 0.0, %v2374
        %v2376 = vpop.f32.mrb[0].mxu0
        %v2377 = vpop.f32.mrb[0].mxu0
        %v2378 = vpop.f32.mrb[0].mxu0
        %2379 = vdwg.mxu0
        %v2380 = vpack.c.bf16 %v2375, %v2375
        %v2381 = vld [vmem:[%s53] sm:$0x3]
        %v2383 = vsel %vm2273, %v2380, 0
        %vm2385 = vcmask 1041408
        %v2387 = vsel %vm2385, %v2381, 0
        %2389 = vmatprep.subr.bf16.mxu0 0
        %2390 = vmatpush1.bf16.msra.mxu0 %v2387
        %2391 = vmatprep.subr.bf16.mxu0 0
        %2392 = vmatpush1.bf16.msra.mxu0 0
        %2393 = vmatprep.subr.bf16.mxu0 0
        %2394 = vmatpush1.bf16.msra.mxu0 0
        %2395 = vmatprep.subr.bf16.mxu0 0
        %2396 = vmatpush1.bf16.msra.mxu0 0
        %2397 = vmatprep.subr.bf16.mxu0 0
        %2398 = vmatpush1.bf16.msra.mxu0 0
        %2399 = vmatprep.subr.bf16.mxu0 0
        %2400 = vmatpush1.bf16.msra.mxu0 0
        %2401 = vmatprep.subr.bf16.mxu0 0
        %2402 = vmatpush1.bf16.msra.mxu0 0
        %2403 = vmatprep.subr.bf16.mxu0 0
        %2404 = vmatpush1.bf16.msra.mxu0 0
        %2405 = vmatprep.subr.bf16.mxu0 0
        %2406 = vmatpush1.bf16.msra.mxu0 0
        %2407 = vmatprep.subr.bf16.mxu0 0
        %2408 = vmatpush1.bf16.msra.mxu0 0
        %2409 = vmatprep.subr.bf16.mxu0 0
        %2410 = vmatpush1.bf16.msra.mxu0 0
        %2411 = vmatprep.subr.bf16.mxu0 0
        %2412 = vmatpush1.bf16.msra.mxu0 0
        %2413 = vmatprep.subr.bf16.mxu0 0
        %2414 = vmatpush1.bf16.msra.mxu0 0
        %2415 = vmatprep.subr.bf16.mxu0 0
        %2416 = vmatpush1.bf16.msra.mxu0 0
        %2417 = vmatprep.subr.bf16.mxu0 0
        %2418 = vmatpush1.bf16.msra.mxu0 0
        %2419 = vmatprep.subr.bf16.mxu0 0
        %2420 = vmatpush1.bf16.msra.mxu0 0
        %2421 = vmatprep.mubr.bf16.mxu0 0
        %2422 = vmatmul.mubr.bf16.gmra.mrb[0].mxu0 %v2383
        %v2423 = vpop.f32.mrb[0].mxu0
        %v2424 = vadd.f32 0.0, %v2423
        %v2425 = vpop.f32.mrb[0].mxu0
        %v2426 = vpop.f32.mrb[0].mxu0
        %v2427 = vpop.f32.mrb[0].mxu0
        %2428 = vdwg.mxu0
        %v2429 = vadd.f32 %v2272, %v2424
        %2431 = vrot.lane.b32.xlu0 %v2130, 124
        %v2432 = vpop.permute.xlu0 %2431
        %2434 = vrot.lane.b32.xlu0 %v2197, 124
        %v2435 = vpop.permute.xlu0 %2434
        %v2437 = vsel %vm2273, %v2432, 0
        %v2440 = vsel %vm2273, %v2435, 0
        %2442 = vmatprep.subr.bf16.mxu0 0
        %2443 = vmatpush1.bf16.xpose.msra.mxu0 %v2440
        %2444 = vmatprep.subr.bf16.mxu0 0
        %2445 = vmatpush1.bf16.xpose.msra.mxu0 0
        %2446 = vmatprep.subr.bf16.mxu0 0
        %2447 = vmatpush1.bf16.xpose.msra.mxu0 0
        %2448 = vmatprep.subr.bf16.mxu0 0
        %2449 = vmatpush1.bf16.xpose.msra.mxu0 0
        %2450 = vmatprep.subr.bf16.mxu0 0
        %2451 = vmatpush1.bf16.xpose.msra.mxu0 0
        %2452 = vmatprep.subr.bf16.mxu0 0
        %2453 = vmatpush1.bf16.xpose.msra.mxu0 0
        %2454 = vmatprep.subr.bf16.mxu0 0
        %2455 = vmatpush1.bf16.xpose.msra.mxu0 0
        %2456 = vmatprep.subr.bf16.mxu0 0
        %2457 = vmatpush1.bf16.xpose.msra.mxu0 0
        %2458 = vmatprep.subr.bf16.mxu0 0
        %2459 = vmatpush1.bf16.xpose.msra.mxu0 0
        %2460 = vmatprep.subr.bf16.mxu0 0
        %2461 = vmatpush1.bf16.xpose.msra.mxu0 0
        %2462 = vmatprep.subr.bf16.mxu0 0
        %2463 = vmatpush1.bf16.xpose.msra.mxu0 0
        %2464 = vmatprep.subr.bf16.mxu0 0
        %2465 = vmatpush1.bf16.xpose.msra.mxu0 0
        %2466 = vmatprep.subr.bf16.mxu0 0
        %2467 = vmatpush1.bf16.xpose.msra.mxu0 0
        %2468 = vmatprep.subr.bf16.mxu0 0
        %2469 = vmatpush1.bf16.xpose.msra.mxu0 0
        %2470 = vmatprep.subr.bf16.mxu0 0
        %2471 = vmatpush1.bf16.xpose.msra.mxu0 0
        %2472 = vmatprep.subr.bf16.mxu0 0
        %2473 = vmatpush1.bf16.xpose.msra.mxu0 0
        %2474 = vmatprep.mubr.bf16.mxu0 0
        %2475 = vmatmul.mubr.bf16.gmra.mrb[0].mxu0 %v2437
        %v2476 = vpop.f32.mrb[0].mxu0
        %v2477 = vadd.f32 0.0, %v2476
        %v2478 = vpop.f32.mrb[0].mxu0
        %v2479 = vpop.f32.mrb[0].mxu0
        %v2480 = vpop.f32.mrb[0].mxu0
        %2481 = vdwg.mxu0
        %v2482 = vsel %vm2320, %v2477, -inf
        %2483 = vmax.xlane.f32.xlu0 %v2482
        %v2484 = vpop.xlane.xlu0 %2483
        %v2485 = vsub.f32 %v2477, %v2484
        %v2486 = vmul.f32 %v2485, 1.442695
        %v2487 = vpow.pop %v2486
        %v2488 = vsel %vm2320, %v2487, 0.0
        %2489 = vadd.xlane.f32.xlu0 %v2488
        %v2490 = vpop.xlane.xlu0 %2489
        %v2491 = vrcp.pop %v2490
        %v2492 = vmul.f32 %v2487, %v2491
        %v2493 = vpack.c.bf16 %v2492, %v2492
        %2495 = vrot.lane.b32.xlu0 %v2264, 124
        %v2496 = vpop.permute.xlu0 %2495
        %v2498 = vsel %vm2320, %v2493, 0
        %v2501 = vsel %vm2336, %v2496, 0
        %2503 = vmatprep.subr.bf16.mxu0 0
        %2504 = vmatpush1.bf16.msra.mxu0 %v2501
        %2505 = vmatprep.subr.bf16.mxu0 0
        %2506 = vmatpush1.bf16.msra.mxu0 0
        %2507 = vmatprep.subr.bf16.mxu0 0
        %2508 = vmatpush1.bf16.msra.mxu0 0
        %2509 = vmatprep.subr.bf16.mxu0 0
        %2510 = vmatpush1.bf16.msra.mxu0 0
        %2511 = vmatprep.subr.bf16.mxu0 0
        %2512 = vmatpush1.bf16.msra.mxu0 0
        %2513 = vmatprep.subr.bf16.mxu0 0
        %2514 = vmatpush1.bf16.msra.mxu0 0
        %2515 = vmatprep.subr.bf16.mxu0 0
        %2516 = vmatpush1.bf16.msra.mxu0 0
        %2517 = vmatprep.subr.bf16.mxu0 0
        %2518 = vmatpush1.bf16.msra.mxu0 0
        %2519 = vmatprep.subr.bf16.mxu0 0
        %2520 = vmatpush1.bf16.msra.mxu0 0
        %2521 = vmatprep.subr.bf16.mxu0 0
        %2522 = vmatpush1.bf16.msra.mxu0 0
        %2523 = vmatprep.subr.bf16.mxu0 0
        %2524 = vmatpush1.bf16.msra.mxu0 0
        %2525 = vmatprep.subr.bf16.mxu0 0
        %2526 = vmatpush1.bf16.msra.mxu0 0
        %2527 = vmatprep.subr.bf16.mxu0 0
        %2528 = vmatpush1.bf16.msra.mxu0 0
        %2529 = vmatprep.subr.bf16.mxu0 0
        %2530 = vmatpush1.bf16.msra.mxu0 0
        %2531 = vmatprep.subr.bf16.mxu0 0
        %2532 = vmatpush1.bf16.msra.mxu0 0
        %2533 = vmatprep.subr.bf16.mxu0 0
        %2534 = vmatpush1.bf16.msra.mxu0 0
        %2535 = vmatprep.mubr.bf16.mxu0 0
        %2536 = vmatmul.mubr.bf16.gmra.mrb[0].mxu0 %v2498
        %v2537 = vpop.f32.mrb[0].mxu0
        %v2538 = vadd.f32 0.0, %v2537
        %v2539 = vpop.f32.mrb[0].mxu0
        %v2540 = vpop.f32.mrb[0].mxu0
        %v2541 = vpop.f32.mrb[0].mxu0
        %2542 = vdwg.mxu0
        %v2543 = vpack.c.bf16 %v2538, %v2538
        %v2544 = vld [vmem:[%s53] sm:$0xc]
        %v2546 = vunpack.c.l.b16 %v2544
        %v2547 = vpack.c.b16 %v2546, %v2546
        %v2548 = vrot.slane %v2547, 2
        %v2550 = vsel %vm2273, %v2543, 0
        %v2553 = vsel %vm2385, %v2548, 0
        %2555 = vmatprep.subr.bf16.mxu0 0
        %2556 = vmatpush1.bf16.msra.mxu0 %v2553
        %2557 = vmatprep.subr.bf16.mxu0 0
        %2558 = vmatpush1.bf16.msra.mxu0 0
        %2559 = vmatprep.subr.bf16.mxu0 0
        %2560 = vmatpush1.bf16.msra.mxu0 0
        %2561 = vmatprep.subr.bf16.mxu0 0
        %2562 = vmatpush1.bf16.msra.mxu0 0
        %2563 = vmatprep.subr.bf16.mxu0 0
        %2564 = vmatpush1.bf16.msra.mxu0 0
        %2565 = vmatprep.subr.bf16.mxu0 0
        %2566 = vmatpush1.bf16.msra.mxu0 0
        %2567 = vmatprep.subr.bf16.mxu0 0
        %2568 = vmatpush1.bf16.msra.mxu0 0
        %2569 = vmatprep.subr.bf16.mxu0 0
        %2570 = vmatpush1.bf16.msra.mxu0 0
        %2571 = vmatprep.subr.bf16.mxu0 0
        %2572 = vmatpush1.bf16.msra.mxu0 0
        %2573 = vmatprep.subr.bf16.mxu0 0
        %2574 = vmatpush1.bf16.msra.mxu0 0
        %2575 = vmatprep.subr.bf16.mxu0 0
        %2576 = vmatpush1.bf16.msra.mxu0 0
        %2577 = vmatprep.subr.bf16.mxu0 0
        %2578 = vmatpush1.bf16.msra.mxu0 0
        %2579 = vmatprep.subr.bf16.mxu0 0
        %2580 = vmatpush1.bf16.msra.mxu0 0
        %2581 = vmatprep.subr.bf16.mxu0 0
        %2582 = vmatpush1.bf16.msra.mxu0 0
        %2583 = vmatprep.subr.bf16.mxu0 0
        %2584 = vmatpush1.bf16.msra.mxu0 0
        %2585 = vmatprep.subr.bf16.mxu0 0
        %2586 = vmatpush1.bf16.msra.mxu0 0
        %2587 = vmatprep.mubr.bf16.mxu0 0
        %2588 = vmatmul.mubr.bf16.gmra.mrb[0].mxu0 %v2550
        %v2589 = vpop.f32.mrb[0].mxu0
        %v2590 = vadd.f32 0.0, %v2589
        %v2591 = vpop.f32.mrb[0].mxu0
        %v2592 = vpop.f32.mrb[0].mxu0
        %v2593 = vpop.f32.mrb[0].mxu0
        %2594 = vdwg.mxu0
        %v2595 = vadd.f32 %v2429, %v2590
        %2596 = vrot.lane.b32.xlu0 %v2130, 120
        %v2597 = vpop.permute.xlu0 %2596
        %2598 = vrot.lane.b32.xlu0 %v2197, 120
        %v2599 = vpop.permute.xlu0 %2598
        %v2601 = vsel %vm2273, %v2597, 0
        %v2604 = vsel %vm2273, %v2599, 0
        %2606 = vmatprep.subr.bf16.mxu0 0
        %2607 = vmatpush1.bf16.xpose.msra.mxu0 %v2604
        %2608 = vmatprep.subr.bf16.mxu0 0
        %2609 = vmatpush1.bf16.xpose.msra.mxu0 0
        %2610 = vmatprep.subr.bf16.mxu0 0
        %2611 = vmatpush1.bf16.xpose.msra.mxu0 0
        %2612 = vmatprep.subr.bf16.mxu0 0
        %2613 = vmatpush1.bf16.xpose.msra.mxu0 0
        %2614 = vmatprep.subr.bf16.mxu0 0
        %2615 = vmatpush1.bf16.xpose.msra.mxu0 0
        %2616 = vmatprep.subr.bf16.mxu0 0
        %2617 = vmatpush1.bf16.xpose.msra.mxu0 0
        %2618 = vmatprep.subr.bf16.mxu0 0
        %2619 = vmatpush1.bf16.xpose.msra.mxu0 0
        %2620 = vmatprep.subr.bf16.mxu0 0
        %2621 = vmatpush1.bf16.xpose.msra.mxu0 0
        %2622 = vmatprep.subr.bf16.mxu0 0
        %2623 = vmatpush1.bf16.xpose.msra.mxu0 0
        %2624 = vmatprep.subr.bf16.mxu0 0
        %2625 = vmatpush1.bf16.xpose.msra.mxu0 0
        %2626 = vmatprep.subr.bf16.mxu0 0
        %2627 = vmatpush1.bf16.xpose.msra.mxu0 0
        %2628 = vmatprep.subr.bf16.mxu0 0
        %2629 = vmatpush1.bf16.xpose.msra.mxu0 0
        %2630 = vmatprep.subr.bf16.mxu0 0
        %2631 = vmatpush1.bf16.xpose.msra.mxu0 0
        %2632 = vmatprep.subr.bf16.mxu0 0
        %2633 = vmatpush1.bf16.xpose.msra.mxu0 0
        %2634 = vmatprep.subr.bf16.mxu0 0
        %2635 = vmatpush1.bf16.xpose.msra.mxu0 0
        %2636 = vmatprep.subr.bf16.mxu0 0
        %2637 = vmatpush1.bf16.xpose.msra.mxu0 0
        %2638 = vmatprep.mubr.bf16.mxu0 0
        %2639 = vmatmul.mubr.bf16.gmra.mrb[0].mxu0 %v2601
        %v2640 = vpop.f32.mrb[0].mxu0
        %v2641 = vadd.f32 0.0, %v2640
        %v2642 = vpop.f32.mrb[0].mxu0
        %v2643 = vpop.f32.mrb[0].mxu0
        %v2644 = vpop.f32.mrb[0].mxu0
        %2645 = vdwg.mxu0
        %v2646 = vsel %vm2320, %v2641, -inf
        %2647 = vmax.xlane.f32.xlu0 %v2646
        %v2648 = vpop.xlane.xlu0 %2647
        %v2649 = vsub.f32 %v2641, %v2648
        %v2650 = vmul.f32 %v2649, 1.442695
        %v2651 = vpow.pop %v2650
        %v2652 = vsel %vm2320, %v2651, 0.0
        %2653 = vadd.xlane.f32.xlu0 %v2652
        %v2654 = vpop.xlane.xlu0 %2653
        %v2655 = vrcp.pop %v2654
        %v2656 = vmul.f32 %v2651, %v2655
        %v2657 = vpack.c.bf16 %v2656, %v2656
        %2658 = vrot.lane.b32.xlu0 %v2264, 120
        %v2659 = vpop.permute.xlu0 %2658
        %v2661 = vsel %vm2320, %v2657, 0
        %v2664 = vsel %vm2336, %v2659, 0
        %2666 = vmatprep.subr.bf16.mxu0 0
        %2667 = vmatpush1.bf16.msra.mxu0 %v2664
        %2668 = vmatprep.subr.bf16.mxu0 0
        %2669 = vmatpush1.bf16.msra.mxu0 0
        %2670 = vmatprep.subr.bf16.mxu0 0
        %2671 = vmatpush1.bf16.msra.mxu0 0
        %2672 = vmatprep.subr.bf16.mxu0 0
        %2673 = vmatpush1.bf16.msra.mxu0 0
        %2674 = vmatprep.subr.bf16.mxu0 0
        %2675 = vmatpush1.bf16.msra.mxu0 0
        %2676 = vmatprep.subr.bf16.mxu0 0
        %2677 = vmatpush1.bf16.msra.mxu0 0
        %2678 = vmatprep.subr.bf16.mxu0 0
        %2679 = vmatpush1.bf16.msra.mxu0 0
        %2680 = vmatprep.subr.bf16.mxu0 0
        %2681 = vmatpush1.bf16.msra.mxu0 0
        %2682 = vmatprep.subr.bf16.mxu0 0
        %2683 = vmatpush1.bf16.msra.mxu0 0
        %2684 = vmatprep.subr.bf16.mxu0 0
        %2685 = vmatpush1.bf16.msra.mxu0 0
        %2686 = vmatprep.subr.bf16.mxu0 0
        %2687 = vmatpush1.bf16.msra.mxu0 0
        %2688 = vmatprep.subr.bf16.mxu0 0
        %2689 = vmatpush1.bf16.msra.mxu0 0
        %2690 = vmatprep.subr.bf16.mxu0 0
        %2691 = vmatpush1.bf16.msra.mxu0 0
        %2692 = vmatprep.subr.bf16.mxu0 0
        %2693 = vmatpush1.bf16.msra.mxu0 0
        %2694 = vmatprep.subr.bf16.mxu0 0
        %2695 = vmatpush1.bf16.msra.mxu0 0
        %2696 = vmatprep.subr.bf16.mxu0 0
        %2697 = vmatpush1.bf16.msra.mxu0 0
        %2698 = vmatprep.mubr.bf16.mxu0 0
        %2699 = vmatmul.mubr.bf16.gmra.mrb[0].mxu0 %v2661
        %v2700 = vpop.f32.mrb[0].mxu0
        %v2701 = vadd.f32 0.0, %v2700
        %v2702 = vpop.f32.mrb[0].mxu0
        %v2703 = vpop.f32.mrb[0].mxu0
        %v2704 = vpop.f32.mrb[0].mxu0
        %2705 = vdwg.mxu0
        %v2706 = vpack.c.bf16 %v2701, %v2701
        %v2707 = vld [vmem:[%s53 + $0x4] sm:$0x3]
        %v2709 = vsel %vm2273, %v2706, 0
        %v2712 = vsel %vm2385, %v2707, 0
        %2714 = vmatprep.subr.bf16.mxu0 0
        %2715 = vmatpush1.bf16.msra.mxu0 %v2712
        %2716 = vmatprep.subr.bf16.mxu0 0
        %2717 = vmatpush1.bf16.msra.mxu0 0
        %2718 = vmatprep.subr.bf16.mxu0 0
        %2719 = vmatpush1.bf16.msra.mxu0 0
        %2720 = vmatprep.subr.bf16.mxu0 0
        %2721 = vmatpush1.bf16.msra.mxu0 0
        %2722 = vmatprep.subr.bf16.mxu0 0
        %2723 = vmatpush1.bf16.msra.mxu0 0
        %2724 = vmatprep.subr.bf16.mxu0 0
        %2725 = vmatpush1.bf16.msra.mxu0 0
        %2726 = vmatprep.subr.bf16.mxu0 0
        %2727 = vmatpush1.bf16.msra.mxu0 0
        %2728 = vmatprep.subr.bf16.mxu0 0
        %2729 = vmatpush1.bf16.msra.mxu0 0
        %2730 = vmatprep.subr.bf16.mxu0 0
        %2731 = vmatpush1.bf16.msra.mxu0 0
        %2732 = vmatprep.subr.bf16.mxu0 0
        %2733 = vmatpush1.bf16.msra.mxu0 0
        %2734 = vmatprep.subr.bf16.mxu0 0
        %2735 = vmatpush1.bf16.msra.mxu0 0
        %2736 = vmatprep.subr.bf16.mxu0 0
        %2737 = vmatpush1.bf16.msra.mxu0 0
        %2738 = vmatprep.subr.bf16.mxu0 0
        %2739 = vmatpush1.bf16.msra.mxu0 0
        %2740 = vmatprep.subr.bf16.mxu0 0
        %2741 = vmatpush1.bf16.msra.mxu0 0
        %2742 = vmatprep.subr.bf16.mxu0 0
        %2743 = vmatpush1.bf16.msra.mxu0 0
        %2744 = vmatprep.subr.bf16.mxu0 0
        %2745 = vmatpush1.bf16.msra.mxu0 0
        %2746 = vmatprep.mubr.bf16.mxu0 0
        %2747 = vmatmul.mubr.bf16.gmra.mrb[0].mxu0 %v2709
        %v2748 = vpop.f32.mrb[0].mxu0
        %v2749 = vadd.f32 0.0, %v2748
        %v2750 = vpop.f32.mrb[0].mxu0
        %v2751 = vpop.f32.mrb[0].mxu0
        %v2752 = vpop.f32.mrb[0].mxu0
        %2753 = vdwg.mxu0
        %v2754 = vadd.f32 %v2595, %v2749
        %2755 = vrot.lane.b32.xlu0 %v2130, 116
        %v2756 = vpop.permute.xlu0 %2755
        %2757 = vrot.lane.b32.xlu0 %v2197, 116
        %v2758 = vpop.permute.xlu0 %2757
        %v2760 = vsel %vm2273, %v2756, 0
        %v2763 = vsel %vm2273, %v2758, 0
        %2765 = vmatprep.subr.bf16.mxu0 0
        %2766 = vmatpush1.bf16.xpose.msra.mxu0 %v2763
        %2767 = vmatprep.subr.bf16.mxu0 0
        %2768 = vmatpush1.bf16.xpose.msra.mxu0 0
        %2769 = vmatprep.subr.bf16.mxu0 0
        %2770 = vmatpush1.bf16.xpose.msra.mxu0 0
        %2771 = vmatprep.subr.bf16.mxu0 0
        %2772 = vmatpush1.bf16.xpose.msra.mxu0 0
        %2773 = vmatprep.subr.bf16.mxu0 0
        %2774 = vmatpush1.bf16.xpose.msra.mxu0 0
        %2775 = vmatprep.subr.bf16.mxu0 0
        %2776 = vmatpush1.bf16.xpose.msra.mxu0 0
        %2777 = vmatprep.subr.bf16.mxu0 0
        %2778 = vmatpush1.bf16.xpose.msra.mxu0 0
        %2779 = vmatprep.subr.bf16.mxu0 0
        %2780 = vmatpush1.bf16.xpose.msra.mxu0 0
        %2781 = vmatprep.subr.bf16.mxu0 0
        %2782 = vmatpush1.bf16.xpose.msra.mxu0 0
        %2783 = vmatprep.subr.bf16.mxu0 0
        %2784 = vmatpush1.bf16.xpose.msra.mxu0 0
        %2785 = vmatprep.subr.bf16.mxu0 0
        %2786 = vmatpush1.bf16.xpose.msra.mxu0 0
        %2787 = vmatprep.subr.bf16.mxu0 0
        %2788 = vmatpush1.bf16.xpose.msra.mxu0 0
        %2789 = vmatprep.subr.bf16.mxu0 0
        %2790 = vmatpush1.bf16.xpose.msra.mxu0 0
        %2791 = vmatprep.subr.bf16.mxu0 0
        %2792 = vmatpush1.bf16.xpose.msra.mxu0 0
        %2793 = vmatprep.subr.bf16.mxu0 0
        %2794 = vmatpush1.bf16.xpose.msra.mxu0 0
        %2795 = vmatprep.subr.bf16.mxu0 0
        %2796 = vmatpush1.bf16.xpose.msra.mxu0 0
        %2797 = vmatprep.mubr.bf16.mxu0 0
        %2798 = vmatmul.mubr.bf16.gmra.mrb[0].mxu0 %v2760
        %v2799 = vpop.f32.mrb[0].mxu0
        %v2800 = vadd.f32 0.0, %v2799
        %v2801 = vpop.f32.mrb[0].mxu0
        %v2802 = vpop.f32.mrb[0].mxu0
        %v2803 = vpop.f32.mrb[0].mxu0
        %2804 = vdwg.mxu0
        %v2805 = vsel %vm2320, %v2800, -inf
        %2806 = vmax.xlane.f32.xlu0 %v2805
        %v2807 = vpop.xlane.xlu0 %2806
        %v2808 = vsub.f32 %v2800, %v2807
        %v2809 = vmul.f32 %v2808, 1.442695
        %v2810 = vpow.pop %v2809
        %v2811 = vsel %vm2320, %v2810, 0.0
        %2812 = vadd.xlane.f32.xlu0 %v2811
        %v2813 = vpop.xlane.xlu0 %2812
        %v2814 = vrcp.pop %v2813
        %v2815 = vmul.f32 %v2810, %v2814
        %v2816 = vpack.c.bf16 %v2815, %v2815
        %2817 = vrot.lane.b32.xlu0 %v2264, 116
        %v2818 = vpop.permute.xlu0 %2817
        %v2820 = vsel %vm2320, %v2816, 0
        %v2823 = vsel %vm2336, %v2818, 0
        %2825 = vmatprep.subr.bf16.mxu0 0
        %2826 = vmatpush1.bf16.msra.mxu0 %v2823
        %2827 = vmatprep.subr.bf16.mxu0 0
        %2828 = vmatpush1.bf16.msra.mxu0 0
        %2829 = vmatprep.subr.bf16.mxu0 0
        %2830 = vmatpush1.bf16.msra.mxu0 0
        %2831 = vmatprep.subr.bf16.mxu0 0
        %2832 = vmatpush1.bf16.msra.mxu0 0
        %2833 = vmatprep.subr.bf16.mxu0 0
        %2834 = vmatpush1.bf16.msra.mxu0 0
        %2835 = vmatprep.subr.bf16.mxu0 0
        %2836 = vmatpush1.bf16.msra.mxu0 0
        %2837 = vmatprep.subr.bf16.mxu0 0
        %2838 = vmatpush1.bf16.msra.mxu0 0
        %2839 = vmatprep.subr.bf16.mxu0 0
        %2840 = vmatpush1.bf16.msra.mxu0 0
        %2841 = vmatprep.subr.bf16.mxu0 0
        %2842 = vmatpush1.bf16.msra.mxu0 0
        %2843 = vmatprep.subr.bf16.mxu0 0
        %2844 = vmatpush1.bf16.msra.mxu0 0
        %2845 = vmatprep.subr.bf16.mxu0 0
        %2846 = vmatpush1.bf16.msra.mxu0 0
        %2847 = vmatprep.subr.bf16.mxu0 0
        %2848 = vmatpush1.bf16.msra.mxu0 0
        %2849 = vmatprep.subr.bf16.mxu0 0
        %2850 = vmatpush1.bf16.msra.mxu0 0
        %2851 = vmatprep.subr.bf16.mxu0 0
        %2852 = vmatpush1.bf16.msra.mxu0 0
        %2853 = vmatprep.subr.bf16.mxu0 0
        %2854 = vmatpush1.bf16.msra.mxu0 0
        %2855 = vmatprep.subr.bf16.mxu0 0
        %2856 = vmatpush1.bf16.msra.mxu0 0
        %2857 = vmatprep.mubr.bf16.mxu0 0
        %2858 = vmatmul.mubr.bf16.gmra.mrb[0].mxu0 %v2820
        %v2859 = vpop.f32.mrb[0].mxu0
        %v2860 = vadd.f32 0.0, %v2859
        %v2861 = vpop.f32.mrb[0].mxu0
        %v2862 = vpop.f32.mrb[0].mxu0
        %v2863 = vpop.f32.mrb[0].mxu0
        %2864 = vdwg.mxu0
        %v2865 = vpack.c.bf16 %v2860, %v2860
        %v2866 = vld [vmem:[%s53 + $0x4] sm:$0xc]
        %v2868 = vunpack.c.l.b16 %v2866
        %v2869 = vpack.c.b16 %v2868, %v2868
        %v2870 = vrot.slane %v2869, 2
        %v2872 = vsel %vm2273, %v2865, 0
        %v2875 = vsel %vm2385, %v2870, 0
        %2877 = vmatprep.subr.bf16.mxu0 0
        %2878 = vmatpush1.bf16.msra.mxu0 %v2875
        %2879 = vmatprep.subr.bf16.mxu0 0
        %2880 = vmatpush1.bf16.msra.mxu0 0
        %2881 = vmatprep.subr.bf16.mxu0 0
        %2882 = vmatpush1.bf16.msra.mxu0 0
        %2883 = vmatprep.subr.bf16.mxu0 0
        %2884 = vmatpush1.bf16.msra.mxu0 0
        %2885 = vmatprep.subr.bf16.mxu0 0
        %2886 = vmatpush1.bf16.msra.mxu0 0
        %2887 = vmatprep.subr.bf16.mxu0 0
        %2888 = vmatpush1.bf16.msra.mxu0 0
        %2889 = vmatprep.subr.bf16.mxu0 0
        %2890 = vmatpush1.bf16.msra.mxu0 0
        %2891 = vmatprep.subr.bf16.mxu0 0
        %2892 = vmatpush1.bf16.msra.mxu0 0
        %2893 = vmatprep.subr.bf16.mxu0 0
        %2894 = vmatpush1.bf16.msra.mxu0 0
        %2895 = vmatprep.subr.bf16.mxu0 0
        %2896 = vmatpush1.bf16.msra.mxu0 0
        %2897 = vmatprep.subr.bf16.mxu0 0
        %2898 = vmatpush1.bf16.msra.mxu0 0
        %2899 = vmatprep.subr.bf16.mxu0 0
        %2900 = vmatpush1.bf16.msra.mxu0 0
        %2901 = vmatprep.subr.bf16.mxu0 0
        %2902 = vmatpush1.bf16.msra.mxu0 0
        %2903 = vmatprep.subr.bf16.mxu0 0
        %2904 = vmatpush1.bf16.msra.mxu0 0
        %2905 = vmatprep.subr.bf16.mxu0 0
        %2906 = vmatpush1.bf16.msra.mxu0 0
        %2907 = vmatprep.subr.bf16.mxu0 0
        %2908 = vmatpush1.bf16.msra.mxu0 0
        %2909 = vmatprep.mubr.bf16.mxu0 0
        %2910 = vmatmul.mubr.bf16.gmra.mrb[0].mxu0 %v2872
        %v2911 = vpop.f32.mrb[0].mxu0
        %v2912 = vadd.f32 0.0, %v2911
        %v2913 = vpop.f32.mrb[0].mxu0
        %v2914 = vpop.f32.mrb[0].mxu0
        %v2915 = vpop.f32.mrb[0].mxu0
        %2916 = vdwg.mxu0
        %v2917 = vadd.f32 %v2754, %v2912
        %2918 = vrot.lane.b32.xlu0 %v2130, 112
        %v2919 = vpop.permute.xlu0 %2918
        %2920 = vrot.lane.b32.xlu0 %v2197, 112
        %v2921 = vpop.permute.xlu0 %2920
        %v2923 = vsel %vm2273, %v2919, 0
        %v2926 = vsel %vm2273, %v2921, 0
        %2928 = vmatprep.subr.bf16.mxu0 0
        %2929 = vmatpush1.bf16.xpose.msra.mxu0 %v2926
        %2930 = vmatprep.subr.bf16.mxu0 0
        %2931 = vmatpush1.bf16.xpose.msra.mxu0 0
        %2932 = vmatprep.subr.bf16.mxu0 0
        %2933 = vmatpush1.bf16.xpose.msra.mxu0 0
        %2934 = vmatprep.subr.bf16.mxu0 0
        %2935 = vmatpush1.bf16.xpose.msra.mxu0 0
        %2936 = vmatprep.subr.bf16.mxu0 0
        %2937 = vmatpush1.bf16.xpose.msra.mxu0 0
        %2938 = vmatprep.subr.bf16.mxu0 0
        %2939 = vmatpush1.bf16.xpose.msra.mxu0 0
        %2940 = vmatprep.subr.bf16.mxu0 0
        %2941 = vmatpush1.bf16.xpose.msra.mxu0 0
        %2942 = vmatprep.subr.bf16.mxu0 0
        %2943 = vmatpush1.bf16.xpose.msra.mxu0 0
        %2944 = vmatprep.subr.bf16.mxu0 0
        %2945 = vmatpush1.bf16.xpose.msra.mxu0 0
        %2946 = vmatprep.subr.bf16.mxu0 0
        %2947 = vmatpush1.bf16.xpose.msra.mxu0 0
        %2948 = vmatprep.subr.bf16.mxu0 0
        %2949 = vmatpush1.bf16.xpose.msra.mxu0 0
        %2950 = vmatprep.subr.bf16.mxu0 0
        %2951 = vmatpush1.bf16.xpose.msra.mxu0 0
        %2952 = vmatprep.subr.bf16.mxu0 0
        %2953 = vmatpush1.bf16.xpose.msra.mxu0 0
        %2954 = vmatprep.subr.bf16.mxu0 0
        %2955 = vmatpush1.bf16.xpose.msra.mxu0 0
        %2956 = vmatprep.subr.bf16.mxu0 0
        %2957 = vmatpush1.bf16.xpose.msra.mxu0 0
        %2958 = vmatprep.subr.bf16.mxu0 0
        %2959 = vmatpush1.bf16.xpose.msra.mxu0 0
        %2960 = vmatprep.mubr.bf16.mxu0 0
        %2961 = vmatmul.mubr.bf16.gmra.mrb[0].mxu0 %v2923
        %v2962 = vpop.f32.mrb[0].mxu0
        %v2963 = vadd.f32 0.0, %v2962
        %v2964 = vpop.f32.mrb[0].mxu0
        %v2965 = vpop.f32.mrb[0].mxu0
        %v2966 = vpop.f32.mrb[0].mxu0
        %2967 = vdwg.mxu0
        %v2968 = vsel %vm2320, %v2963, -inf
        %2969 = vmax.xlane.f32.xlu0 %v2968
        %v2970 = vpop.xlane.xlu0 %2969
        %v2971 = vsub.f32 %v2963, %v2970
        %v2972 = vmul.f32 %v2971, 1.442695
        %v2973 = vpow.pop %v2972
        %v2974 = vsel %vm2320, %v2973, 0.0
        %2975 = vadd.xlane.f32.xlu0 %v2974
        %v2976 = vpop.xlane.xlu0 %2975
        %v2977 = vrcp.pop %v2976
        %v2978 = vmul.f32 %v2973, %v2977
        %v2979 = vpack.c.bf16 %v2978, %v2978
        %2980 = vrot.lane.b32.xlu0 %v2264, 112
        %v2981 = vpop.permute.xlu0 %2980
        %v2983 = vsel %vm2320, %v2979, 0
        %v2986 = vsel %vm2336, %v2981, 0
        %2988 = vmatprep.subr.bf16.mxu0 0
        %2989 = vmatpush1.bf16.msra.mxu0 %v2986
        %2990 = vmatprep.subr.bf16.mxu0 0
        %2991 = vmatpush1.bf16.msra.mxu0 0
        %2992 = vmatprep.subr.bf16.mxu0 0
        %2993 = vmatpush1.bf16.msra.mxu0 0
        %2994 = vmatprep.subr.bf16.mxu0 0
        %2995 = vmatpush1.bf16.msra.mxu0 0
        %2996 = vmatprep.subr.bf16.mxu0 0
        %2997 = vmatpush1.bf16.msra.mxu0 0
        %2998 = vmatprep.subr.bf16.mxu0 0
        %2999 = vmatpush1.bf16.msra.mxu0 0
        %3000 = vmatprep.subr.bf16.mxu0 0
        %3001 = vmatpush1.bf16.msra.mxu0 0
        %3002 = vmatprep.subr.bf16.mxu0 0
        %3003 = vmatpush1.bf16.msra.mxu0 0
        %3004 = vmatprep.subr.bf16.mxu0 0
        %3005 = vmatpush1.bf16.msra.mxu0 0
        %3006 = vmatprep.subr.bf16.mxu0 0
        %3007 = vmatpush1.bf16.msra.mxu0 0
        %3008 = vmatprep.subr.bf16.mxu0 0
        %3009 = vmatpush1.bf16.msra.mxu0 0
        %3010 = vmatprep.subr.bf16.mxu0 0
        %3011 = vmatpush1.bf16.msra.mxu0 0
        %3012 = vmatprep.subr.bf16.mxu0 0
        %3013 = vmatpush1.bf16.msra.mxu0 0
        %3014 = vmatprep.subr.bf16.mxu0 0
        %3015 = vmatpush1.bf16.msra.mxu0 0
        %3016 = vmatprep.subr.bf16.mxu0 0
        %3017 = vmatpush1.bf16.msra.mxu0 0
        %3018 = vmatprep.subr.bf16.mxu0 0
        %3019 = vmatpush1.bf16.msra.mxu0 0
        %3020 = vmatprep.mubr.bf16.mxu0 0
        %3021 = vmatmul.mubr.bf16.gmra.mrb[0].mxu0 %v2983
        %v3022 = vpop.f32.mrb[0].mxu0
        %v3023 = vadd.f32 0.0, %v3022
        %v3024 = vpop.f32.mrb[0].mxu0
        %v3025 = vpop.f32.mrb[0].mxu0
        %v3026 = vpop.f32.mrb[0].mxu0
        %3027 = vdwg.mxu0
        %v3028 = vpack.c.bf16 %v3023, %v3023
        %v3029 = vld [vmem:[%s53 + $0x8] sm:$0x3]
        %v3031 = vsel %vm2273, %v3028, 0
        %v3034 = vsel %vm2385, %v3029, 0
        %3036 = vmatprep.subr.bf16.mxu0 0
        %3037 = vmatpush1.bf16.msra.mxu0 %v3034
        %3038 = vmatprep.subr.bf16.mxu0 0
        %3039 = vmatpush1.bf16.msra.mxu0 0
        %3040 = vmatprep.subr.bf16.mxu0 0
        %3041 = vmatpush1.bf16.msra.mxu0 0
        %3042 = vmatprep.subr.bf16.mxu0 0
        %3043 = vmatpush1.bf16.msra.mxu0 0
        %3044 = vmatprep.subr.bf16.mxu0 0
        %3045 = vmatpush1.bf16.msra.mxu0 0
        %3046 = vmatprep.subr.bf16.mxu0 0
        %3047 = vmatpush1.bf16.msra.mxu0 0
        %3048 = vmatprep.subr.bf16.mxu0 0
        %3049 = vmatpush1.bf16.msra.mxu0 0
        %3050 = vmatprep.subr.bf16.mxu0 0
        %3051 = vmatpush1.bf16.msra.mxu0 0
        %3052 = vmatprep.subr.bf16.mxu0 0
        %3053 = vmatpush1.bf16.msra.mxu0 0
        %3054 = vmatprep.subr.bf16.mxu0 0
        %3055 = vmatpush1.bf16.msra.mxu0 0
        %3056 = vmatprep.subr.bf16.mxu0 0
        %3057 = vmatpush1.bf16.msra.mxu0 0
        %3058 = vmatprep.subr.bf16.mxu0 0
        %3059 = vmatpush1.bf16.msra.mxu0 0
        %3060 = vmatprep.subr.bf16.mxu0 0
        %3061 = vmatpush1.bf16.msra.mxu0 0
        %3062 = vmatprep.subr.bf16.mxu0 0
        %3063 = vmatpush1.bf16.msra.mxu0 0
        %3064 = vmatprep.subr.bf16.mxu0 0
        %3065 = vmatpush1.bf16.msra.mxu0 0
        %3066 = vmatprep.subr.bf16.mxu0 0
        %3067 = vmatpush1.bf16.msra.mxu0 0
        %3068 = vmatprep.mubr.bf16.mxu0 0
        %3069 = vmatmul.mubr.bf16.gmra.mrb[0].mxu0 %v3031
        %v3070 = vpop.f32.mrb[0].mxu0
        %v3071 = vadd.f32 0.0, %v3070
        %v3072 = vpop.f32.mrb[0].mxu0
        %v3073 = vpop.f32.mrb[0].mxu0
        %v3074 = vpop.f32.mrb[0].mxu0
        %3075 = vdwg.mxu0
        %v3076 = vadd.f32 %v2917, %v3071
        %3077 = vrot.lane.b32.xlu0 %v2130, 108
        %v3078 = vpop.permute.xlu0 %3077
        %3079 = vrot.lane.b32.xlu0 %v2197, 108
        %v3080 = vpop.permute.xlu0 %3079
        %v3082 = vsel %vm2273, %v3078, 0
        %v3085 = vsel %vm2273, %v3080, 0
        %3087 = vmatprep.subr.bf16.mxu0 0
        %3088 = vmatpush1.bf16.xpose.msra.mxu0 %v3085
        %3089 = vmatprep.subr.bf16.mxu0 0
        %3090 = vmatpush1.bf16.xpose.msra.mxu0 0
        %3091 = vmatprep.subr.bf16.mxu0 0
        %3092 = vmatpush1.bf16.xpose.msra.mxu0 0
        %3093 = vmatprep.subr.bf16.mxu0 0
        %3094 = vmatpush1.bf16.xpose.msra.mxu0 0
        %3095 = vmatprep.subr.bf16.mxu0 0
        %3096 = vmatpush1.bf16.xpose.msra.mxu0 0
        %3097 = vmatprep.subr.bf16.mxu0 0
        %3098 = vmatpush1.bf16.xpose.msra.mxu0 0
        %3099 = vmatprep.subr.bf16.mxu0 0
        %3100 = vmatpush1.bf16.xpose.msra.mxu0 0
        %3101 = vmatprep.subr.bf16.mxu0 0
        %3102 = vmatpush1.bf16.xpose.msra.mxu0 0
        %3103 = vmatprep.subr.bf16.mxu0 0
        %3104 = vmatpush1.bf16.xpose.msra.mxu0 0
        %3105 = vmatprep.subr.bf16.mxu0 0
        %3106 = vmatpush1.bf16.xpose.msra.mxu0 0
        %3107 = vmatprep.subr.bf16.mxu0 0
        %3108 = vmatpush1.bf16.xpose.msra.mxu0 0
        %3109 = vmatprep.subr.bf16.mxu0 0
        %3110 = vmatpush1.bf16.xpose.msra.mxu0 0
        %3111 = vmatprep.subr.bf16.mxu0 0
        %3112 = vmatpush1.bf16.xpose.msra.mxu0 0
        %3113 = vmatprep.subr.bf16.mxu0 0
        %3114 = vmatpush1.bf16.xpose.msra.mxu0 0
        %3115 = vmatprep.subr.bf16.mxu0 0
        %3116 = vmatpush1.bf16.xpose.msra.mxu0 0
        %3117 = vmatprep.subr.bf16.mxu0 0
        %3118 = vmatpush1.bf16.xpose.msra.mxu0 0
        %3119 = vmatprep.mubr.bf16.mxu0 0
        %3120 = vmatmul.mubr.bf16.gmra.mrb[0].mxu0 %v3082
        %v3121 = vpop.f32.mrb[0].mxu0
        %v3122 = vadd.f32 0.0, %v3121
        %v3123 = vpop.f32.mrb[0].mxu0
        %v3124 = vpop.f32.mrb[0].mxu0
        %v3125 = vpop.f32.mrb[0].mxu0
        %3126 = vdwg.mxu0
        %v3127 = vsel %vm2320, %v3122, -inf
        %3128 = vmax.xlane.f32.xlu0 %v3127
        %v3129 = vpop.xlane.xlu0 %3128
        %v3130 = vsub.f32 %v3122, %v3129
        %v3131 = vmul.f32 %v3130, 1.442695
        %v3132 = vpow.pop %v3131
        %v3133 = vsel %vm2320, %v3132, 0.0
        %3134 = vadd.xlane.f32.xlu0 %v3133
        %v3135 = vpop.xlane.xlu0 %3134
        %v3136 = vrcp.pop %v3135
        %v3137 = vmul.f32 %v3132, %v3136
        %v3138 = vpack.c.bf16 %v3137, %v3137
        %3139 = vrot.lane.b32.xlu0 %v2264, 108
        %v3140 = vpop.permute.xlu0 %3139
        %v3142 = vsel %vm2320, %v3138, 0
        %v3145 = vsel %vm2336, %v3140, 0
        %3147 = vmatprep.subr.bf16.mxu0 0
        %3148 = vmatpush1.bf16.msra.mxu0 %v3145
        %3149 = vmatprep.subr.bf16.mxu0 0
        %3150 = vmatpush1.bf16.msra.mxu0 0
        %3151 = vmatprep.subr.bf16.mxu0 0
        %3152 = vmatpush1.bf16.msra.mxu0 0
        %3153 = vmatprep.subr.bf16.mxu0 0
        %3154 = vmatpush1.bf16.msra.mxu0 0
        %3155 = vmatprep.subr.bf16.mxu0 0
        %3156 = vmatpush1.bf16.msra.mxu0 0
        %3157 = vmatprep.subr.bf16.mxu0 0
        %3158 = vmatpush1.bf16.msra.mxu0 0
        %3159 = vmatprep.subr.bf16.mxu0 0
        %3160 = vmatpush1.bf16.msra.mxu0 0
        %3161 = vmatprep.subr.bf16.mxu0 0
        %3162 = vmatpush1.bf16.msra.mxu0 0
        %3163 = vmatprep.subr.bf16.mxu0 0
        %3164 = vmatpush1.bf16.msra.mxu0 0
        %3165 = vmatprep.subr.bf16.mxu0 0
        %3166 = vmatpush1.bf16.msra.mxu0 0
        %3167 = vmatprep.subr.bf16.mxu0 0
        %3168 = vmatpush1.bf16.msra.mxu0 0
        %3169 = vmatprep.subr.bf16.mxu0 0
        %3170 = vmatpush1.bf16.msra.mxu0 0
        %3171 = vmatprep.subr.bf16.mxu0 0
        %3172 = vmatpush1.bf16.msra.mxu0 0
        %3173 = vmatprep.subr.bf16.mxu0 0
        %3174 = vmatpush1.bf16.msra.mxu0 0
        %3175 = vmatprep.subr.bf16.mxu0 0
        %3176 = vmatpush1.bf16.msra.mxu0 0
        %3177 = vmatprep.subr.bf16.mxu0 0
        %3178 = vmatpush1.bf16.msra.mxu0 0
        %3179 = vmatprep.mubr.bf16.mxu0 0
        %3180 = vmatmul.mubr.bf16.gmra.mrb[0].mxu0 %v3142
        %v3181 = vpop.f32.mrb[0].mxu0
        %v3182 = vadd.f32 0.0, %v3181
        %v3183 = vpop.f32.mrb[0].mxu0
        %v3184 = vpop.f32.mrb[0].mxu0
        %v3185 = vpop.f32.mrb[0].mxu0
        %3186 = vdwg.mxu0
        %v3187 = vpack.c.bf16 %v3182, %v3182
        %v3188 = vld [vmem:[%s53 + $0x8] sm:$0xc]
        %v3190 = vunpack.c.l.b16 %v3188
        %v3191 = vpack.c.b16 %v3190, %v3190
        %v3192 = vrot.slane %v3191, 2
        %v3194 = vsel %vm2273, %v3187, 0
        %v3197 = vsel %vm2385, %v3192, 0
        %3199 = vmatprep.subr.bf16.mxu0 0
        %3200 = vmatpush1.bf16.msra.mxu0 %v3197
        %3201 = vmatprep.subr.bf16.mxu0 0
        %3202 = vmatpush1.bf16.msra.mxu0 0
        %3203 = vmatprep.subr.bf16.mxu0 0
        %3204 = vmatpush1.bf16.msra.mxu0 0
        %3205 = vmatprep.subr.bf16.mxu0 0
        %3206 = vmatpush1.bf16.msra.mxu0 0
        %3207 = vmatprep.subr.bf16.mxu0 0
        %3208 = vmatpush1.bf16.msra.mxu0 0
        %3209 = vmatprep.subr.bf16.mxu0 0
        %3210 = vmatpush1.bf16.msra.mxu0 0
        %3211 = vmatprep.subr.bf16.mxu0 0
        %3212 = vmatpush1.bf16.msra.mxu0 0
        %3213 = vmatprep.subr.bf16.mxu0 0
        %3214 = vmatpush1.bf16.msra.mxu0 0
        %3215 = vmatprep.subr.bf16.mxu0 0
        %3216 = vmatpush1.bf16.msra.mxu0 0
        %3217 = vmatprep.subr.bf16.mxu0 0
        %3218 = vmatpush1.bf16.msra.mxu0 0
        %3219 = vmatprep.subr.bf16.mxu0 0
        %3220 = vmatpush1.bf16.msra.mxu0 0
        %3221 = vmatprep.subr.bf16.mxu0 0
        %3222 = vmatpush1.bf16.msra.mxu0 0
        %3223 = vmatprep.subr.bf16.mxu0 0
        %3224 = vmatpush1.bf16.msra.mxu0 0
        %3225 = vmatprep.subr.bf16.mxu0 0
        %3226 = vmatpush1.bf16.msra.mxu0 0
        %3227 = vmatprep.subr.bf16.mxu0 0
        %3228 = vmatpush1.bf16.msra.mxu0 0
        %3229 = vmatprep.subr.bf16.mxu0 0
        %3230 = vmatpush1.bf16.msra.mxu0 0
        %3231 = vmatprep.mubr.bf16.mxu0 0
        %3232 = vmatmul.mubr.bf16.gmra.mrb[0].mxu0 %v3194
        %v3233 = vpop.f32.mrb[0].mxu0
        %v3234 = vadd.f32 0.0, %v3233
        %v3235 = vpop.f32.mrb[0].mxu0
        %v3236 = vpop.f32.mrb[0].mxu0
        %v3237 = vpop.f32.mrb[0].mxu0
        %3238 = vdwg.mxu0
        %v3239 = vadd.f32 %v3076, %v3234
        %3240 = vrot.lane.b32.xlu0 %v2130, 104
        %v3241 = vpop.permute.xlu0 %3240
        %3242 = vrot.lane.b32.xlu0 %v2197, 104
        %v3243 = vpop.permute.xlu0 %3242
        %v3245 = vsel %vm2273, %v3241, 0
        %v3248 = vsel %vm2273, %v3243, 0
        %3250 = vmatprep.subr.bf16.mxu0 0
        %3251 = vmatpush1.bf16.xpose.msra.mxu0 %v3248
        %3252 = vmatprep.subr.bf16.mxu0 0
        %3253 = vmatpush1.bf16.xpose.msra.mxu0 0
        %3254 = vmatprep.subr.bf16.mxu0 0
        %3255 = vmatpush1.bf16.xpose.msra.mxu0 0
        %3256 = vmatprep.subr.bf16.mxu0 0
        %3257 = vmatpush1.bf16.xpose.msra.mxu0 0
        %3258 = vmatprep.subr.bf16.mxu0 0
        %3259 = vmatpush1.bf16.xpose.msra.mxu0 0
        %3260 = vmatprep.subr.bf16.mxu0 0
        %3261 = vmatpush1.bf16.xpose.msra.mxu0 0
        %3262 = vmatprep.subr.bf16.mxu0 0
        %3263 = vmatpush1.bf16.xpose.msra.mxu0 0
        %3264 = vmatprep.subr.bf16.mxu0 0
        %3265 = vmatpush1.bf16.xpose.msra.mxu0 0
        %3266 = vmatprep.subr.bf16.mxu0 0
        %3267 = vmatpush1.bf16.xpose.msra.mxu0 0
        %3268 = vmatprep.subr.bf16.mxu0 0
        %3269 = vmatpush1.bf16.xpose.msra.mxu0 0
        %3270 = vmatprep.subr.bf16.mxu0 0
        %3271 = vmatpush1.bf16.xpose.msra.mxu0 0
        %3272 = vmatprep.subr.bf16.mxu0 0
        %3273 = vmatpush1.bf16.xpose.msra.mxu0 0
        %3274 = vmatprep.subr.bf16.mxu0 0
        %3275 = vmatpush1.bf16.xpose.msra.mxu0 0
        %3276 = vmatprep.subr.bf16.mxu0 0
        %3277 = vmatpush1.bf16.xpose.msra.mxu0 0
        %3278 = vmatprep.subr.bf16.mxu0 0
        %3279 = vmatpush1.bf16.xpose.msra.mxu0 0
        %3280 = vmatprep.subr.bf16.mxu0 0
        %3281 = vmatpush1.bf16.xpose.msra.mxu0 0
        %3282 = vmatprep.mubr.bf16.mxu0 0
        %3283 = vmatmul.mubr.bf16.gmra.mrb[0].mxu0 %v3245
        %v3284 = vpop.f32.mrb[0].mxu0
        %v3285 = vadd.f32 0.0, %v3284
        %v3286 = vpop.f32.mrb[0].mxu0
        %v3287 = vpop.f32.mrb[0].mxu0
        %v3288 = vpop.f32.mrb[0].mxu0
        %3289 = vdwg.mxu0
        %v3290 = vsel %vm2320, %v3285, -inf
        %3291 = vmax.xlane.f32.xlu0 %v3290
        %v3292 = vpop.xlane.xlu0 %3291
        %v3293 = vsub.f32 %v3285, %v3292
        %v3294 = vmul.f32 %v3293, 1.442695
        %v3295 = vpow.pop %v3294
        %v3296 = vsel %vm2320, %v3295, 0.0
        %3297 = vadd.xlane.f32.xlu0 %v3296
        %v3298 = vpop.xlane.xlu0 %3297
        %v3299 = vrcp.pop %v3298
        %v3300 = vmul.f32 %v3295, %v3299
        %v3301 = vpack.c.bf16 %v3300, %v3300
        %3302 = vrot.lane.b32.xlu0 %v2264, 104
        %v3303 = vpop.permute.xlu0 %3302
        %v3305 = vsel %vm2320, %v3301, 0
        %v3308 = vsel %vm2336, %v3303, 0
        %3310 = vmatprep.subr.bf16.mxu0 0
        %3311 = vmatpush1.bf16.msra.mxu0 %v3308
        %3312 = vmatprep.subr.bf16.mxu0 0
        %3313 = vmatpush1.bf16.msra.mxu0 0
        %3314 = vmatprep.subr.bf16.mxu0 0
        %3315 = vmatpush1.bf16.msra.mxu0 0
        %3316 = vmatprep.subr.bf16.mxu0 0
        %3317 = vmatpush1.bf16.msra.mxu0 0
        %3318 = vmatprep.subr.bf16.mxu0 0
        %3319 = vmatpush1.bf16.msra.mxu0 0
        %3320 = vmatprep.subr.bf16.mxu0 0
        %3321 = vmatpush1.bf16.msra.mxu0 0
        %3322 = vmatprep.subr.bf16.mxu0 0
        %3323 = vmatpush1.bf16.msra.mxu0 0
        %3324 = vmatprep.subr.bf16.mxu0 0
        %3325 = vmatpush1.bf16.msra.mxu0 0
        %3326 = vmatprep.subr.bf16.mxu0 0
        %3327 = vmatpush1.bf16.msra.mxu0 0
        %3328 = vmatprep.subr.bf16.mxu0 0
        %3329 = vmatpush1.bf16.msra.mxu0 0
        %3330 = vmatprep.subr.bf16.mxu0 0
        %3331 = vmatpush1.bf16.msra.mxu0 0
        %3332 = vmatprep.subr.bf16.mxu0 0
        %3333 = vmatpush1.bf16.msra.mxu0 0
        %3334 = vmatprep.subr.bf16.mxu0 0
        %3335 = vmatpush1.bf16.msra.mxu0 0
        %3336 = vmatprep.subr.bf16.mxu0 0
        %3337 = vmatpush1.bf16.msra.mxu0 0
        %3338 = vmatprep.subr.bf16.mxu0 0
        %3339 = vmatpush1.bf16.msra.mxu0 0
        %3340 = vmatprep.subr.bf16.mxu0 0
        %3341 = vmatpush1.bf16.msra.mxu0 0
        %3342 = vmatprep.mubr.bf16.mxu0 0
        %3343 = vmatmul.mubr.bf16.gmra.mrb[0].mxu0 %v3305
        %v3344 = vpop.f32.mrb[0].mxu0
        %v3345 = vadd.f32 0.0, %v3344
        %v3346 = vpop.f32.mrb[0].mxu0
        %v3347 = vpop.f32.mrb[0].mxu0
        %v3348 = vpop.f32.mrb[0].mxu0
        %3349 = vdwg.mxu0
        %v3350 = vpack.c.bf16 %v3345, %v3345
        %v3351 = vld [vmem:[%s53 + $0xc] sm:$0x3]
        %v3353 = vsel %vm2273, %v3350, 0
        %v3356 = vsel %vm2385, %v3351, 0
        %3358 = vmatprep.subr.bf16.mxu0 0
        %3359 = vmatpush1.bf16.msra.mxu0 %v3356
        %3360 = vmatprep.subr.bf16.mxu0 0
        %3361 = vmatpush1.bf16.msra.mxu0 0
        %3362 = vmatprep.subr.bf16.mxu0 0
        %3363 = vmatpush1.bf16.msra.mxu0 0
        %3364 = vmatprep.subr.bf16.mxu0 0
        %3365 = vmatpush1.bf16.msra.mxu0 0
        %3366 = vmatprep.subr.bf16.mxu0 0
        %3367 = vmatpush1.bf16.msra.mxu0 0
        %3368 = vmatprep.subr.bf16.mxu0 0
        %3369 = vmatpush1.bf16.msra.mxu0 0
        %3370 = vmatprep.subr.bf16.mxu0 0
        %3371 = vmatpush1.bf16.msra.mxu0 0
        %3372 = vmatprep.subr.bf16.mxu0 0
        %3373 = vmatpush1.bf16.msra.mxu0 0
        %3374 = vmatprep.subr.bf16.mxu0 0
        %3375 = vmatpush1.bf16.msra.mxu0 0
        %3376 = vmatprep.subr.bf16.mxu0 0
        %3377 = vmatpush1.bf16.msra.mxu0 0
        %3378 = vmatprep.subr.bf16.mxu0 0
        %3379 = vmatpush1.bf16.msra.mxu0 0
        %3380 = vmatprep.subr.bf16.mxu0 0
        %3381 = vmatpush1.bf16.msra.mxu0 0
        %3382 = vmatprep.subr.bf16.mxu0 0
        %3383 = vmatpush1.bf16.msra.mxu0 0
        %3384 = vmatprep.subr.bf16.mxu0 0
        %3385 = vmatpush1.bf16.msra.mxu0 0
        %3386 = vmatprep.subr.bf16.mxu0 0
        %3387 = vmatpush1.bf16.msra.mxu0 0
        %3388 = vmatprep.subr.bf16.mxu0 0
        %3389 = vmatpush1.bf16.msra.mxu0 0
        %3390 = vmatprep.mubr.bf16.mxu0 0
        %3391 = vmatmul.mubr.bf16.gmra.mrb[0].mxu0 %v3353
        %v3392 = vpop.f32.mrb[0].mxu0
        %v3393 = vadd.f32 0.0, %v3392
        %v3394 = vpop.f32.mrb[0].mxu0
        %v3395 = vpop.f32.mrb[0].mxu0
        %v3396 = vpop.f32.mrb[0].mxu0
        %3397 = vdwg.mxu0
        %v3398 = vadd.f32 %v3239, %v3393
        %3399 = vrot.lane.b32.xlu0 %v2130, 100
        %v3400 = vpop.permute.xlu0 %3399
        %3401 = vrot.lane.b32.xlu0 %v2197, 100
        %v3402 = vpop.permute.xlu0 %3401
        %v3404 = vsel %vm2273, %v3400, 0
        %v3407 = vsel %vm2273, %v3402, 0
        %3409 = vmatprep.subr.bf16.mxu0 0
        %3410 = vmatpush1.bf16.xpose.msra.mxu0 %v3407
        %3411 = vmatprep.subr.bf16.mxu0 0
        %3412 = vmatpush1.bf16.xpose.msra.mxu0 0
        %3413 = vmatprep.subr.bf16.mxu0 0
        %3414 = vmatpush1.bf16.xpose.msra.mxu0 0
        %3415 = vmatprep.subr.bf16.mxu0 0
        %3416 = vmatpush1.bf16.xpose.msra.mxu0 0
        %3417 = vmatprep.subr.bf16.mxu0 0
        %3418 = vmatpush1.bf16.xpose.msra.mxu0 0
        %3419 = vmatprep.subr.bf16.mxu0 0
        %3420 = vmatpush1.bf16.xpose.msra.mxu0 0
        %3421 = vmatprep.subr.bf16.mxu0 0
        %3422 = vmatpush1.bf16.xpose.msra.mxu0 0
        %3423 = vmatprep.subr.bf16.mxu0 0
        %3424 = vmatpush1.bf16.xpose.msra.mxu0 0
        %3425 = vmatprep.subr.bf16.mxu0 0
        %3426 = vmatpush1.bf16.xpose.msra.mxu0 0
        %3427 = vmatprep.subr.bf16.mxu0 0
        %3428 = vmatpush1.bf16.xpose.msra.mxu0 0
        %3429 = vmatprep.subr.bf16.mxu0 0
        %3430 = vmatpush1.bf16.xpose.msra.mxu0 0
        %3431 = vmatprep.subr.bf16.mxu0 0
        %3432 = vmatpush1.bf16.xpose.msra.mxu0 0
        %3433 = vmatprep.subr.bf16.mxu0 0
        %3434 = vmatpush1.bf16.xpose.msra.mxu0 0
        %3435 = vmatprep.subr.bf16.mxu0 0
        %3436 = vmatpush1.bf16.xpose.msra.mxu0 0
        %3437 = vmatprep.subr.bf16.mxu0 0
        %3438 = vmatpush1.bf16.xpose.msra.mxu0 0
        %3439 = vmatprep.subr.bf16.mxu0 0
        %3440 = vmatpush1.bf16.xpose.msra.mxu0 0
        %3441 = vmatprep.mubr.bf16.mxu0 0
        %3442 = vmatmul.mubr.bf16.gmra.mrb[0].mxu0 %v3404
        %v3443 = vpop.f32.mrb[0].mxu0
        %v3444 = vadd.f32 0.0, %v3443
        %v3445 = vpop.f32.mrb[0].mxu0
        %v3446 = vpop.f32.mrb[0].mxu0
        %v3447 = vpop.f32.mrb[0].mxu0
        %3448 = vdwg.mxu0
        %v3449 = vsel %vm2320, %v3444, -inf
        %3450 = vmax.xlane.f32.xlu0 %v3449
        %v3451 = vpop.xlane.xlu0 %3450
        %v3452 = vsub.f32 %v3444, %v3451
        %v3453 = vmul.f32 %v3452, 1.442695
        %v3454 = vpow.pop %v3453
        %v3455 = vsel %vm2320, %v3454, 0.0
        %3456 = vadd.xlane.f32.xlu0 %v3455
        %v3457 = vpop.xlane.xlu0 %3456
        %v3458 = vrcp.pop %v3457
        %v3459 = vmul.f32 %v3454, %v3458
        %v3460 = vpack.c.bf16 %v3459, %v3459
        %3461 = vrot.lane.b32.xlu0 %v2264, 100
        %v3462 = vpop.permute.xlu0 %3461
        %v3464 = vsel %vm2320, %v3460, 0
        %v3467 = vsel %vm2336, %v3462, 0
        %3469 = vmatprep.subr.bf16.mxu0 0
        %3470 = vmatpush1.bf16.msra.mxu0 %v3467
        %3471 = vmatprep.subr.bf16.mxu0 0
        %3472 = vmatpush1.bf16.msra.mxu0 0
        %3473 = vmatprep.subr.bf16.mxu0 0
        %3474 = vmatpush1.bf16.msra.mxu0 0
        %3475 = vmatprep.subr.bf16.mxu0 0
        %3476 = vmatpush1.bf16.msra.mxu0 0
        %3477 = vmatprep.subr.bf16.mxu0 0
        %3478 = vmatpush1.bf16.msra.mxu0 0
        %3479 = vmatprep.subr.bf16.mxu0 0
        %3480 = vmatpush1.bf16.msra.mxu0 0
        %3481 = vmatprep.subr.bf16.mxu0 0
        %3482 = vmatpush1.bf16.msra.mxu0 0
        %3483 = vmatprep.subr.bf16.mxu0 0
        %3484 = vmatpush1.bf16.msra.mxu0 0
        %3485 = vmatprep.subr.bf16.mxu0 0
        %3486 = vmatpush1.bf16.msra.mxu0 0
        %3487 = vmatprep.subr.bf16.mxu0 0
        %3488 = vmatpush1.bf16.msra.mxu0 0
        %3489 = vmatprep.subr.bf16.mxu0 0
        %3490 = vmatpush1.bf16.msra.mxu0 0
        %3491 = vmatprep.subr.bf16.mxu0 0
        %3492 = vmatpush1.bf16.msra.mxu0 0
        %3493 = vmatprep.subr.bf16.mxu0 0
        %3494 = vmatpush1.bf16.msra.mxu0 0
        %3495 = vmatprep.subr.bf16.mxu0 0
        %3496 = vmatpush1.bf16.msra.mxu0 0
        %3497 = vmatprep.subr.bf16.mxu0 0
        %3498 = vmatpush1.bf16.msra.mxu0 0
        %3499 = vmatprep.subr.bf16.mxu0 0
        %3500 = vmatpush1.bf16.msra.mxu0 0
        %3501 = vmatprep.mubr.bf16.mxu0 0
        %3502 = vmatmul.mubr.bf16.gmra.mrb[0].mxu0 %v3464
        %v3503 = vpop.f32.mrb[0].mxu0
        %v3504 = vadd.f32 0.0, %v3503
        %v3505 = vpop.f32.mrb[0].mxu0
        %v3506 = vpop.f32.mrb[0].mxu0
        %v3507 = vpop.f32.mrb[0].mxu0
        %3508 = vdwg.mxu0
        %v3509 = vpack.c.bf16 %v3504, %v3504
        %v3510 = vld [vmem:[%s53 + $0xc] sm:$0xc]
        %v3512 = vunpack.c.l.b16 %v3510
        %v3513 = vpack.c.b16 %v3512, %v3512
        %v3514 = vrot.slane %v3513, 2
        %v3516 = vsel %vm2273, %v3509, 0
        %v3519 = vsel %vm2385, %v3514, 0
        %3521 = vmatprep.subr.bf16.mxu0 0
        %3522 = vmatpush1.bf16.msra.mxu0 %v3519
        %3523 = vmatprep.subr.bf16.mxu0 0
        %3524 = vmatpush1.bf16.msra.mxu0 0
        %3525 = vmatprep.subr.bf16.mxu0 0
        %3526 = vmatpush1.bf16.msra.mxu0 0
        %3527 = vmatprep.subr.bf16.mxu0 0
        %3528 = vmatpush1.bf16.msra.mxu0 0
        %3529 = vmatprep.subr.bf16.mxu0 0
        %3530 = vmatpush1.bf16.msra.mxu0 0
        %3531 = vmatprep.subr.bf16.mxu0 0
        %3532 = vmatpush1.bf16.msra.mxu0 0
        %3533 = vmatprep.subr.bf16.mxu0 0
        %3534 = vmatpush1.bf16.msra.mxu0 0
        %3535 = vmatprep.subr.bf16.mxu0 0
        %3536 = vmatpush1.bf16.msra.mxu0 0
        %3537 = vmatprep.subr.bf16.mxu0 0
        %3538 = vmatpush1.bf16.msra.mxu0 0
        %3539 = vmatprep.subr.bf16.mxu0 0
        %3540 = vmatpush1.bf16.msra.mxu0 0
        %3541 = vmatprep.subr.bf16.mxu0 0
        %3542 = vmatpush1.bf16.msra.mxu0 0
        %3543 = vmatprep.subr.bf16.mxu0 0
        %3544 = vmatpush1.bf16.msra.mxu0 0
        %3545 = vmatprep.subr.bf16.mxu0 0
        %3546 = vmatpush1.bf16.msra.mxu0 0
        %3547 = vmatprep.subr.bf16.mxu0 0
        %3548 = vmatpush1.bf16.msra.mxu0 0
        %3549 = vmatprep.subr.bf16.mxu0 0
        %3550 = vmatpush1.bf16.msra.mxu0 0
        %3551 = vmatprep.subr.bf16.mxu0 0
        %3552 = vmatpush1.bf16.msra.mxu0 0
        %3553 = vmatprep.mubr.bf16.mxu0 0
        %3554 = vmatmul.mubr.bf16.gmra.mrb[0].mxu0 %v3516
        %v3555 = vpop.f32.mrb[0].mxu0
        %v3556 = vadd.f32 0.0, %v3555
        %v3557 = vpop.f32.mrb[0].mxu0
        %v3558 = vpop.f32.mrb[0].mxu0
        %v3559 = vpop.f32.mrb[0].mxu0
        %3560 = vdwg.mxu0
        %v3561 = vadd.f32 %v3398, %v3556
        %v3562 = vld [vmem:[%s7 + $0x4] sm:$0x1]
        %v3563 = vmul.f32 %v3561, %v3561
        %v3564 = vsel %vm1024, %v3563, 0.0
        %3565 = vadd.xlane.f32.xlu0 %v3564
        %v3566 = vpop.xlane.xlu0 %3565
        %v3567 = vmax.f32 %v3566, 3.2e-15
        %v3568 = vrsqrt.pop %v3567
        %v3569 = vmul.f32 %v3568, 5.656854
        %v3570 = vmul.f32 %v3561, %v3569
        %v3571 = vlaneseq
        %v3572 = vshrl.u32 %v3571, 7
        %v3573 = vsub.s32 0, %v3572
        %v3574 = vrot.slane %v3562, %v3573
        %v3575 = vmul.f32 %v3570, %v3574
        %v3576 = vpack.c.bf16 %v3575, %v3575
        %v3577 = vld [vmem:[%s57] sm:$0xf]
        %v3578 = vld [vmem:[%s57 + $0x4] sm:$0xf]
        %v3579 = vld [vmem:[%s57 + $0x8] sm:$0xf]
        %v3580 = vld [vmem:[%s57 + $0xc] sm:$0xf]
        %v3581 = vld [vmem:[%s59] sm:$0x1]
        %v3583 = vlaneseq
        %v3584 = vshrl.u32 %v3583, 7
        %v3585 = vsub.s32 0, %v3584
        %v3586 = vrot.slane %v3581, %v3585
        %v3592 = vunpack.c.l.b16 %v3577
        %v3593 = vunpack.c.l.b16 %v3578
        %v3594 = vunpack.c.l.b16 %v3579
        %v3595 = vunpack.c.l.b16 %v3580
        %v3596 = vpack.c.b16 %v3593, %v3592
        %v3597 = vpack.c.b16 %v3595, %v3594
        %v3601 = vsel %vm1024, %v3576, 0
        %3603 = vmatprep.subr.bf16.mxu0 0
        %3604 = vmatpush1.bf16.msra.mxu0 %v3596
        %3605 = vmatprep.subr.bf16.mxu0 0
        %3606 = vmatpush1.bf16.msra.mxu0 %v3597
        %3607 = vmatprep.subr.bf16.mxu0 0
        %3608 = vmatpush1.bf16.msra.mxu0 0
        %3609 = vmatprep.subr.bf16.mxu0 0
        %3610 = vmatpush1.bf16.msra.mxu0 0
        %3611 = vmatprep.subr.bf16.mxu0 0
        %3612 = vmatpush1.bf16.msra.mxu0 0
        %3613 = vmatprep.subr.bf16.mxu0 0
        %3614 = vmatpush1.bf16.msra.mxu0 0
        %3615 = vmatprep.subr.bf16.mxu0 0
        %3616 = vmatpush1.bf16.msra.mxu0 0
        %3617 = vmatprep.subr.bf16.mxu0 0
        %3618 = vmatpush1.bf16.msra.mxu0 0
        %3619 = vmatprep.subr.bf16.mxu0 0
        %3620 = vmatpush1.bf16.msra.mxu0 0
        %3621 = vmatprep.subr.bf16.mxu0 0
        %3622 = vmatpush1.bf16.msra.mxu0 0
        %3623 = vmatprep.subr.bf16.mxu0 0
        %3624 = vmatpush1.bf16.msra.mxu0 0
        %3625 = vmatprep.subr.bf16.mxu0 0
        %3626 = vmatpush1.bf16.msra.mxu0 0
        %3627 = vmatprep.subr.bf16.mxu0 0
        %3628 = vmatpush1.bf16.msra.mxu0 0
        %3629 = vmatprep.subr.bf16.mxu0 0
        %3630 = vmatpush1.bf16.msra.mxu0 0
        %3631 = vmatprep.subr.bf16.mxu0 0
        %3632 = vmatpush1.bf16.msra.mxu0 0
        %3633 = vmatprep.subr.bf16.mxu0 0
        %3634 = vmatpush1.bf16.msra.mxu0 0
        %3635 = vmatprep.mubr.bf16.mxu0 0
        %3636 = vmatmul.mubr.bf16.gmra.mrb[0].mxu0 %v3601
        %v3637 = vpop.f32.mrb[0].mxu0
        %v3638 = vadd.f32 %v3586, %v3637
        %v3639 = vpop.f32.mrb[0].mxu0
        %v3640 = vpop.f32.mrb[0].mxu0
        %v3641 = vpop.f32.mrb[0].mxu0
        %3642 = vdwg.mxu0
        %v3643 = vmax.f32 %v3638, 0.0
        %v3644 = vpack.c.bf16 %v3643, %v3643
        %v3645 = vld [vmem:[%s61] sm:$0xf]
        %v3646 = vld [vmem:[%s61 + $0x4] sm:$0xf]
        %v3647 = vld [vmem:[%s61 + $0x8] sm:$0xf]
        %v3648 = vld [vmem:[%s61 + $0xc] sm:$0xf]
        %v3649 = vld [vmem:[%s61 + $0x10] sm:$0xf]
        %v3650 = vld [vmem:[%s61 + $0x14] sm:$0xf]
        %v3651 = vld [vmem:[%s61 + $0x18] sm:$0xf]
        %v3652 = vld [vmem:[%s61 + $0x1c] sm:$0xf]
        %v3653 = vld [vmem:[%s61 + $0x20] sm:$0xf]
        %v3654 = vld [vmem:[%s61 + $0x24] sm:$0xf]
        %v3655 = vld [vmem:[%s61 + $0x28] sm:$0xf]
        %v3656 = vld [vmem:[%s61 + $0x2c] sm:$0xf]
        %v3657 = vld [vmem:[%s61 + $0x30] sm:$0xf]
        %v3658 = vld [vmem:[%s61 + $0x34] sm:$0xf]
        %v3659 = vld [vmem:[%s61 + $0x38] sm:$0xf]
        %v3660 = vld [vmem:[%s61 + $0x3c] sm:$0xf]
        %v3661 = vld [vmem:[%s63] sm:$0x1]
        %v3663 = vlaneseq
        %v3664 = vshrl.u32 %v3663, 7
        %v3665 = vsub.s32 0, %v3664
        %v3666 = vrot.slane %v3661, %v3665
        %v3684 = vunpack.c.l.b16 %v3645
        %v3685 = vunpack.c.l.b16 %v3646
        %v3686 = vunpack.c.l.b16 %v3647
        %v3687 = vunpack.c.l.b16 %v3648
        %v3688 = vunpack.c.l.b16 %v3649
        %v3689 = vunpack.c.l.b16 %v3650
        %v3690 = vunpack.c.l.b16 %v3651
        %v3691 = vunpack.c.l.b16 %v3652
        %v3692 = vunpack.c.l.b16 %v3653
        %v3693 = vunpack.c.l.b16 %v3654
        %v3694 = vunpack.c.l.b16 %v3655
        %v3695 = vunpack.c.l.b16 %v3656
        %v3696 = vunpack.c.l.b16 %v3657
        %v3697 = vunpack.c.l.b16 %v3658
        %v3698 = vunpack.c.l.b16 %v3659
        %v3699 = vunpack.c.l.b16 %v3660
        %v3700 = vpack.c.b16 %v3685, %v3684
        %v3701 = vpack.c.b16 %v3687, %v3686
        %v3702 = vpack.c.b16 %v3689, %v3688
        %v3703 = vpack.c.b16 %v3691, %v3690
        %v3704 = vpack.c.b16 %v3693, %v3692
        %v3705 = vpack.c.b16 %v3695, %v3694
        %v3706 = vpack.c.b16 %v3697, %v3696
        %v3707 = vpack.c.b16 %v3699, %v3698
        %3716 = vmatprep.subr.bf16.mxu0 0
        %3717 = vmatpush1.bf16.msra.mxu0 %v3700
        %3718 = vmatprep.subr.bf16.mxu0 0
        %3719 = vmatpush1.bf16.msra.mxu0 %v3701
        %3720 = vmatprep.subr.bf16.mxu0 0
        %3721 = vmatpush1.bf16.msra.mxu0 %v3702
        %3722 = vmatprep.subr.bf16.mxu0 0
        %3723 = vmatpush1.bf16.msra.mxu0 %v3703
        %3724 = vmatprep.subr.bf16.mxu0 0
        %3725 = vmatpush1.bf16.msra.mxu0 %v3704
        %3726 = vmatprep.subr.bf16.mxu0 0
        %3727 = vmatpush1.bf16.msra.mxu0 %v3705
        %3728 = vmatprep.subr.bf16.mxu0 0
        %3729 = vmatpush1.bf16.msra.mxu0 %v3706
        %3730 = vmatprep.subr.bf16.mxu0 0
        %3731 = vmatpush1.bf16.msra.mxu0 %v3707
        %3732 = vmatprep.subr.bf16.mxu0 0
        %3733 = vmatpush1.bf16.msra.mxu0 0
        %3734 = vmatprep.subr.bf16.mxu0 0
        %3735 = vmatpush1.bf16.msra.mxu0 0
        %3736 = vmatprep.subr.bf16.mxu0 0
        %3737 = vmatpush1.bf16.msra.mxu0 0
        %3738 = vmatprep.subr.bf16.mxu0 0
        %3739 = vmatpush1.bf16.msra.mxu0 0
        %3740 = vmatprep.subr.bf16.mxu0 0
        %3741 = vmatpush1.bf16.msra.mxu0 0
        %3742 = vmatprep.subr.bf16.mxu0 0
        %3743 = vmatpush1.bf16.msra.mxu0 0
        %3744 = vmatprep.subr.bf16.mxu0 0
        %3745 = vmatpush1.bf16.msra.mxu0 0
        %3746 = vmatprep.subr.bf16.mxu0 0
        %3747 = vmatpush1.bf16.msra.mxu0 0
        %3748 = vmatprep.mubr.bf16.mxu0 0
        %3749 = vmatmul.mubr.bf16.gmra.mrb[0].mxu0 %v3644
        %v3750 = vpop.f32.mrb[0].mxu0
        %v3751 = vadd.f32 %v3666, %v3750
        %v3752 = vpop.f32.mrb[0].mxu0
        %v3753 = vpop.f32.mrb[0].mxu0
        %v3754 = vpop.f32.mrb[0].mxu0
        %3755 = vdwg.mxu0
        %v3756 = vadd.f32 %v3751, %v3561
        %3757 = vst.msk [vmem:[%s1003] sm:$0xff] %vm1024, %v3756
        %s3758 = sand.u32 %s774, 1
        %s3759 = scalar_lea.sflag [#allocation3], %s3758
        %s3760 = sand.u32 %s774, 1
        %s3761 = smul.addr %s3760, 8
        %s3762 = scalar_lea.vmem [#allocation2], %s3761
        // Predicated region
        $region149: #{tpu_custom_call.1} parent=147 // pred_check
          %p3763 = pneg %p784
        $region150: #{tpu_custom_call.1} parent=147 // pred_check_branch
          %3765 = sbr.rel (%p3763) target = $region152
        $region151: #{tpu_custom_call.1} parent=147 // pred_region
          %s3767 = ssub.s32 128, 128
          %3768 = vsyncadd %s3759, %s3767
          %s3769 = smul.addr %s79, 128
          %s3770 = scalar_lea.hbm %s65, %s3769
          %s3772 = sshll.u32 %s3762, 4
          %s3773 = int_to_ptr.vmem [resolvable:$true] %s3772
          %3775 = dma.vmem_to_hbm [thread:$0]  %s3773, 128, %s3770, %s3759
        $region152: #{tpu_custom_call.1} parent=147 // pred_fallthru
          _
      $region148: #{tpu_custom_call.1} parent=5 // pred_fallthru
        _
      %p3776 = scmp.le.s32.totalorder 2, %s74
      // Predicated region
      $region153: #{tpu_custom_call.1} parent=5 // pred_check
        %p3777 = pneg %p3776
      $region154: #{tpu_custom_call.1} parent=5 // pred_check_branch
        %3779 = sbr.rel (%p3777) target = $region156
      $region155: #{tpu_custom_call.1} parent=5 // pred_region
        %s3780 = ssub.s32 %s74, 2
        // Predicated region
        $region157: #{tpu_custom_call.1} parent=155 // pred_check
          %p3781 = pneg %p790
        $region158: #{tpu_custom_call.1} parent=155 // pred_check_branch
          %3783 = sbr.rel (%p3781) target = $region160
        $region159: #{tpu_custom_call.1} parent=155 // pred_region
          %s3784 = sand.u32 %s775, 1
          %s3785 = scalar_lea.sflag [#allocation3], %s3784
          %s3786 = sand.u32 %s775, 1
          %s3787 = smul.addr %s3786, 8
          %s3788 = scalar_lea.vmem [#allocation2], %s3787
          %3789 = dma.done %s3785, 128
        $region160: #{tpu_custom_call.1} parent=155 // pred_fallthru
          _
      $region156: #{tpu_custom_call.1} parent=5 // pred_fallthru
        _
    $region6: #{tpu_custom_call.1} parent=1 // loop_footer
      %s78 = sadd.s32 1, %s74
    $region7: #{tpu_custom_call.1} parent=1 // loop_footer_branch
      %73 = sbr.rel target = $region3
    $region8: #{tpu_custom_call.1} parent=1 // loop_exit
      _
    %3790 = vsyncpa [#allocation3], 1
    %s3791 = scalar_lea.sflag [#allocation3], 1
    %3792 = vsyncpa %s3791, 1

</llo_original>
